<compile_context>
chip_gen: v7x
topology: tpu7x:2x2x1
jax: 0.10.0
libtpu: 0.0.40
codegen_flags: <defaults>
</compile_context>

<pallas_src>
import math
from functools import partial

import jax
import jax.numpy as jnp
from jax import lax
from jax.experimental import pallas as pl
from jax.experimental.pallas import tpu as pltpu

ETA = 1e-6          # Constants.eta in the reference repo
LN_EPS = 1e-5       # torch.nn.LayerNorm default
NEG_INF = -1e9
# TODO(synk): -1e9 instead of -inf -> a fully masked key row yields a uniform distribution
# instead of torch's NaN; numerically safer, semantically slightly different.


# ----------------------------------------------------------------------------
# helpers (used both in-kernel and by the pure-JAX reference)
# ----------------------------------------------------------------------------
def _round_up(x, m):
    return (x + m - 1) // m * m


def _gelu_tanh(x):
    # tanh-form GELU (EUP transcendental path).
    # TODO(synk): torch's TransformerEncoderLayer(activation='gelu') uses exact-erf GELU;
    # the tanh form differs by <~1e-3 absolute.
    c = math.sqrt(2.0 / math.pi)
    return 0.5 * x * (1.0 + jnp.tanh(c * (x + 0.044715 * (x * x * x))))


def _layernorm(x, w, b):
    mean = jnp.mean(x, axis=-1, keepdims=True)
    d = x - mean
    var = jnp.mean(d * d, axis=-1, keepdims=True)
    return d * lax.rsqrt(var + LN_EPS) * w + b


# ----------------------------------------------------------------------------
# fused encoder kernel (one grid step = Bblk batch elements, whole network)
# ----------------------------------------------------------------------------
def _encoder_kernel(x_ref, bias_ref,
                    skel_w_ref, skel_b_ref, pe_ref,
                    wqkv_ref, bqkv_ref, wo_ref, w1_ref, b1_ref, w2_ref, dpk_ref,
                    wmu_ref, wlv_ref, hbias_ref,
                    mu_ref, lv_ref,
                    *, num_layers, num_heads, head_dim, bblk, s_pad, s_true, d_model):
    D, hd, H = d_model, head_dim, num_heads

    # --- skel_Embedding + positional encoding (dropout = eval no-op) ---
    x = x_ref[...]                                                        # (M, JF) bf16
    h = (jnp.dot(x, skel_w_ref[...], preferred_element_type=jnp.float32)
         + skel_b_ref[...] + pe_ref[...])                                 # (M, D) f32

    for l in range(num_layers):
        dpk = dpk_ref[l]            # (6, D): [bo, ln1_w, ln1_b, b2, ln2_w, ln2_b]

        # --- self attention: one fused QKV matmul over the whole (M, D) slab ---
        qkv = jnp.dot(h.astype(jnp.bfloat16), wqkv_ref[l],
                      preferred_element_type=jnp.float32) + bqkv_ref[l]   # (M, 3D)
        ctx_rows = []
        for b in range(bblk):       # (S, S) score/context core per batch element / head
            qb = qkv[b * s_pad:(b + 1) * s_pad, :].astype(jnp.bfloat16)   # cast once
            bias_b = bias_ref[b]                                          # (1, S)
            heads = []
            for hh in range(H):
                c0 = hh * hd
                q = qb[:, c0:c0 + hd]                 # Q already scaled by 1/sqrt(hd)
                k = qb[:, D + c0:D + c0 + hd]
                v = qb[:, 2 * D + c0:2 * D + c0 + hd]
                s = lax.dot_general(q, k, (((1,), (1,)), ((), ())),
                                    preferred_element_type=jnp.float32)   # (S, S)
                s = s + bias_b
                s = s - jnp.max(s, axis=-1, keepdims=True)
                p = jnp.exp(s)
                p = p * pl.reciprocal(jnp.sum(p, axis=-1, keepdims=True), approx=True)
                heads.append(jnp.dot(p.astype(jnp.bfloat16), v,
                                     preferred_element_type=jnp.float32))  # (S, hd) f32
            ctx_rows.append(jnp.concatenate(heads, axis=-1))               # (S, D) f32
        ctx = jnp.concatenate(ctx_rows, axis=0).astype(jnp.bfloat16)       # (M, D)
        attn = jnp.dot(ctx, wo_ref[l], preferred_element_type=jnp.float32) + dpk[0:1]
        h = _layernorm(h + attn, dpk[1:2], dpk[2:3])

        # --- feed forward on the flattened slab ---
        f = jnp.dot(h.astype(jnp.bfloat16), w1_ref[l],
                    preferred_element_type=jnp.float32) + b1_ref[l]
        f = _gelu_tanh(f)
        f = jnp.dot(f.astype(jnp.bfloat16), w2_ref[l],
                    preferred_element_type=jnp.float32) + dpk[3:4]
        h = _layernorm(h + f, dpk[4:5], dpk[5:6])

    # --- mean over frames + mu / softmax(logvar)+eta heads ---
    hbias = hbias_ref[...]                                                # (2, D)
    inv_s = 1.0 / s_true
    for b in range(bblk):
        hseq = h[b * s_pad:(b + 1) * s_pad, :]                            # (S, D)
        if s_pad != s_true:        # exclude alignment-padding rows from the mean
            rows = lax.broadcasted_iota(jnp.int32, (s_pad, D), 0)
            hseq = jnp.where(rows < s_true, hseq, 0.0)
        # TODO(synk): like the PyTorch reference, the mean includes masked (but real)
        # frames; the padding mask only enters through the attention bias.
        z = (jnp.sum(hseq, axis=0, keepdims=True) * inv_s).astype(jnp.bfloat16)  # (1, D)
        mu = jnp.dot(z, wmu_ref[...], preferred_element_type=jnp.float32) + hbias[0:1]
        lv = jnp.dot(z, wlv_ref[...], preferred_element_type=jnp.float32) + hbias[1:2]
        lv = lv - jnp.max(lv, axis=-1, keepdims=True)
        e = jnp.exp(lv)
        lv = e / jnp.sum(e, axis=-1, keepdims=True) + ETA
        mu_ref[b] = mu
        lv_ref[b] = lv


# ----------------------------------------------------------------------------
# pallas_call wrapper
# ----------------------------------------------------------------------------
def _const_spec(a):
    zeros = (0,) * a.ndim
    return pl.BlockSpec(a.shape, lambda i: zeros)     # whole array, DMA'd once per step


def _pick_block_b(bs, target=8):
    """Largest divisor of bs that is <= target while keeping the grid >= 2 steps
    (so both v7x TensorCores get work); falls back to 1."""
    best = 1
    for c in range(1, min(target, bs) + 1):
        if bs % c == 0 and (bs // c >= 2 or bs == 1):
            best = c
    return best


def _nbytes(a):
    return int(a.size) * a.dtype.itemsize


def _vmem_limit_bytes(weight_bytes, io_block_bytes, act_bytes):
    need = 2 * weight_bytes + 2 * io_block_bytes + 2 * act_bytes + (4 << 20)
    try:
        cap = int(pltpu.get_tpu_info().vmem_capacity_bytes)
    except Exception:
        cap = 64 << 20             # conservative: v7x per-core VMEM
    return int(min(max(need, 16 << 20), (cap * 3) // 4))


def enc_transformer_forward(params, data, mask=None, *, num_heads, block_b=None):
    """data: (bs, nframes, njoints, nfeats); mask: (bs, nframes) bool (True = valid)."""
    if data.ndim == 3:
        data = data[..., None]
    bs, nframes, nj, nf = data.shape
    jf = nj * nf
    D = params["skel_w"].shape[1]
    F = params["w1"].shape[2]
    L = params["wqkv"].shape[0]
    assert D % num_heads == 0

    s_pad = _round_up(nframes, 8)
    bblk = block_b if block_b is not None else _pick_block_b(bs)
    assert bs % bblk == 0
    M = bblk * s_pad

    x = data.astype(jnp.float32).reshape(bs, nframes, jf)
    if mask is None:
        mask = jnp.ones((bs, nframes), dtype=bool)
    if s_pad != nframes:
        x = jnp.pad(x, ((0, 0), (0, s_pad - nframes), (0, 0)))
        mask = jnp.pad(mask, ((0, 0), (0, s_pad - nframes)), constant_values=False)
    x = x.reshape(bs * s_pad, jf).astype(jnp.bfloat16)                    # flat, bf16
    # src_key_padding_mask = ~mask  ->  additive key bias shared by all heads
    bias = jnp.where(mask, 0.0, NEG_INF).astype(jnp.float32)[:, None, :]  # (B, 1, S)

    pe = params["pe"]
    assert pe.shape[0] >= s_pad, "positional encoding table too short"
    pe_tiled = jnp.tile(pe[:s_pad], (bblk, 1))                            # (M, D)

    weights = [params["skel_w"], params["skel_b"], pe_tiled,
               params["wqkv"], params["bqkv"], params["wo"],
               params["w1"], params["b1"], params["w2"], params["dpk"],
               params["mu_w"], params["lv_w"], params["head_b"]]

    kern = partial(_encoder_kernel, num_layers=L, num_heads=num_heads,
                   head_dim=D // num_heads, bblk=bblk, s_pad=s_pad,
                   s_true=nframes, d_model=D)

    in_specs = [pl.BlockSpec((M, jf), lambda i: (i, 0)),
                pl.BlockSpec((bblk, 1, s_pad), lambda i: (i, 0, 0))]
    in_specs += [_const_spec(w) for w in weights]
    out_specs = (pl.BlockSpec((bblk, 1, D), lambda i: (i, 0, 0)),
                 pl.BlockSpec((bblk, 1, D), lambda i: (i, 0, 0)))
    out_shape = (jax.ShapeDtypeStruct((bs, 1, D), jnp.float32),
                 jax.ShapeDtypeStruct((bs, 1, D), jnp.float32))

    # VMEM budget (actual footprint, capped at 75% of device capacity) and cost hint.
    weight_bytes = sum(_nbytes(w) for w in weights)
    io_block_bytes = M * jf * 2 + bblk * s_pad * 4 + 2 * bblk * D * 4
    act_bytes = M * 4 * (3 * D + F + 6 * D) + bblk * num_heads * s_pad * s_pad * 4
    hd = D // num_heads
    m_total = bs * s_pad
    flops = 2 * m_total * jf * D
    flops += L * (2 * m_total * D * 3 * D + 2 * m_total * D * D + 4 * m_total * D * F)
    flops += L * bs * num_heads * 4 * s_pad * s_pad * hd
    flops += 4 * bs * D * D
    trans = L * (bs * num_heads * s_pad * s_pad + m_total * F) + bs * D
    bytes_accessed = weight_bytes + _nbytes(x) + _nbytes(bias) + 2 * bs * D * 4

    mu, lv = pl.pallas_call(
        kern,
        grid=(bs // bblk,),
        in_specs=in_specs,
        out_specs=out_specs,
        out_shape=out_shape,
        compiler_params=pltpu.CompilerParams(
            dimension_semantics=("parallel",),
            vmem_limit_bytes=_vmem_limit_bytes(weight_bytes, io_block_bytes, act_bytes)),
        cost_estimate=pl.CostEstimate(flops=int(flops), transcendentals=int(trans),
                                      bytes_accessed=int(bytes_accessed)),
    )(x, bias, *weights)
    return mu.reshape(bs, D), lv.reshape(bs, D)


# ----------------------------------------------------------------------------
# Parameters: torch layout -> kernel layout, plus a pure-JAX reference
# ----------------------------------------------------------------------------
def init_torch_params(key, *, input_feats, out_dim, ff_size, num_layers, num_heads,
                      nframes, scale=0.05):
    """Random parameters in the PyTorch (out_features, in_features) layout, f32."""
    D = out_dim

    def dense(k, out_f, in_f):
        kw, kb = jax.random.split(k)
        return (jax.random.normal(kw, (out_f, in_f), jnp.float32) * scale,
                jax.random.normal(kb, (out_f,), jnp.float32) * scale)

    keys = jax.random.split(key, 3 + num_layers)
    skel_w, skel_b = dense(keys[0], D, input_feats)
    mu_w, mu_b = dense(keys[1], D, D)
    lv_w, lv_b = dense(keys[2], D, D)

    layers = []
    for l in range(num_layers):
        ks = jax.random.split(keys[3 + l], 8)
        in_w, in_b = dense(ks[0], 3 * D, D)
        out_w, out_b = dense(ks[1], D, D)
        ff1_w, ff1_b = dense(ks[2], ff_size, D)
        ff2_w, ff2_b = dense(ks[3], D, ff_size)
        layers.append(dict(
            in_w=in_w, in_b=in_b, out_w=out_w, out_b=out_b,
            ff1_w=ff1_w, ff1_b=ff1_b, ff2_w=ff2_w, ff2_b=ff2_b,
            ln1_w=1.0 + 0.1 * jax.random.normal(ks[4], (D,), jnp.float32),
            ln1_b=0.1 * jax.random.normal(ks[5], (D,), jnp.float32),
            ln2_w=1.0 + 0.1 * jax.random.normal(ks[6], (D,), jnp.float32),
            ln2_b=0.1 * jax.random.normal(ks[7], (D,), jnp.float32)))

    # ACTOR sinusoidal PositionalEncoding, padded to a multiple of 8 frames
    s_pad = _round_up(nframes, 8)
    pos = jnp.arange(s_pad, dtype=jnp.float32)[:, None]
    div = jnp.exp(jnp.arange(0, D, 2, dtype=jnp.float32) * (-math.log(10000.0) / D))
    pe = jnp.zeros((s_pad, D), jnp.float32)
    pe = pe.at[:, 0::2].set(jnp.sin(pos * div))
    pe = pe.at[:, 1::2].set(jnp.cos(pos * div))

    return dict(skel_w=skel_w, skel_b=skel_b, mu_w=mu_w, mu_b=mu_b,
                lv_w=lv_w, lv_b=lv_b, layers=layers, pe=pe)


def to_kernel_params(tp, *, num_heads):
    """Torch layout -> kernel layout: pre-transposed (K, N) bf16 matmul weights, per-layer
    stacking, small vectors packed lane-dense, attention scale folded into Q."""
    D = tp["skel_w"].shape[0]
    scale = 1.0 / math.sqrt(D // num_heads)

    def mm(w):                     # torch (out, in) -> (in, out) bf16
        return jnp.asarray(w.T, jnp.bfloat16)

    def row(b):                    # (N,) -> (1, N) f32
        return jnp.asarray(b, jnp.float32).reshape(1, -1)

    wqkv, bqkv, wo, w1, b1, w2, dpk = [], [], [], [], [], [], []
    for lp in tp["layers"]:
        in_w = lp["in_w"].at[:D].multiply(scale)       # fold 1/sqrt(hd) into Q
        in_b = lp["in_b"].at[:D].multiply(scale)
        wqkv.append(mm(in_w)); bqkv.append(row(in_b))
        wo.append(mm(lp["out_w"]))
        w1.append(mm(lp["ff1_w"])); b1.append(row(lp["ff1_b"]))
        w2.append(mm(lp["ff2_w"]))
        dpk.append(jnp.stack([lp["out_b"], lp["ln1_w"], lp["ln1_b"],
                              lp["ff2_b"], lp["ln2_w"], lp["ln2_b"]]).astype(jnp.float32))

    return dict(
        skel_w=mm(tp["skel_w"]), skel_b=row(tp["skel_b"]), pe=tp["pe"].astype(jnp.float32),
        wqkv=jnp.stack(wqkv), bqkv=jnp.stack(bqkv), wo=jnp.stack(wo),
        w1=jnp.stack(w1), b1=jnp.stack(b1), w2=jnp.stack(w2), dpk=jnp.stack(dpk),
        mu_w=mm(tp["mu_w"]), lv_w=mm(tp["lv_w"]),
        head_b=jnp.stack([tp["mu_b"], tp["lv_b"]]).astype(jnp.float32))


def reference_forward(tp, data, mask, *, num_heads):
    """Pure-JAX f32 reference mirroring torch Enc_Transformer.forward (eval mode)."""
    if data.ndim == 3:
        data = data[..., None]
    bs, nframes, nj, nf = data.shape
    D = tp["skel_w"].shape[0]
    hd = D // num_heads
    x = data.astype(jnp.float32).reshape(bs, nframes, nj * nf)
    h = x @ tp["skel_w"].T + tp["skel_b"] + tp["pe"][:nframes]
    bias = jnp.where(mask, 0.0, NEG_INF)[:, None, None, :]
    for lp in tp["layers"]:
        qkv = h @ lp["in_w"].T + lp["in_b"]
        q, k, v = jnp.split(qkv, 3, axis=-1)

        def split_heads(t):
            return t.reshape(bs, nframes, num_heads, hd).transpose(0, 2, 1, 3)

        q, k, v = split_heads(q), split_heads(k), split_heads(v)
        s = jnp.einsum("bhqd,bhkd->bhqk", q, k) / math.sqrt(hd) + bias
        p = jax.nn.softmax(s, axis=-1)
        ctx = jnp.einsum("bhqk,bhkd->bhqd", p, v).transpose(0, 2, 1, 3).reshape(bs, nframes, D)
        attn = ctx @ lp["out_w"].T + lp["out_b"]
        h = _layernorm(h + attn, lp["ln1_w"], lp["ln1_b"])
        f = _gelu_tanh(h @ lp["ff1_w"].T + lp["ff1_b"])
        f = f @ lp["ff2_w"].T + lp["ff2_b"]
        h = _layernorm(h + f, lp["ln2_w"], lp["ln2_b"])
    z = h.mean(axis=1)
    mu = z @ tp["mu_w"].T + tp["mu_b"]
    lv = jax.nn.softmax(z @ tp["lv_w"].T + tp["lv_b"], axis=-1) + ETA
    return mu, lv


# ----------------------------------------------------------------------------
if __name__ == "__main__":
    # Small shapes consistent with the module: data_dim = [nframes, njoints, nfeats].
    BS, NFRAMES, NJOINTS, NFEATS = 4, 8, 6, 4
    LATENT_DIM = 128            # out_dim = latent_dim (latent_private=None), lane-aligned
    FF_SIZE = 256
    NUM_LAYERS = 2
    NUM_HEADS = 2               # ACTOR default

    key = jax.random.PRNGKey(0)
    k_data, k_param = jax.random.split(key)
    data = jax.random.normal(k_data, (BS, NFRAMES, NJOINTS, NFEATS), jnp.float32)
    masks = jnp.ones((BS, NFRAMES), dtype=bool)

    tparams = init_torch_params(
        k_param, input_feats=NJOINTS * NFEATS, out_dim=LATENT_DIM, ff_size=FF_SIZE,
        num_layers=NUM_LAYERS, num_heads=NUM_HEADS, nframes=NFRAMES)
    kparams = to_kernel_params(tparams, num_heads=NUM_HEADS)

    fwd = jax.jit(partial(enc_transformer_forward, num_heads=NUM_HEADS))
    mu, logvar = fwd(kparams, data, masks)
    jax.block_until_ready((mu, logvar))

    mu_ref, lv_ref = reference_forward(tparams, data, masks, num_heads=NUM_HEADS)

    assert mu.shape == (BS, LATENT_DIM) and logvar.shape == (BS, LATENT_DIM)
    assert bool(jnp.all(jnp.isfinite(mu))) and bool(jnp.all(jnp.isfinite(logvar)))
    # logvar = softmax(...) + eta  => rows sum to 1 + D*eta
    assert bool(jnp.allclose(jnp.sum(logvar, -1), 1.0 + LATENT_DIM * ETA, atol=1e-3))
    # kernel (bf16 MXU, approx reciprocal) vs f32 reference
    assert bool(jnp.allclose(mu, mu_ref, atol=5e-2, rtol=5e-2)), "mu mismatch vs reference"
    assert bool(jnp.allclose(logvar, lv_ref, atol=5e-3, rtol=5e-2)), "logvar mismatch vs reference"
    print("KERNEL_OK")
</pallas_src>

<mosaic_0001>
module attributes {stable_mosaic.version = 11 : i64} {
  func.func @_encoder_kernel(%arg0: i32, %arg1: memref<16x24xbf16, #tpu.memory_space<vmem>>, %arg2: memref<2x1x8xf32, #tpu.memory_space<vmem>>, %arg3: memref<24x128xbf16, #tpu.memory_space<vmem>>, %arg4: memref<1x128xf32, #tpu.memory_space<vmem>>, %arg5: memref<16x128xf32, #tpu.memory_space<vmem>>, %arg6: memref<2x128x384xbf16, #tpu.memory_space<vmem>>, %arg7: memref<2x1x384xf32, #tpu.memory_space<vmem>>, %arg8: memref<2x128x128xbf16, #tpu.memory_space<vmem>>, %arg9: memref<2x128x256xbf16, #tpu.memory_space<vmem>>, %arg10: memref<2x1x256xf32, #tpu.memory_space<vmem>>, %arg11: memref<2x256x128xbf16, #tpu.memory_space<vmem>>, %arg12: memref<2x6x128xf32, #tpu.memory_space<vmem>>, %arg13: memref<128x128xbf16, #tpu.memory_space<vmem>>, %arg14: memref<128x128xbf16, #tpu.memory_space<vmem>>, %arg15: memref<2x128xf32, #tpu.memory_space<vmem>>, %arg16: memref<2x1x128xf32, #tpu.memory_space<vmem>>, %arg17: memref<2x1x128xf32, #tpu.memory_space<vmem>>) attributes {dimension_semantics = [#tpu.dimension_semantics<parallel>], iteration_bounds = array<i64: 2>, scalar_prefetch = 0 : i64, scratch_operands = 0 : i64, tpu.core_type = #tpu.core_type<tc>, window_params = [{transform_indices = @transform_0, window_bounds = array<i64: 16, 24>}, {transform_indices = @transform_1, window_bounds = array<i64: 2, 1, 8>}, {pipeline_mode = #tpu.pipeline_mode<synchronous>, transform_indices = @transform_2, window_bounds = array<i64: 24, 128>}, {pipeline_mode = #tpu.pipeline_mode<synchronous>, transform_indices = @transform_3, window_bounds = array<i64: 1, 128>}, {pipeline_mode = #tpu.pipeline_mode<synchronous>, transform_indices = @transform_4, window_bounds = array<i64: 16, 128>}, {pipeline_mode = #tpu.pipeline_mode<synchronous>, transform_indices = @transform_5, window_bounds = array<i64: 2, 128, 384>}, {pipeline_mode = #tpu.pipeline_mode<synchronous>, transform_indices = @transform_6, window_bounds = array<i64: 2, 1, 384>}, {pipeline_mode = #tpu.pipeline_mode<synchronous>, transform_indices = @transform_7, window_bounds = array<i64: 2, 128, 128>}, {pipeline_mode = #tpu.pipeline_mode<synchronous>, transform_indices = @transform_8, window_bounds = array<i64: 2, 128, 256>}, {pipeline_mode = #tpu.pipeline_mode<synchronous>, transform_indices = @transform_9, window_bounds = array<i64: 2, 1, 256>}, {pipeline_mode = #tpu.pipeline_mode<synchronous>, transform_indices = @transform_10, window_bounds = array<i64: 2, 256, 128>}, {pipeline_mode = #tpu.pipeline_mode<synchronous>, transform_indices = @transform_11, window_bounds = array<i64: 2, 6, 128>}, {pipeline_mode = #tpu.pipeline_mode<synchronous>, transform_indices = @transform_12, window_bounds = array<i64: 128, 128>}, {pipeline_mode = #tpu.pipeline_mode<synchronous>, transform_indices = @transform_13, window_bounds = array<i64: 128, 128>}, {pipeline_mode = #tpu.pipeline_mode<synchronous>, transform_indices = @transform_14, window_bounds = array<i64: 2, 128>}, {transform_indices = @transform_15, window_bounds = array<i64: 2, 1, 128>}, {transform_indices = @transform_16, window_bounds = array<i64: 2, 1, 128>}]} {
    %c0 = arith.constant 0 : index
    %c0_0 = arith.constant 0 : index
    %0 = vector.load %arg1[%c0, %c0_0] : memref<16x24xbf16, #tpu.memory_space<vmem>>, vector<16x24xbf16>
    %c0_1 = arith.constant 0 : index
    %c0_2 = arith.constant 0 : index
    %1 = vector.load %arg3[%c0_1, %c0_2] : memref<24x128xbf16, #tpu.memory_space<vmem>>, vector<24x128xbf16>
    %cst = arith.constant dense<0.000000e+00> : vector<16x128xf32>
    %2 = tpu.matmul %0, %1, %cst {dimension_numbers = #tpu.dot_dimension_numbers<[1], [0], [0], [1], [0, 0, 1, 1], [], []>} : vector<16x24xbf16>, vector<24x128xbf16>, vector<16x128xf32> -> vector<16x128xf32>
    %c0_3 = arith.constant 0 : index
    %c0_4 = arith.constant 0 : index
    %3 = vector.load %arg4[%c0_3, %c0_4] : memref<1x128xf32, #tpu.memory_space<vmem>>, vector<1x128xf32>
    %4 = vector.broadcast %3 : vector<1x128xf32> to vector<16x128xf32>
    %5 = arith.addf %2, %4 : vector<16x128xf32>
    %c0_5 = arith.constant 0 : index
    %c0_6 = arith.constant 0 : index
    %6 = vector.load %arg5[%c0_5, %c0_6] : memref<16x128xf32, #tpu.memory_space<vmem>>, vector<16x128xf32>
    %7 = arith.addf %5, %6 : vector<16x128xf32>
    %c0_7 = arith.constant 0 : index
    %c0_8 = arith.constant 0 : index
    %c0_9 = arith.constant 0 : index
    %8 = vector.load %arg12[%c0_7, %c0_8, %c0_9] : memref<2x6x128xf32, #tpu.memory_space<vmem>>, vector<1x6x128xf32>
    %9 = vector.shape_cast %8 : vector<1x6x128xf32> to vector<6x128xf32>
    %10 = arith.truncf %7 : vector<16x128xf32> to vector<16x128xbf16>
    %c0_10 = arith.constant 0 : index
    %c0_11 = arith.constant 0 : index
    %c0_12 = arith.constant 0 : index
    %11 = vector.load %arg6[%c0_10, %c0_11, %c0_12] : memref<2x128x384xbf16, #tpu.memory_space<vmem>>, vector<1x128x384xbf16>
    %12 = vector.shape_cast %11 : vector<1x128x384xbf16> to vector<128x384xbf16>
    %cst_13 = arith.constant dense<0.000000e+00> : vector<16x384xf32>
    %13 = tpu.matmul %10, %12, %cst_13 {dimension_numbers = #tpu.dot_dimension_numbers<[1], [0], [0], [1], [0, 0, 1, 1], [], []>} : vector<16x128xbf16>, vector<128x384xbf16>, vector<16x384xf32> -> vector<16x384xf32>
    %c0_14 = arith.constant 0 : index
    %c0_15 = arith.constant 0 : index
    %c0_16 = arith.constant 0 : index
    %14 = vector.load %arg7[%c0_14, %c0_15, %c0_16] : memref<2x1x384xf32, #tpu.memory_space<vmem>>, vector<1x1x384xf32>
    %15 = vector.shape_cast %14 : vector<1x1x384xf32> to vector<1x384xf32>
    %16 = vector.broadcast %15 : vector<1x384xf32> to vector<16x384xf32>
    %17 = arith.addf %13, %16 : vector<16x384xf32>
    %18 = vector.extract_strided_slice %17 {offsets = [0, 0], sizes = [8, 384], strides = [1, 1]} : vector<16x384xf32> to vector<8x384xf32>
    %19 = arith.truncf %18 : vector<8x384xf32> to vector<8x384xbf16>
    %c0_17 = arith.constant 0 : index
    %c0_18 = arith.constant 0 : index
    %c0_19 = arith.constant 0 : index
    %20 = vector.load %arg2[%c0_17, %c0_18, %c0_19] : memref<2x1x8xf32, #tpu.memory_space<vmem>>, vector<1x1x8xf32>
    %21 = vector.shape_cast %20 : vector<1x1x8xf32> to vector<1x8xf32>
    %22 = vector.extract_strided_slice %19 {offsets = [0, 0], sizes = [8, 64], strides = [1, 1]} : vector<8x384xbf16> to vector<8x64xbf16>
    %23 = vector.extract_strided_slice %19 {offsets = [0, 128], sizes = [8, 64], strides = [1, 1]} : vector<8x384xbf16> to vector<8x64xbf16>
    %24 = vector.extract_strided_slice %19 {offsets = [0, 256], sizes = [8, 64], strides = [1, 1]} : vector<8x384xbf16> to vector<8x64xbf16>
    %cst_20 = arith.constant dense<0.000000e+00> : vector<8x8xf32>
    %25 = tpu.matmul %22, %23, %cst_20 {dimension_numbers = #tpu.dot_dimension_numbers<[1], [1], [0], [0], [0, 0, 1, 0], [], []>} : vector<8x64xbf16>, vector<8x64xbf16>, vector<8x8xf32> -> vector<8x8xf32>
    %26 = vector.broadcast %21 : vector<1x8xf32> to vector<8x8xf32>
    %27 = arith.addf %25, %26 : vector<8x8xf32>
    %cst_21 = arith.constant dense<0xFF800000> : vector<8xf32>
    %28 = vector.multi_reduction <maximumf>, %27, %cst_21 [1] : vector<8x8xf32> to vector<8xf32>
    %29 = vector.shape_cast %28 : vector<8xf32> to vector<8x1xf32>
    %30 = vector.broadcast %29 : vector<8x1xf32> to vector<8x8xf32>
    %31 = arith.subf %27, %30 : vector<8x8xf32>
    %32 = math.exp %31 : vector<8x8xf32>
    %cst_22 = arith.constant dense<0.000000e+00> : vector<8xf32>
    %33 = vector.multi_reduction <add>, %32, %cst_22 [1] : vector<8x8xf32> to vector<8xf32>
    %34 = vector.shape_cast %33 : vector<8xf32> to vector<8x1xf32>
    %35 = tpu.reciprocal %34 {approx = true} : vector<8x1xf32> -> vector<8x1xf32>
    %36 = vector.broadcast %35 : vector<8x1xf32> to vector<8x8xf32>
    %37 = arith.mulf %32, %36 : vector<8x8xf32>
    %38 = arith.truncf %37 : vector<8x8xf32> to vector<8x8xbf16>
    %cst_23 = arith.constant dense<0.000000e+00> : vector<8x64xf32>
    %39 = tpu.matmul %38, %24, %cst_23 {dimension_numbers = #tpu.dot_dimension_numbers<[1], [0], [0], [1], [0, 0, 1, 1], [], []>} : vector<8x8xbf16>, vector<8x64xbf16>, vector<8x64xf32> -> vector<8x64xf32>
    %40 = vector.extract_strided_slice %19 {offsets = [0, 64], sizes = [8, 64], strides = [1, 1]} : vector<8x384xbf16> to vector<8x64xbf16>
    %41 = vector.extract_strided_slice %19 {offsets = [0, 192], sizes = [8, 64], strides = [1, 1]} : vector<8x384xbf16> to vector<8x64xbf16>
    %42 = vector.extract_strided_slice %19 {offsets = [0, 320], sizes = [8, 64], strides = [1, 1]} : vector<8x384xbf16> to vector<8x64xbf16>
    %cst_24 = arith.constant dense<0.000000e+00> : vector<8x8xf32>
    %43 = tpu.matmul %40, %41, %cst_24 {dimension_numbers = #tpu.dot_dimension_numbers<[1], [1], [0], [0], [0, 0, 1, 0], [], []>} : vector<8x64xbf16>, vector<8x64xbf16>, vector<8x8xf32> -> vector<8x8xf32>
    %44 = vector.broadcast %21 : vector<1x8xf32> to vector<8x8xf32>
    %45 = arith.addf %43, %44 : vector<8x8xf32>
    %cst_25 = arith.constant dense<0xFF800000> : vector<8xf32>
    %46 = vector.multi_reduction <maximumf>, %45, %cst_25 [1] : vector<8x8xf32> to vector<8xf32>
    %47 = vector.shape_cast %46 : vector<8xf32> to vector<8x1xf32>
    %48 = vector.broadcast %47 : vector<8x1xf32> to vector<8x8xf32>
    %49 = arith.subf %45, %48 : vector<8x8xf32>
    %50 = math.exp %49 : vector<8x8xf32>
    %cst_26 = arith.constant dense<0.000000e+00> : vector<8xf32>
    %51 = vector.multi_reduction <add>, %50, %cst_26 [1] : vector<8x8xf32> to vector<8xf32>
    %52 = vector.shape_cast %51 : vector<8xf32> to vector<8x1xf32>
    %53 = tpu.reciprocal %52 {approx = true} : vector<8x1xf32> -> vector<8x1xf32>
    %54 = vector.broadcast %53 : vector<8x1xf32> to vector<8x8xf32>
    %55 = arith.mulf %50, %54 : vector<8x8xf32>
    %56 = arith.truncf %55 : vector<8x8xf32> to vector<8x8xbf16>
    %cst_27 = arith.constant dense<0.000000e+00> : vector<8x64xf32>
    %57 = tpu.matmul %56, %42, %cst_27 {dimension_numbers = #tpu.dot_dimension_numbers<[1], [0], [0], [1], [0, 0, 1, 1], [], []>} : vector<8x8xbf16>, vector<8x64xbf16>, vector<8x64xf32> -> vector<8x64xf32>
    %58 = tpu.concatenate %39, %57 in 1 : vector<8x64xf32>, vector<8x64xf32> -> vector<8x128xf32>
    %59 = vector.extract_strided_slice %17 {offsets = [8, 0], sizes = [8, 384], strides = [1, 1]} : vector<16x384xf32> to vector<8x384xf32>
    %60 = arith.truncf %59 : vector<8x384xf32> to vector<8x384xbf16>
    %c1 = arith.constant 1 : index
    %c0_28 = arith.constant 0 : index
    %c0_29 = arith.constant 0 : index
    %61 = vector.load %arg2[%c1, %c0_28, %c0_29] : memref<2x1x8xf32, #tpu.memory_space<vmem>>, vector<1x1x8xf32>
    %62 = vector.shape_cast %61 : vector<1x1x8xf32> to vector<1x8xf32>
    %63 = vector.extract_strided_slice %60 {offsets = [0, 0], sizes = [8, 64], strides = [1, 1]} : vector<8x384xbf16> to vector<8x64xbf16>
    %64 = vector.extract_strided_slice %60 {offsets = [0, 128], sizes = [8, 64], strides = [1, 1]} : vector<8x384xbf16> to vector<8x64xbf16>
    %65 = vector.extract_strided_slice %60 {offsets = [0, 256], sizes = [8, 64], strides = [1, 1]} : vector<8x384xbf16> to vector<8x64xbf16>
    %cst_30 = arith.constant dense<0.000000e+00> : vector<8x8xf32>
    %66 = tpu.matmul %63, %64, %cst_30 {dimension_numbers = #tpu.dot_dimension_numbers<[1], [1], [0], [0], [0, 0, 1, 0], [], []>} : vector<8x64xbf16>, vector<8x64xbf16>, vector<8x8xf32> -> vector<8x8xf32>
    %67 = vector.broadcast %62 : vector<1x8xf32> to vector<8x8xf32>
    %68 = arith.addf %66, %67 : vector<8x8xf32>
    %cst_31 = arith.constant dense<0xFF800000> : vector<8xf32>
    %69 = vector.multi_reduction <maximumf>, %68, %cst_31 [1] : vector<8x8xf32> to vector<8xf32>
    %70 = vector.shape_cast %69 : vector<8xf32> to vector<8x1xf32>
    %71 = vector.broadcast %70 : vector<8x1xf32> to vector<8x8xf32>
    %72 = arith.subf %68, %71 : vector<8x8xf32>
    %73 = math.exp %72 : vector<8x8xf32>
    %cst_32 = arith.constant dense<0.000000e+00> : vector<8xf32>
    %74 = vector.multi_reduction <add>, %73, %cst_32 [1] : vector<8x8xf32> to vector<8xf32>
    %75 = vector.shape_cast %74 : vector<8xf32> to vector<8x1xf32>
    %76 = tpu.reciprocal %75 {approx = true} : vector<8x1xf32> -> vector<8x1xf32>
    %77 = vector.broadcast %76 : vector<8x1xf32> to vector<8x8xf32>
    %78 = arith.mulf %73, %77 : vector<8x8xf32>
    %79 = arith.truncf %78 : vector<8x8xf32> to vector<8x8xbf16>
    %cst_33 = arith.constant dense<0.000000e+00> : vector<8x64xf32>
    %80 = tpu.matmul %79, %65, %cst_33 {dimension_numbers = #tpu.dot_dimension_numbers<[1], [0], [0], [1], [0, 0, 1, 1], [], []>} : vector<8x8xbf16>, vector<8x64xbf16>, vector<8x64xf32> -> vector<8x64xf32>
    %81 = vector.extract_strided_slice %60 {offsets = [0, 64], sizes = [8, 64], strides = [1, 1]} : vector<8x384xbf16> to vector<8x64xbf16>
    %82 = vector.extract_strided_slice %60 {offsets = [0, 192], sizes = [8, 64], strides = [1, 1]} : vector<8x384xbf16> to vector<8x64xbf16>
    %83 = vector.extract_strided_slice %60 {offsets = [0, 320], sizes = [8, 64], strides = [1, 1]} : vector<8x384xbf16> to vector<8x64xbf16>
    %cst_34 = arith.constant dense<0.000000e+00> : vector<8x8xf32>
    %84 = tpu.matmul %81, %82, %cst_34 {dimension_numbers = #tpu.dot_dimension_numbers<[1], [1], [0], [0], [0, 0, 1, 0], [], []>} : vector<8x64xbf16>, vector<8x64xbf16>, vector<8x8xf32> -> vector<8x8xf32>
    %85 = vector.broadcast %62 : vector<1x8xf32> to vector<8x8xf32>
    %86 = arith.addf %84, %85 : vector<8x8xf32>
    %cst_35 = arith.constant dense<0xFF800000> : vector<8xf32>
    %87 = vector.multi_reduction <maximumf>, %86, %cst_35 [1] : vector<8x8xf32> to vector<8xf32>
    %88 = vector.shape_cast %87 : vector<8xf32> to vector<8x1xf32>
    %89 = vector.broadcast %88 : vector<8x1xf32> to vector<8x8xf32>
    %90 = arith.subf %86, %89 : vector<8x8xf32>
    %91 = math.exp %90 : vector<8x8xf32>
    %cst_36 = arith.constant dense<0.000000e+00> : vector<8xf32>
    %92 = vector.multi_reduction <add>, %91, %cst_36 [1] : vector<8x8xf32> to vector<8xf32>
    %93 = vector.shape_cast %92 : vector<8xf32> to vector<8x1xf32>
    %94 = tpu.reciprocal %93 {approx = true} : vector<8x1xf32> -> vector<8x1xf32>
    %95 = vector.broadcast %94 : vector<8x1xf32> to vector<8x8xf32>
    %96 = arith.mulf %91, %95 : vector<8x8xf32>
    %97 = arith.truncf %96 : vector<8x8xf32> to vector<8x8xbf16>
    %cst_37 = arith.constant dense<0.000000e+00> : vector<8x64xf32>
    %98 = tpu.matmul %97, %83, %cst_37 {dimension_numbers = #tpu.dot_dimension_numbers<[1], [0], [0], [1], [0, 0, 1, 1], [], []>} : vector<8x8xbf16>, vector<8x64xbf16>, vector<8x64xf32> -> vector<8x64xf32>
    %99 = tpu.concatenate %80, %98 in 1 : vector<8x64xf32>, vector<8x64xf32> -> vector<8x128xf32>
    %100 = tpu.concatenate %58, %99 in 0 : vector<8x128xf32>, vector<8x128xf32> -> vector<16x128xf32>
    %101 = arith.truncf %100 : vector<16x128xf32> to vector<16x128xbf16>
    %c0_38 = arith.constant 0 : index
    %c0_39 = arith.constant 0 : index
    %c0_40 = arith.constant 0 : index
    %102 = vector.load %arg8[%c0_38, %c0_39, %c0_40] : memref<2x128x128xbf16, #tpu.memory_space<vmem>>, vector<1x128x128xbf16>
    %103 = vector.shape_cast %102 : vector<1x128x128xbf16> to vector<128x128xbf16>
    %cst_41 = arith.constant dense<0.000000e+00> : vector<16x128xf32>
    %104 = tpu.matmul %101, %103, %cst_41 {dimension_numbers = #tpu.dot_dimension_numbers<[1], [0], [0], [1], [0, 0, 1, 1], [], []>} : vector<16x128xbf16>, vector<128x128xbf16>, vector<16x128xf32> -> vector<16x128xf32>
    %105 = vector.extract_strided_slice %9 {offsets = [0, 0], sizes = [1, 128], strides = [1, 1]} : vector<6x128xf32> to vector<1x128xf32>
    %106 = vector.broadcast %105 : vector<1x128xf32> to vector<16x128xf32>
    %107 = arith.addf %104, %106 : vector<16x128xf32>
    %108 = arith.addf %7, %107 : vector<16x128xf32>
    %109 = vector.extract_strided_slice %9 {offsets = [1, 0], sizes = [1, 128], strides = [1, 1]} : vector<6x128xf32> to vector<1x128xf32>
    %110 = vector.extract_strided_slice %9 {offsets = [2, 0], sizes = [1, 128], strides = [1, 1]} : vector<6x128xf32> to vector<1x128xf32>
    %cst_42 = arith.constant dense<0.000000e+00> : vector<16xf32>
    %111 = vector.multi_reduction <add>, %108, %cst_42 [1] : vector<16x128xf32> to vector<16xf32>
    %112 = vector.shape_cast %111 : vector<16xf32> to vector<16x1xf32>
    %cst_43 = arith.constant 1.280000e+02 : f32
    %113 = vector.broadcast %cst_43 : f32 to vector<16x1xf32>
    %114 = arith.divf %112, %113 : vector<16x1xf32>
    %115 = vector.broadcast %114 : vector<16x1xf32> to vector<16x128xf32>
    %116 = arith.subf %108, %115 : vector<16x128xf32>
    %117 = arith.mulf %116, %116 : vector<16x128xf32>
    %cst_44 = arith.constant dense<0.000000e+00> : vector<16xf32>
    %118 = vector.multi_reduction <add>, %117, %cst_44 [1] : vector<16x128xf32> to vector<16xf32>
    %119 = vector.shape_cast %118 : vector<16xf32> to vector<16x1xf32>
    %cst_45 = arith.constant 1.280000e+02 : f32
    %120 = vector.broadcast %cst_45 : f32 to vector<16x1xf32>
    %121 = arith.divf %119, %120 : vector<16x1xf32>
    %cst_46 = arith.constant 9.99999974E-6 : f32
    %122 = vector.broadcast %cst_46 : f32 to vector<16x1xf32>
    %123 = arith.addf %121, %122 : vector<16x1xf32>
    %124 = math.rsqrt %123 : vector<16x1xf32>
    %125 = vector.broadcast %124 : vector<16x1xf32> to vector<16x128xf32>
    %126 = arith.mulf %116, %125 : vector<16x128xf32>
    %127 = vector.broadcast %109 : vector<1x128xf32> to vector<16x128xf32>
    %128 = arith.mulf %126, %127 : vector<16x128xf32>
    %129 = vector.broadcast %110 : vector<1x128xf32> to vector<16x128xf32>
    %130 = arith.addf %128, %129 : vector<16x128xf32>
    %131 = arith.truncf %130 : vector<16x128xf32> to vector<16x128xbf16>
    %c0_47 = arith.constant 0 : index
    %c0_48 = arith.constant 0 : index
    %c0_49 = arith.constant 0 : index
    %132 = vector.load %arg9[%c0_47, %c0_48, %c0_49] : memref<2x128x256xbf16, #tpu.memory_space<vmem>>, vector<1x128x256xbf16>
    %133 = vector.shape_cast %132 : vector<1x128x256xbf16> to vector<128x256xbf16>
    %cst_50 = arith.constant dense<0.000000e+00> : vector<16x256xf32>
    %134 = tpu.matmul %131, %133, %cst_50 {dimension_numbers = #tpu.dot_dimension_numbers<[1], [0], [0], [1], [0, 0, 1, 1], [], []>} : vector<16x128xbf16>, vector<128x256xbf16>, vector<16x256xf32> -> vector<16x256xf32>
    %c0_51 = arith.constant 0 : index
    %c0_52 = arith.constant 0 : index
    %c0_53 = arith.constant 0 : index
    %135 = vector.load %arg10[%c0_51, %c0_52, %c0_53] : memref<2x1x256xf32, #tpu.memory_space<vmem>>, vector<1x1x256xf32>
    %136 = vector.shape_cast %135 : vector<1x1x256xf32> to vector<1x256xf32>
    %137 = vector.broadcast %136 : vector<1x256xf32> to vector<16x256xf32>
    %138 = arith.addf %134, %137 : vector<16x256xf32>
    %cst_54 = arith.constant 5.000000e-01 : f32
    %139 = vector.broadcast %cst_54 : f32 to vector<16x256xf32>
    %140 = arith.mulf %139, %138 : vector<16x256xf32>
    %141 = arith.mulf %138, %138 : vector<16x256xf32>
    %142 = arith.mulf %141, %138 : vector<16x256xf32>
    %cst_55 = arith.constant 4.471500e-02 : f32
    %143 = vector.broadcast %cst_55 : f32 to vector<16x256xf32>
    %144 = arith.mulf %143, %142 : vector<16x256xf32>
    %145 = arith.addf %138, %144 : vector<16x256xf32>
    %cst_56 = arith.constant 0.797884583 : f32
    %146 = vector.broadcast %cst_56 : f32 to vector<16x256xf32>
    %147 = arith.mulf %146, %145 : vector<16x256xf32>
    %148 = math.tanh %147 : vector<16x256xf32>
    %cst_57 = arith.constant 1.000000e+00 : f32
    %149 = vector.broadcast %cst_57 : f32 to vector<16x256xf32>
    %150 = arith.addf %149, %148 : vector<16x256xf32>
    %151 = arith.mulf %140, %150 : vector<16x256xf32>
    %152 = arith.truncf %151 : vector<16x256xf32> to vector<16x256xbf16>
    %c0_58 = arith.constant 0 : index
    %c0_59 = arith.constant 0 : index
    %c0_60 = arith.constant 0 : index
    %153 = vector.load %arg11[%c0_58, %c0_59, %c0_60] : memref<2x256x128xbf16, #tpu.memory_space<vmem>>, vector<1x256x128xbf16>
    %154 = vector.shape_cast %153 : vector<1x256x128xbf16> to vector<256x128xbf16>
    %cst_61 = arith.constant dense<0.000000e+00> : vector<16x128xf32>
    %155 = tpu.matmul %152, %154, %cst_61 {dimension_numbers = #tpu.dot_dimension_numbers<[1], [0], [0], [1], [0, 0, 1, 1], [], []>} : vector<16x256xbf16>, vector<256x128xbf16>, vector<16x128xf32> -> vector<16x128xf32>
    %156 = vector.extract_strided_slice %9 {offsets = [3, 0], sizes = [1, 128], strides = [1, 1]} : vector<6x128xf32> to vector<1x128xf32>
    %157 = vector.broadcast %156 : vector<1x128xf32> to vector<16x128xf32>
    %158 = arith.addf %155, %157 : vector<16x128xf32>
    %159 = arith.addf %130, %158 : vector<16x128xf32>
    %160 = vector.extract_strided_slice %9 {offsets = [4, 0], sizes = [1, 128], strides = [1, 1]} : vector<6x128xf32> to vector<1x128xf32>
    %161 = vector.extract_strided_slice %9 {offsets = [5, 0], sizes = [1, 128], strides = [1, 1]} : vector<6x128xf32> to vector<1x128xf32>
    %cst_62 = arith.constant dense<0.000000e+00> : vector<16xf32>
    %162 = vector.multi_reduction <add>, %159, %cst_62 [1] : vector<16x128xf32> to vector<16xf32>
    %163 = vector.shape_cast %162 : vector<16xf32> to vector<16x1xf32>
    %cst_63 = arith.constant 1.280000e+02 : f32
    %164 = vector.broadcast %cst_63 : f32 to vector<16x1xf32>
    %165 = arith.divf %163, %164 : vector<16x1xf32>
    %166 = vector.broadcast %165 : vector<16x1xf32> to vector<16x128xf32>
    %167 = arith.subf %159, %166 : vector<16x128xf32>
    %168 = arith.mulf %167, %167 : vector<16x128xf32>
    %cst_64 = arith.constant dense<0.000000e+00> : vector<16xf32>
    %169 = vector.multi_reduction <add>, %168, %cst_64 [1] : vector<16x128xf32> to vector<16xf32>
    %170 = vector.shape_cast %169 : vector<16xf32> to vector<16x1xf32>
    %cst_65 = arith.constant 1.280000e+02 : f32
    %171 = vector.broadcast %cst_65 : f32 to vector<16x1xf32>
    %172 = arith.divf %170, %171 : vector<16x1xf32>
    %cst_66 = arith.constant 9.99999974E-6 : f32
    %173 = vector.broadcast %cst_66 : f32 to vector<16x1xf32>
    %174 = arith.addf %172, %173 : vector<16x1xf32>
    %175 = math.rsqrt %174 : vector<16x1xf32>
    %176 = vector.broadcast %175 : vector<16x1xf32> to vector<16x128xf32>
    %177 = arith.mulf %167, %176 : vector<16x128xf32>
    %178 = vector.broadcast %160 : vector<1x128xf32> to vector<16x128xf32>
    %179 = arith.mulf %177, %178 : vector<16x128xf32>
    %180 = vector.broadcast %161 : vector<1x128xf32> to vector<16x128xf32>
    %181 = arith.addf %179, %180 : vector<16x128xf32>
    %c1_67 = arith.constant 1 : index
    %c0_68 = arith.constant 0 : index
    %c0_69 = arith.constant 0 : index
    %182 = vector.load %arg12[%c1_67, %c0_68, %c0_69] : memref<2x6x128xf32, #tpu.memory_space<vmem>>, vector<1x6x128xf32>
    %183 = vector.shape_cast %182 : vector<1x6x128xf32> to vector<6x128xf32>
    %184 = arith.truncf %181 : vector<16x128xf32> to vector<16x128xbf16>
    %c1_70 = arith.constant 1 : index
    %c0_71 = arith.constant 0 : index
    %c0_72 = arith.constant 0 : index
    %185 = vector.load %arg6[%c1_70, %c0_71, %c0_72] : memref<2x128x384xbf16, #tpu.memory_space<vmem>>, vector<1x128x384xbf16>
    %186 = vector.shape_cast %185 : vector<1x128x384xbf16> to vector<128x384xbf16>
    %cst_73 = arith.constant dense<0.000000e+00> : vector<16x384xf32>
    %187 = tpu.matmul %184, %186, %cst_73 {dimension_numbers = #tpu.dot_dimension_numbers<[1], [0], [0], [1], [0, 0, 1, 1], [], []>} : vector<16x128xbf16>, vector<128x384xbf16>, vector<16x384xf32> -> vector<16x384xf32>
    %c1_74 = arith.constant 1 : index
    %c0_75 = arith.constant 0 : index
    %c0_76 = arith.constant 0 : index
    %188 = vector.load %arg7[%c1_74, %c0_75, %c0_76] : memref<2x1x384xf32, #tpu.memory_space<vmem>>, vector<1x1x384xf32>
    %189 = vector.shape_cast %188 : vector<1x1x384xf32> to vector<1x384xf32>
    %190 = vector.broadcast %189 : vector<1x384xf32> to vector<16x384xf32>
    %191 = arith.addf %187, %190 : vector<16x384xf32>
    %192 = vector.extract_strided_slice %191 {offsets = [0, 0], sizes = [8, 384], strides = [1, 1]} : vector<16x384xf32> to vector<8x384xf32>
    %193 = arith.truncf %192 : vector<8x384xf32> to vector<8x384xbf16>
    %c0_77 = arith.constant 0 : index
    %c0_78 = arith.constant 0 : index
    %c0_79 = arith.constant 0 : index
    %194 = vector.load %arg2[%c0_77, %c0_78, %c0_79] : memref<2x1x8xf32, #tpu.memory_space<vmem>>, vector<1x1x8xf32>
    %195 = vector.shape_cast %194 : vector<1x1x8xf32> to vector<1x8xf32>
    %196 = vector.extract_strided_slice %193 {offsets = [0, 0], sizes = [8, 64], strides = [1, 1]} : vector<8x384xbf16> to vector<8x64xbf16>
    %197 = vector.extract_strided_slice %193 {offsets = [0, 128], sizes = [8, 64], strides = [1, 1]} : vector<8x384xbf16> to vector<8x64xbf16>
    %198 = vector.extract_strided_slice %193 {offsets = [0, 256], sizes = [8, 64], strides = [1, 1]} : vector<8x384xbf16> to vector<8x64xbf16>
    %cst_80 = arith.constant dense<0.000000e+00> : vector<8x8xf32>
    %199 = tpu.matmul %196, %197, %cst_80 {dimension_numbers = #tpu.dot_dimension_numbers<[1], [1], [0], [0], [0, 0, 1, 0], [], []>} : vector<8x64xbf16>, vector<8x64xbf16>, vector<8x8xf32> -> vector<8x8xf32>
    %200 = vector.broadcast %195 : vector<1x8xf32> to vector<8x8xf32>
    %201 = arith.addf %199, %200 : vector<8x8xf32>
    %cst_81 = arith.constant dense<0xFF800000> : vector<8xf32>
    %202 = vector.multi_reduction <maximumf>, %201, %cst_81 [1] : vector<8x8xf32> to vector<8xf32>
    %203 = vector.shape_cast %202 : vector<8xf32> to vector<8x1xf32>
    %204 = vector.broadcast %203 : vector<8x1xf32> to vector<8x8xf32>
    %205 = arith.subf %201, %204 : vector<8x8xf32>
    %206 = math.exp %205 : vector<8x8xf32>
    %cst_82 = arith.constant dense<0.000000e+00> : vector<8xf32>
    %207 = vector.multi_reduction <add>, %206, %cst_82 [1] : vector<8x8xf32> to vector<8xf32>
    %208 = vector.shape_cast %207 : vector<8xf32> to vector<8x1xf32>
    %209 = tpu.reciprocal %208 {approx = true} : vector<8x1xf32> -> vector<8x1xf32>
    %210 = vector.broadcast %209 : vector<8x1xf32> to vector<8x8xf32>
    %211 = arith.mulf %206, %210 : vector<8x8xf32>
    %212 = arith.truncf %211 : vector<8x8xf32> to vector<8x8xbf16>
    %cst_83 = arith.constant dense<0.000000e+00> : vector<8x64xf32>
    %213 = tpu.matmul %212, %198, %cst_83 {dimension_numbers = #tpu.dot_dimension_numbers<[1], [0], [0], [1], [0, 0, 1, 1], [], []>} : vector<8x8xbf16>, vector<8x64xbf16>, vector<8x64xf32> -> vector<8x64xf32>
    %214 = vector.extract_strided_slice %193 {offsets = [0, 64], sizes = [8, 64], strides = [1, 1]} : vector<8x384xbf16> to vector<8x64xbf16>
    %215 = vector.extract_strided_slice %193 {offsets = [0, 192], sizes = [8, 64], strides = [1, 1]} : vector<8x384xbf16> to vector<8x64xbf16>
    %216 = vector.extract_strided_slice %193 {offsets = [0, 320], sizes = [8, 64], strides = [1, 1]} : vector<8x384xbf16> to vector<8x64xbf16>
    %cst_84 = arith.constant dense<0.000000e+00> : vector<8x8xf32>
    %217 = tpu.matmul %214, %215, %cst_84 {dimension_numbers = #tpu.dot_dimension_numbers<[1], [1], [0], [0], [0, 0, 1, 0], [], []>} : vector<8x64xbf16>, vector<8x64xbf16>, vector<8x8xf32> -> vector<8x8xf32>
    %218 = vector.broadcast %195 : vector<1x8xf32> to vector<8x8xf32>
    %219 = arith.addf %217, %218 : vector<8x8xf32>
    %cst_85 = arith.constant dense<0xFF800000> : vector<8xf32>
    %220 = vector.multi_reduction <maximumf>, %219, %cst_85 [1] : vector<8x8xf32> to vector<8xf32>
    %221 = vector.shape_cast %220 : vector<8xf32> to vector<8x1xf32>
    %222 = vector.broadcast %221 : vector<8x1xf32> to vector<8x8xf32>
    %223 = arith.subf %219, %222 : vector<8x8xf32>
    %224 = math.exp %223 : vector<8x8xf32>
    %cst_86 = arith.constant dense<0.000000e+00> : vector<8xf32>
    %225 = vector.multi_reduction <add>, %224, %cst_86 [1] : vector<8x8xf32> to vector<8xf32>
    %226 = vector.shape_cast %225 : vector<8xf32> to vector<8x1xf32>
    %227 = tpu.reciprocal %226 {approx = true} : vector<8x1xf32> -> vector<8x1xf32>
    %228 = vector.broadcast %227 : vector<8x1xf32> to vector<8x8xf32>
    %229 = arith.mulf %224, %228 : vector<8x8xf32>
    %230 = arith.truncf %229 : vector<8x8xf32> to vector<8x8xbf16>
    %cst_87 = arith.constant dense<0.000000e+00> : vector<8x64xf32>
    %231 = tpu.matmul %230, %216, %cst_87 {dimension_numbers = #tpu.dot_dimension_numbers<[1], [0], [0], [1], [0, 0, 1, 1], [], []>} : vector<8x8xbf16>, vector<8x64xbf16>, vector<8x64xf32> -> vector<8x64xf32>
    %232 = tpu.concatenate %213, %231 in 1 : vector<8x64xf32>, vector<8x64xf32> -> vector<8x128xf32>
    %233 = vector.extract_strided_slice %191 {offsets = [8, 0], sizes = [8, 384], strides = [1, 1]} : vector<16x384xf32> to vector<8x384xf32>
    %234 = arith.truncf %233 : vector<8x384xf32> to vector<8x384xbf16>
    %c1_88 = arith.constant 1 : index
    %c0_89 = arith.constant 0 : index
    %c0_90 = arith.constant 0 : index
    %235 = vector.load %arg2[%c1_88, %c0_89, %c0_90] : memref<2x1x8xf32, #tpu.memory_space<vmem>>, vector<1x1x8xf32>
    %236 = vector.shape_cast %235 : vector<1x1x8xf32> to vector<1x8xf32>
    %237 = vector.extract_strided_slice %234 {offsets = [0, 0], sizes = [8, 64], strides = [1, 1]} : vector<8x384xbf16> to vector<8x64xbf16>
    %238 = vector.extract_strided_slice %234 {offsets = [0, 128], sizes = [8, 64], strides = [1, 1]} : vector<8x384xbf16> to vector<8x64xbf16>
    %239 = vector.extract_strided_slice %234 {offsets = [0, 256], sizes = [8, 64], strides = [1, 1]} : vector<8x384xbf16> to vector<8x64xbf16>
    %cst_91 = arith.constant dense<0.000000e+00> : vector<8x8xf32>
    %240 = tpu.matmul %237, %238, %cst_91 {dimension_numbers = #tpu.dot_dimension_numbers<[1], [1], [0], [0], [0, 0, 1, 0], [], []>} : vector<8x64xbf16>, vector<8x64xbf16>, vector<8x8xf32> -> vector<8x8xf32>
    %241 = vector.broadcast %236 : vector<1x8xf32> to vector<8x8xf32>
    %242 = arith.addf %240, %241 : vector<8x8xf32>
    %cst_92 = arith.constant dense<0xFF800000> : vector<8xf32>
    %243 = vector.multi_reduction <maximumf>, %242, %cst_92 [1] : vector<8x8xf32> to vector<8xf32>
    %244 = vector.shape_cast %243 : vector<8xf32> to vector<8x1xf32>
    %245 = vector.broadcast %244 : vector<8x1xf32> to vector<8x8xf32>
    %246 = arith.subf %242, %245 : vector<8x8xf32>
    %247 = math.exp %246 : vector<8x8xf32>
    %cst_93 = arith.constant dense<0.000000e+00> : vector<8xf32>
    %248 = vector.multi_reduction <add>, %247, %cst_93 [1] : vector<8x8xf32> to vector<8xf32>
    %249 = vector.shape_cast %248 : vector<8xf32> to vector<8x1xf32>
    %250 = tpu.reciprocal %249 {approx = true} : vector<8x1xf32> -> vector<8x1xf32>
    %251 = vector.broadcast %250 : vector<8x1xf32> to vector<8x8xf32>
    %252 = arith.mulf %247, %251 : vector<8x8xf32>
    %253 = arith.truncf %252 : vector<8x8xf32> to vector<8x8xbf16>
    %cst_94 = arith.constant dense<0.000000e+00> : vector<8x64xf32>
    %254 = tpu.matmul %253, %239, %cst_94 {dimension_numbers = #tpu.dot_dimension_numbers<[1], [0], [0], [1], [0, 0, 1, 1], [], []>} : vector<8x8xbf16>, vector<8x64xbf16>, vector<8x64xf32> -> vector<8x64xf32>
    %255 = vector.extract_strided_slice %234 {offsets = [0, 64], sizes = [8, 64], strides = [1, 1]} : vector<8x384xbf16> to vector<8x64xbf16>
    %256 = vector.extract_strided_slice %234 {offsets = [0, 192], sizes = [8, 64], strides = [1, 1]} : vector<8x384xbf16> to vector<8x64xbf16>
    %257 = vector.extract_strided_slice %234 {offsets = [0, 320], sizes = [8, 64], strides = [1, 1]} : vector<8x384xbf16> to vector<8x64xbf16>
    %cst_95 = arith.constant dense<0.000000e+00> : vector<8x8xf32>
    %258 = tpu.matmul %255, %256, %cst_95 {dimension_numbers = #tpu.dot_dimension_numbers<[1], [1], [0], [0], [0, 0, 1, 0], [], []>} : vector<8x64xbf16>, vector<8x64xbf16>, vector<8x8xf32> -> vector<8x8xf32>
    %259 = vector.broadcast %236 : vector<1x8xf32> to vector<8x8xf32>
    %260 = arith.addf %258, %259 : vector<8x8xf32>
    %cst_96 = arith.constant dense<0xFF800000> : vector<8xf32>
    %261 = vector.multi_reduction <maximumf>, %260, %cst_96 [1] : vector<8x8xf32> to vector<8xf32>
    %262 = vector.shape_cast %261 : vector<8xf32> to vector<8x1xf32>
    %263 = vector.broadcast %262 : vector<8x1xf32> to vector<8x8xf32>
    %264 = arith.subf %260, %263 : vector<8x8xf32>
    %265 = math.exp %264 : vector<8x8xf32>
    %cst_97 = arith.constant dense<0.000000e+00> : vector<8xf32>
    %266 = vector.multi_reduction <add>, %265, %cst_97 [1] : vector<8x8xf32> to vector<8xf32>
    %267 = vector.shape_cast %266 : vector<8xf32> to vector<8x1xf32>
    %268 = tpu.reciprocal %267 {approx = true} : vector<8x1xf32> -> vector<8x1xf32>
    %269 = vector.broadcast %268 : vector<8x1xf32> to vector<8x8xf32>
    %270 = arith.mulf %265, %269 : vector<8x8xf32>
    %271 = arith.truncf %270 : vector<8x8xf32> to vector<8x8xbf16>
    %cst_98 = arith.constant dense<0.000000e+00> : vector<8x64xf32>
    %272 = tpu.matmul %271, %257, %cst_98 {dimension_numbers = #tpu.dot_dimension_numbers<[1], [0], [0], [1], [0, 0, 1, 1], [], []>} : vector<8x8xbf16>, vector<8x64xbf16>, vector<8x64xf32> -> vector<8x64xf32>
    %273 = tpu.concatenate %254, %272 in 1 : vector<8x64xf32>, vector<8x64xf32> -> vector<8x128xf32>
    %274 = tpu.concatenate %232, %273 in 0 : vector<8x128xf32>, vector<8x128xf32> -> vector<16x128xf32>
    %275 = arith.truncf %274 : vector<16x128xf32> to vector<16x128xbf16>
    %c1_99 = arith.constant 1 : index
    %c0_100 = arith.constant 0 : index
    %c0_101 = arith.constant 0 : index
    %276 = vector.load %arg8[%c1_99, %c0_100, %c0_101] : memref<2x128x128xbf16, #tpu.memory_space<vmem>>, vector<1x128x128xbf16>
    %277 = vector.shape_cast %276 : vector<1x128x128xbf16> to vector<128x128xbf16>
    %cst_102 = arith.constant dense<0.000000e+00> : vector<16x128xf32>
    %278 = tpu.matmul %275, %277, %cst_102 {dimension_numbers = #tpu.dot_dimension_numbers<[1], [0], [0], [1], [0, 0, 1, 1], [], []>} : vector<16x128xbf16>, vector<128x128xbf16>, vector<16x128xf32> -> vector<16x128xf32>
    %279 = vector.extract_strided_slice %183 {offsets = [0, 0], sizes = [1, 128], strides = [1, 1]} : vector<6x128xf32> to vector<1x128xf32>
    %280 = vector.broadcast %279 : vector<1x128xf32> to vector<16x128xf32>
    %281 = arith.addf %278, %280 : vector<16x128xf32>
    %282 = arith.addf %181, %281 : vector<16x128xf32>
    %283 = vector.extract_strided_slice %183 {offsets = [1, 0], sizes = [1, 128], strides = [1, 1]} : vector<6x128xf32> to vector<1x128xf32>
    %284 = vector.extract_strided_slice %183 {offsets = [2, 0], sizes = [1, 128], strides = [1, 1]} : vector<6x128xf32> to vector<1x128xf32>
    %cst_103 = arith.constant dense<0.000000e+00> : vector<16xf32>
    %285 = vector.multi_reduction <add>, %282, %cst_103 [1] : vector<16x128xf32> to vector<16xf32>
    %286 = vector.shape_cast %285 : vector<16xf32> to vector<16x1xf32>
    %cst_104 = arith.constant 1.280000e+02 : f32
    %287 = vector.broadcast %cst_104 : f32 to vector<16x1xf32>
    %288 = arith.divf %286, %287 : vector<16x1xf32>
    %289 = vector.broadcast %288 : vector<16x1xf32> to vector<16x128xf32>
    %290 = arith.subf %282, %289 : vector<16x128xf32>
    %291 = arith.mulf %290, %290 : vector<16x128xf32>
    %cst_105 = arith.constant dense<0.000000e+00> : vector<16xf32>
    %292 = vector.multi_reduction <add>, %291, %cst_105 [1] : vector<16x128xf32> to vector<16xf32>
    %293 = vector.shape_cast %292 : vector<16xf32> to vector<16x1xf32>
    %cst_106 = arith.constant 1.280000e+02 : f32
    %294 = vector.broadcast %cst_106 : f32 to vector<16x1xf32>
    %295 = arith.divf %293, %294 : vector<16x1xf32>
    %cst_107 = arith.constant 9.99999974E-6 : f32
    %296 = vector.broadcast %cst_107 : f32 to vector<16x1xf32>
    %297 = arith.addf %295, %296 : vector<16x1xf32>
    %298 = math.rsqrt %297 : vector<16x1xf32>
    %299 = vector.broadcast %298 : vector<16x1xf32> to vector<16x128xf32>
    %300 = arith.mulf %290, %299 : vector<16x128xf32>
    %301 = vector.broadcast %283 : vector<1x128xf32> to vector<16x128xf32>
    %302 = arith.mulf %300, %301 : vector<16x128xf32>
    %303 = vector.broadcast %284 : vector<1x128xf32> to vector<16x128xf32>
    %304 = arith.addf %302, %303 : vector<16x128xf32>
    %305 = arith.truncf %304 : vector<16x128xf32> to vector<16x128xbf16>
    %c1_108 = arith.constant 1 : index
    %c0_109 = arith.constant 0 : index
    %c0_110 = arith.constant 0 : index
    %306 = vector.load %arg9[%c1_108, %c0_109, %c0_110] : memref<2x128x256xbf16, #tpu.memory_space<vmem>>, vector<1x128x256xbf16>
    %307 = vector.shape_cast %306 : vector<1x128x256xbf16> to vector<128x256xbf16>
    %cst_111 = arith.constant dense<0.000000e+00> : vector<16x256xf32>
    %308 = tpu.matmul %305, %307, %cst_111 {dimension_numbers = #tpu.dot_dimension_numbers<[1], [0], [0], [1], [0, 0, 1, 1], [], []>} : vector<16x128xbf16>, vector<128x256xbf16>, vector<16x256xf32> -> vector<16x256xf32>
    %c1_112 = arith.constant 1 : index
    %c0_113 = arith.constant 0 : index
    %c0_114 = arith.constant 0 : index
    %309 = vector.load %arg10[%c1_112, %c0_113, %c0_114] : memref<2x1x256xf32, #tpu.memory_space<vmem>>, vector<1x1x256xf32>
    %310 = vector.shape_cast %309 : vector<1x1x256xf32> to vector<1x256xf32>
    %311 = vector.broadcast %310 : vector<1x256xf32> to vector<16x256xf32>
    %312 = arith.addf %308, %311 : vector<16x256xf32>
    %cst_115 = arith.constant 5.000000e-01 : f32
    %313 = vector.broadcast %cst_115 : f32 to vector<16x256xf32>
    %314 = arith.mulf %313, %312 : vector<16x256xf32>
    %315 = arith.mulf %312, %312 : vector<16x256xf32>
    %316 = arith.mulf %315, %312 : vector<16x256xf32>
    %cst_116 = arith.constant 4.471500e-02 : f32
    %317 = vector.broadcast %cst_116 : f32 to vector<16x256xf32>
    %318 = arith.mulf %317, %316 : vector<16x256xf32>
    %319 = arith.addf %312, %318 : vector<16x256xf32>
    %cst_117 = arith.constant 0.797884583 : f32
    %320 = vector.broadcast %cst_117 : f32 to vector<16x256xf32>
    %321 = arith.mulf %320, %319 : vector<16x256xf32>
    %322 = math.tanh %321 : vector<16x256xf32>
    %cst_118 = arith.constant 1.000000e+00 : f32
    %323 = vector.broadcast %cst_118 : f32 to vector<16x256xf32>
    %324 = arith.addf %323, %322 : vector<16x256xf32>
    %325 = arith.mulf %314, %324 : vector<16x256xf32>
    %326 = arith.truncf %325 : vector<16x256xf32> to vector<16x256xbf16>
    %c1_119 = arith.constant 1 : index
    %c0_120 = arith.constant 0 : index
    %c0_121 = arith.constant 0 : index
    %327 = vector.load %arg11[%c1_119, %c0_120, %c0_121] : memref<2x256x128xbf16, #tpu.memory_space<vmem>>, vector<1x256x128xbf16>
    %328 = vector.shape_cast %327 : vector<1x256x128xbf16> to vector<256x128xbf16>
    %cst_122 = arith.constant dense<0.000000e+00> : vector<16x128xf32>
    %329 = tpu.matmul %326, %328, %cst_122 {dimension_numbers = #tpu.dot_dimension_numbers<[1], [0], [0], [1], [0, 0, 1, 1], [], []>} : vector<16x256xbf16>, vector<256x128xbf16>, vector<16x128xf32> -> vector<16x128xf32>
    %330 = vector.extract_strided_slice %183 {offsets = [3, 0], sizes = [1, 128], strides = [1, 1]} : vector<6x128xf32> to vector<1x128xf32>
    %331 = vector.broadcast %330 : vector<1x128xf32> to vector<16x128xf32>
    %332 = arith.addf %329, %331 : vector<16x128xf32>
    %333 = arith.addf %304, %332 : vector<16x128xf32>
    %334 = vector.extract_strided_slice %183 {offsets = [4, 0], sizes = [1, 128], strides = [1, 1]} : vector<6x128xf32> to vector<1x128xf32>
    %335 = vector.extract_strided_slice %183 {offsets = [5, 0], sizes = [1, 128], strides = [1, 1]} : vector<6x128xf32> to vector<1x128xf32>
    %cst_123 = arith.constant dense<0.000000e+00> : vector<16xf32>
    %336 = vector.multi_reduction <add>, %333, %cst_123 [1] : vector<16x128xf32> to vector<16xf32>
    %337 = vector.shape_cast %336 : vector<16xf32> to vector<16x1xf32>
    %cst_124 = arith.constant 1.280000e+02 : f32
    %338 = vector.broadcast %cst_124 : f32 to vector<16x1xf32>
    %339 = arith.divf %337, %338 : vector<16x1xf32>
    %340 = vector.broadcast %339 : vector<16x1xf32> to vector<16x128xf32>
    %341 = arith.subf %333, %340 : vector<16x128xf32>
    %342 = arith.mulf %341, %341 : vector<16x128xf32>
    %cst_125 = arith.constant dense<0.000000e+00> : vector<16xf32>
    %343 = vector.multi_reduction <add>, %342, %cst_125 [1] : vector<16x128xf32> to vector<16xf32>
    %344 = vector.shape_cast %343 : vector<16xf32> to vector<16x1xf32>
    %cst_126 = arith.constant 1.280000e+02 : f32
    %345 = vector.broadcast %cst_126 : f32 to vector<16x1xf32>
    %346 = arith.divf %344, %345 : vector<16x1xf32>
    %cst_127 = arith.constant 9.99999974E-6 : f32
    %347 = vector.broadcast %cst_127 : f32 to vector<16x1xf32>
    %348 = arith.addf %346, %347 : vector<16x1xf32>
    %349 = math.rsqrt %348 : vector<16x1xf32>
    %350 = vector.broadcast %349 : vector<16x1xf32> to vector<16x128xf32>
    %351 = arith.mulf %341, %350 : vector<16x128xf32>
    %352 = vector.broadcast %334 : vector<1x128xf32> to vector<16x128xf32>
    %353 = arith.mulf %351, %352 : vector<16x128xf32>
    %354 = vector.broadcast %335 : vector<1x128xf32> to vector<16x128xf32>
    %355 = arith.addf %353, %354 : vector<16x128xf32>
    %c0_128 = arith.constant 0 : index
    %c0_129 = arith.constant 0 : index
    %356 = vector.load %arg15[%c0_128, %c0_129] : memref<2x128xf32, #tpu.memory_space<vmem>>, vector<2x128xf32>
    %357 = vector.extract_strided_slice %355 {offsets = [0, 0], sizes = [8, 128], strides = [1, 1]} : vector<16x128xf32> to vector<8x128xf32>
    %cst_130 = arith.constant dense<0.000000e+00> : vector<128xf32>
    %358 = vector.multi_reduction <add>, %357, %cst_130 [0] : vector<8x128xf32> to vector<128xf32>
    %359 = vector.shape_cast %358 : vector<128xf32> to vector<1x128xf32>
    %cst_131 = arith.constant 1.250000e-01 : f32
    %360 = vector.broadcast %cst_131 : f32 to vector<1x128xf32>
    %361 = arith.mulf %359, %360 : vector<1x128xf32>
    %362 = arith.truncf %361 : vector<1x128xf32> to vector<1x128xbf16>
    %c0_132 = arith.constant 0 : index
    %c0_133 = arith.constant 0 : index
    %363 = vector.load %arg13[%c0_132, %c0_133] : memref<128x128xbf16, #tpu.memory_space<vmem>>, vector<128x128xbf16>
    %cst_134 = arith.constant dense<0.000000e+00> : vector<1x128xf32>
    %364 = tpu.matmul %362, %363, %cst_134 {dimension_numbers = #tpu.dot_dimension_numbers<[1], [0], [0], [1], [0, 0, 1, 1], [], []>} : vector<1x128xbf16>, vector<128x128xbf16>, vector<1x128xf32> -> vector<1x128xf32>
    %365 = vector.extract_strided_slice %356 {offsets = [0, 0], sizes = [1, 128], strides = [1, 1]} : vector<2x128xf32> to vector<1x128xf32>
    %366 = arith.addf %364, %365 : vector<1x128xf32>
    %c0_135 = arith.constant 0 : index
    %c0_136 = arith.constant 0 : index
    %367 = vector.load %arg14[%c0_135, %c0_136] : memref<128x128xbf16, #tpu.memory_space<vmem>>, vector<128x128xbf16>
    %cst_137 = arith.constant dense<0.000000e+00> : vector<1x128xf32>
    %368 = tpu.matmul %362, %367, %cst_137 {dimension_numbers = #tpu.dot_dimension_numbers<[1], [0], [0], [1], [0, 0, 1, 1], [], []>} : vector<1x128xbf16>, vector<128x128xbf16>, vector<1x128xf32> -> vector<1x128xf32>
    %369 = vector.extract_strided_slice %356 {offsets = [1, 0], sizes = [1, 128], strides = [1, 1]} : vector<2x128xf32> to vector<1x128xf32>
    %370 = arith.addf %368, %369 : vector<1x128xf32>
    %cst_138 = arith.constant dense<0xFF800000> : vector<1xf32>
    %371 = vector.multi_reduction <maximumf>, %370, %cst_138 [1] : vector<1x128xf32> to vector<1xf32>
    %372 = vector.shape_cast %371 : vector<1xf32> to vector<1x1xf32>
    %373 = vector.broadcast %372 : vector<1x1xf32> to vector<1x128xf32>
    %374 = arith.subf %370, %373 : vector<1x128xf32>
    %375 = math.exp %374 : vector<1x128xf32>
    %cst_139 = arith.constant dense<0.000000e+00> : vector<1xf32>
    %376 = vector.multi_reduction <add>, %375, %cst_139 [1] : vector<1x128xf32> to vector<1xf32>
    %377 = vector.shape_cast %376 : vector<1xf32> to vector<1x1xf32>
    %378 = vector.broadcast %377 : vector<1x1xf32> to vector<1x128xf32>
    %379 = arith.divf %375, %378 : vector<1x128xf32>
    %cst_140 = arith.constant 9.99999997E-7 : f32
    %380 = vector.broadcast %cst_140 : f32 to vector<1x128xf32>
    %381 = arith.addf %379, %380 : vector<1x128xf32>
    %c0_141 = arith.constant 0 : index
    %c0_142 = arith.constant 0 : index
    %c0_143 = arith.constant 0 : index
    %382 = vector.load %arg16[%c0_141, %c0_142, %c0_143] : memref<2x1x128xf32, #tpu.memory_space<vmem>>, vector<1x1x128xf32>
    %383 = vector.shape_cast %382 : vector<1x1x128xf32> to vector<1x128xf32>
    %384 = vector.shape_cast %366 : vector<1x128xf32> to vector<1x1x128xf32>
    tpu.vector_store %arg16[%c0_141, %c0_142, %c0_143], %384 {strides = array<i32>} : memref<2x1x128xf32, #tpu.memory_space<vmem>>, vector<1x1x128xf32>,
    %c0_144 = arith.constant 0 : index
    %c0_145 = arith.constant 0 : index
    %c0_146 = arith.constant 0 : index
    %385 = vector.load %arg17[%c0_144, %c0_145, %c0_146] : memref<2x1x128xf32, #tpu.memory_space<vmem>>, vector<1x1x128xf32>
    %386 = vector.shape_cast %385 : vector<1x1x128xf32> to vector<1x128xf32>
    %387 = vector.shape_cast %381 : vector<1x128xf32> to vector<1x1x128xf32>
    tpu.vector_store %arg17[%c0_144, %c0_145, %c0_146], %387 {strides = array<i32>} : memref<2x1x128xf32, #tpu.memory_space<vmem>>, vector<1x1x128xf32>,
    %388 = vector.extract_strided_slice %355 {offsets = [8, 0], sizes = [8, 128], strides = [1, 1]} : vector<16x128xf32> to vector<8x128xf32>
    %cst_147 = arith.constant dense<0.000000e+00> : vector<128xf32>
    %389 = vector.multi_reduction <add>, %388, %cst_147 [0] : vector<8x128xf32> to vector<128xf32>
    %390 = vector.shape_cast %389 : vector<128xf32> to vector<1x128xf32>
    %cst_148 = arith.constant 1.250000e-01 : f32
    %391 = vector.broadcast %cst_148 : f32 to vector<1x128xf32>
    %392 = arith.mulf %390, %391 : vector<1x128xf32>
    %393 = arith.truncf %392 : vector<1x128xf32> to vector<1x128xbf16>
    %c0_149 = arith.constant 0 : index
    %c0_150 = arith.constant 0 : index
    %394 = vector.load %arg13[%c0_149, %c0_150] : memref<128x128xbf16, #tpu.memory_space<vmem>>, vector<128x128xbf16>
    %cst_151 = arith.constant dense<0.000000e+00> : vector<1x128xf32>
    %395 = tpu.matmul %393, %394, %cst_151 {dimension_numbers = #tpu.dot_dimension_numbers<[1], [0], [0], [1], [0, 0, 1, 1], [], []>} : vector<1x128xbf16>, vector<128x128xbf16>, vector<1x128xf32> -> vector<1x128xf32>
    %396 = vector.extract_strided_slice %356 {offsets = [0, 0], sizes = [1, 128], strides = [1, 1]} : vector<2x128xf32> to vector<1x128xf32>
    %397 = arith.addf %395, %396 : vector<1x128xf32>
    %c0_152 = arith.constant 0 : index
    %c0_153 = arith.constant 0 : index
    %398 = vector.load %arg14[%c0_152, %c0_153] : memref<128x128xbf16, #tpu.memory_space<vmem>>, vector<128x128xbf16>
    %cst_154 = arith.constant dense<0.000000e+00> : vector<1x128xf32>
    %399 = tpu.matmul %393, %398, %cst_154 {dimension_numbers = #tpu.dot_dimension_numbers<[1], [0], [0], [1], [0, 0, 1, 1], [], []>} : vector<1x128xbf16>, vector<128x128xbf16>, vector<1x128xf32> -> vector<1x128xf32>
    %400 = vector.extract_strided_slice %356 {offsets = [1, 0], sizes = [1, 128], strides = [1, 1]} : vector<2x128xf32> to vector<1x128xf32>
    %401 = arith.addf %399, %400 : vector<1x128xf32>
    %cst_155 = arith.constant dense<0xFF800000> : vector<1xf32>
    %402 = vector.multi_reduction <maximumf>, %401, %cst_155 [1] : vector<1x128xf32> to vector<1xf32>
    %403 = vector.shape_cast %402 : vector<1xf32> to vector<1x1xf32>
    %404 = vector.broadcast %403 : vector<1x1xf32> to vector<1x128xf32>
    %405 = arith.subf %401, %404 : vector<1x128xf32>
    %406 = math.exp %405 : vector<1x128xf32>
    %cst_156 = arith.constant dense<0.000000e+00> : vector<1xf32>
    %407 = vector.multi_reduction <add>, %406, %cst_156 [1] : vector<1x128xf32> to vector<1xf32>
    %408 = vector.shape_cast %407 : vector<1xf32> to vector<1x1xf32>
    %409 = vector.broadcast %408 : vector<1x1xf32> to vector<1x128xf32>
    %410 = arith.divf %406, %409 : vector<1x128xf32>
    %cst_157 = arith.constant 9.99999997E-7 : f32
    %411 = vector.broadcast %cst_157 : f32 to vector<1x128xf32>
    %412 = arith.addf %410, %411 : vector<1x128xf32>
    %c1_158 = arith.constant 1 : index
    %c0_159 = arith.constant 0 : index
    %c0_160 = arith.constant 0 : index
    %413 = vector.load %arg16[%c1_158, %c0_159, %c0_160] : memref<2x1x128xf32, #tpu.memory_space<vmem>>, vector<1x1x128xf32>
    %414 = vector.shape_cast %413 : vector<1x1x128xf32> to vector<1x128xf32>
    %415 = vector.shape_cast %397 : vector<1x128xf32> to vector<1x1x128xf32>
    tpu.vector_store %arg16[%c1_158, %c0_159, %c0_160], %415 {strides = array<i32>} : memref<2x1x128xf32, #tpu.memory_space<vmem>>, vector<1x1x128xf32>,
    %c1_161 = arith.constant 1 : index
    %c0_162 = arith.constant 0 : index
    %c0_163 = arith.constant 0 : index
    %416 = vector.load %arg17[%c1_161, %c0_162, %c0_163] : memref<2x1x128xf32, #tpu.memory_space<vmem>>, vector<1x1x128xf32>
    %417 = vector.shape_cast %416 : vector<1x1x128xf32> to vector<1x128xf32>
    %418 = vector.shape_cast %412 : vector<1x128xf32> to vector<1x1x128xf32>
    tpu.vector_store %arg17[%c1_161, %c0_162, %c0_163], %418 {strides = array<i32>} : memref<2x1x128xf32, #tpu.memory_space<vmem>>, vector<1x1x128xf32>,
    return
  }
  func.func @transform_0(%arg0: i32) -> (i32, i32) {
    %c0_i32 = arith.constant 0 : i32
    %c0_i32_0 = arith.constant 0 : i32
    return %arg0, %c0_i32 : i32, i32
  }
  func.func @transform_1(%arg0: i32) -> (i32, i32, i32) {
    %c0_i32 = arith.constant 0 : i32
    %c0_i32_0 = arith.constant 0 : i32
    %c0_i32_1 = arith.constant 0 : i32
    return %arg0, %c0_i32, %c0_i32_0 : i32, i32, i32
  }
  func.func @transform_2(%arg0: i32) -> (i32, i32) {
    %c0_i32 = arith.constant 0 : i32
    %c0_i32_0 = arith.constant 0 : i32
    %c0_i32_1 = arith.constant 0 : i32
    return %c0_i32, %c0_i32_0 : i32, i32
  }
  func.func @transform_3(%arg0: i32) -> (i32, i32) {
    %c0_i32 = arith.constant 0 : i32
    %c0_i32_0 = arith.constant 0 : i32
    %c0_i32_1 = arith.constant 0 : i32
    return %c0_i32, %c0_i32_0 : i32, i32
  }
  func.func @transform_4(%arg0: i32) -> (i32, i32) {
    %c0_i32 = arith.constant 0 : i32
    %c0_i32_0 = arith.constant 0 : i32
    %c0_i32_1 = arith.constant 0 : i32
    return %c0_i32, %c0_i32_0 : i32, i32
  }
  func.func @transform_5(%arg0: i32) -> (i32, i32, i32) {
    %c0_i32 = arith.constant 0 : i32
    %c0_i32_0 = arith.constant 0 : i32
    %c0_i32_1 = arith.constant 0 : i32
    %c0_i32_2 = arith.constant 0 : i32
    return %c0_i32, %c0_i32_0, %c0_i32_1 : i32, i32, i32
  }
  func.func @transform_6(%arg0: i32) -> (i32, i32, i32) {
    %c0_i32 = arith.constant 0 : i32
    %c0_i32_0 = arith.constant 0 : i32
    %c0_i32_1 = arith.constant 0 : i32
    %c0_i32_2 = arith.constant 0 : i32
    return %c0_i32, %c0_i32_0, %c0_i32_1 : i32, i32, i32
  }
  func.func @transform_7(%arg0: i32) -> (i32, i32, i32) {
    %c0_i32 = arith.constant 0 : i32
    %c0_i32_0 = arith.constant 0 : i32
    %c0_i32_1 = arith.constant 0 : i32
    %c0_i32_2 = arith.constant 0 : i32
    return %c0_i32, %c0_i32_0, %c0_i32_1 : i32, i32, i32
  }
  func.func @transform_8(%arg0: i32) -> (i32, i32, i32) {
    %c0_i32 = arith.constant 0 : i32
    %c0_i32_0 = arith.constant 0 : i32
    %c0_i32_1 = arith.constant 0 : i32
    %c0_i32_2 = arith.constant 0 : i32
    return %c0_i32, %c0_i32_0, %c0_i32_1 : i32, i32, i32
  }
  func.func @transform_9(%arg0: i32) -> (i32, i32, i32) {
    %c0_i32 = arith.constant 0 : i32
    %c0_i32_0 = arith.constant 0 : i32
    %c0_i32_1 = arith.constant 0 : i32
    %c0_i32_2 = arith.constant 0 : i32
    return %c0_i32, %c0_i32_0, %c0_i32_1 : i32, i32, i32
  }
  func.func @transform_10(%arg0: i32) -> (i32, i32, i32) {
    %c0_i32 = arith.constant 0 : i32
    %c0_i32_0 = arith.constant 0 : i32
    %c0_i32_1 = arith.constant 0 : i32
    %c0_i32_2 = arith.constant 0 : i32
    return %c0_i32, %c0_i32_0, %c0_i32_1 : i32, i32, i32
  }
  func.func @transform_11(%arg0: i32) -> (i32, i32, i32) {
    %c0_i32 = arith.constant 0 : i32
    %c0_i32_0 = arith.constant 0 : i32
    %c0_i32_1 = arith.constant 0 : i32
    %c0_i32_2 = arith.constant 0 : i32
    return %c0_i32, %c0_i32_0, %c0_i32_1 : i32, i32, i32
  }
  func.func @transform_12(%arg0: i32) -> (i32, i32) {
    %c0_i32 = arith.constant 0 : i32
    %c0_i32_0 = arith.constant 0 : i32
    %c0_i32_1 = arith.constant 0 : i32
    return %c0_i32, %c0_i32_0 : i32, i32
  }
  func.func @transform_13(%arg0: i32) -> (i32, i32) {
    %c0_i32 = arith.constant 0 : i32
    %c0_i32_0 = arith.constant 0 : i32
    %c0_i32_1 = arith.constant 0 : i32
    return %c0_i32, %c0_i32_0 : i32, i32
  }
  func.func @transform_14(%arg0: i32) -> (i32, i32) {
    %c0_i32 = arith.constant 0 : i32
    %c0_i32_0 = arith.constant 0 : i32
    %c0_i32_1 = arith.constant 0 : i32
    return %c0_i32, %c0_i32_0 : i32, i32
  }
  func.func @transform_15(%arg0: i32) -> (i32, i32, i32) {
    %c0_i32 = arith.constant 0 : i32
    %c0_i32_0 = arith.constant 0 : i32
    %c0_i32_1 = arith.constant 0 : i32
    return %arg0, %c0_i32, %c0_i32_0 : i32, i32, i32
  }
  func.func @transform_16(%arg0: i32) -> (i32, i32, i32) {
    %c0_i32 = arith.constant 0 : i32
    %c0_i32_0 = arith.constant 0 : i32
    %c0_i32_1 = arith.constant 0 : i32
    return %arg0, %c0_i32, %c0_i32_0 : i32, i32, i32
  }
}

</mosaic_0001>

<llo_original>
// kernel: enc_transformer_forward.1
$region0: #{enc_transformer_forward.1}
  #allocation0 [shape = 'u32[]', space=smem, size = 0x4, offset = 0x4, fixed_abs, tag = 'smem constant byte address 0x4 - core index']
  #allocation1 [shape = 'u32[144,128]{1,0:T(1,128)}', space=vmem, size = 0x12000, scoped, tag = 'internal scratch']
  %s0 = inlined_call_operand.vmem [shape: bf16[32,24], index: 0, kind: input, shape index: {}]
  %s1 = inlined_call_operand.vmem [shape: f32[4,1,8], index: 1, kind: input, shape index: {}]
  %s2 = inlined_call_operand.vmem [shape: bf16[24,128], index: 2, kind: input, shape index: {}]
  %s3 = inlined_call_operand.hbm [shape: f32[1,128], index: 3, kind: input, shape index: {}]
  %s4 = inlined_call_operand.vmem [shape: f32[16,128], index: 4, kind: input, shape index: {}]
  %s5 = inlined_call_operand.vmem [shape: bf16[2,128,384], index: 5, kind: input, shape index: {}]
  %s6 = inlined_call_operand.vmem [shape: f32[2,1,384], index: 6, kind: input, shape index: {}]
  %s7 = inlined_call_operand.hbm [shape: bf16[2,128,128], index: 7, kind: input, shape index: {}]
  %s8 = inlined_call_operand.hbm [shape: bf16[2,128,256], index: 8, kind: input, shape index: {}]
  %s9 = inlined_call_operand.vmem [shape: f32[2,1,256], index: 9, kind: input, shape index: {}]
  %s10 = inlined_call_operand.hbm [shape: bf16[2,256,128], index: 10, kind: input, shape index: {}]
  %s11 = inlined_call_operand.vmem [shape: f32[2,6,128], index: 11, kind: input, shape index: {}]
  %s12 = inlined_call_operand.hbm [shape: bf16[128,128], index: 12, kind: input, shape index: {}]
  %s13 = inlined_call_operand.hbm [shape: bf16[128,128], index: 13, kind: input, shape index: {}]
  %s14 = inlined_call_operand.hbm [shape: f32[2,128], index: 14, kind: input, shape index: {}]
  %s15 = inlined_call_operand.hbm [shape: f32[4,1,128], index: 15, kind: output, shape index: {0}]
  %s16 = inlined_call_operand.hbm [shape: f32[4,1,128], index: 16, kind: output, shape index: {1}]
  %17 = xla_tuple %s15, %s16
  %s18 = sld [smem:[#allocation0]]
  $region129: #{enc_transformer_forward.1} parent=0
    _
  %s20 = ssub.s32 1, %s18
  %s21 = scalar_select 0, %s20, %s18
  $region1: #{enc_transformer_forward.1} parent=0
    #allocation2 [shape = 'u8[512]{0}', space=vmem, size = 0x400, scoped, tag = 'input window, operand 3, single buffered']
    #allocation3 [shape = 's32[2]{0}', space=sflag, size = 0x8, scoped, tag = 'scoped memory for enc_transformer_forward.1']
    #allocation4 [shape = 's32[2]{0}', space=sflag, size = 0x8, scoped, tag = 'scoped memory for enc_transformer_forward.1']
    #allocation5 [shape = 'u8[65536]{0}', space=vmem, size = 0x10000, scoped, tag = 'input window, operand 7, single buffered']
    #allocation6 [shape = 's32[1]{0}', space=sflag, size = 0x4, scoped, tag = 'scoped memory for enc_transformer_forward.1']
    #allocation7 [shape = 'u8[131072]{0}', space=vmem, size = 0x20000, scoped, tag = 'input window, operand 8, single buffered']
    #allocation8 [shape = 'u8[131072]{0}', space=vmem, size = 0x20000, scoped, tag = 'input window, operand 10, single buffered']
    #allocation9 [shape = 's32[1]{0}', space=sflag, size = 0x4, scoped, tag = 'scoped memory for enc_transformer_forward.1']
    #allocation10 [shape = 'u8[32768]{0}', space=vmem, size = 0x8000, scoped, tag = 'input window, operand 12, single buffered']
    #allocation11 [shape = 'u8[32768]{0}', space=vmem, size = 0x8000, scoped, tag = 'input window, operand 13, single buffered']
    #allocation12 [shape = 's32[1]{0}', space=sflag, size = 0x4, scoped, tag = 'scoped memory for enc_transformer_forward.1']
    #allocation13 [shape = 'u8[1024]{0}', space=vmem, size = 0x400, scoped, tag = 'input window, operand 14, single buffered']
    #allocation14 [shape = 'u8[2048]{0}', space=vmem, size = 0x800, scoped, tag = 'output window, operand 0']
    #allocation15 [shape = 'u8[2048]{0}', space=vmem, size = 0x800, scoped, tag = 'output window, operand 1']
    #allocation16 [shape = 's32[2]{0}', space=sflag, size = 0x8, scoped, tag = 'scoped memory for enc_transformer_forward.1']
    %22 = vsyncpa [#allocation3], 0
    %23 = vsyncpa [#allocation6], 0
    %24 = vsyncpa [#allocation9], 0
    %25 = vsyncpa [#allocation12], 0
    %26 = vsyncpa [#allocation4], 0
    %s27 = scalar_lea.sflag [#allocation4], 1
    %28 = vsyncpa %s27, 0
    %29 = vsyncpa [#allocation16], 0
    %s30 = scalar_lea.sflag [#allocation16], 1
    %31 = vsyncpa %s30, 0
    loop: start=0, step=1, limit=4
    $region2: #{enc_transformer_forward.1} parent=1 // loop_pre_header
      _
    $region3: #{enc_transformer_forward.1} parent=1 // loop_header
      %s33 = sphi 0, %s37
      %p34 = scmp.ge.s32.totalorder %s33, 4
      %s43 = sphi 0, %s45
      %s46 = sphi 0, %s43
      %s47 = sphi 0, %s46
      %s63 = sphi 0, %s47
      %s69 = sphi 0, %s71
      %s72 = sphi 0, %s69
      %s73 = sphi 0, %s72
      %s89 = sphi 0, %s73
      %s93 = sphi 0, %s93
      %s95 = sphi 0, %s93
      %s96 = sphi 0, %s95
      %s110 = sphi 0, %s96
      %s114 = sphi 0, %s114
      %s116 = sphi 0, %s114
      %s117 = sphi 0, %s116
      %s131 = sphi 0, %s117
      %s135 = sphi 0, %s135
      %s137 = sphi 0, %s135
      %s138 = sphi 0, %s137
      %s152 = sphi 0, %s138
      %s156 = sphi 0, %s156
      %s158 = sphi 0, %s156
      %s159 = sphi 0, %s158
      %s173 = sphi 0, %s159
      %s177 = sphi 0, %s177
      %s179 = sphi 0, %s177
      %s180 = sphi 0, %s179
      %s194 = sphi 0, %s180
      %s198 = sphi 0, %s198
      %s200 = sphi 0, %s198
      %s201 = sphi 0, %s200
      %s215 = sphi 0, %s201
      %s219 = sphi 0, %s219
      %s221 = sphi 0, %s219
      %s222 = sphi 0, %s221
      %s236 = sphi 0, %s222
      %s240 = sphi 0, %s240
      %s242 = sphi 0, %s240
      %s243 = sphi 0, %s242
      %s257 = sphi 0, %s243
      %s261 = sphi 0, %s261
      %s263 = sphi 0, %s261
      %s264 = sphi 0, %s263
      %s278 = sphi 0, %s264
      %s282 = sphi 0, %s282
      %s284 = sphi 0, %s282
      %s285 = sphi 0, %s284
      %s299 = sphi 0, %s285
      %s303 = sphi 0, %s303
      %s305 = sphi 0, %s303
      %s306 = sphi 0, %s305
      %s320 = sphi 0, %s306
      %s324 = sphi 0, %s324
      %s326 = sphi 0, %s324
      %s327 = sphi 0, %s326
      %s341 = sphi 0, %s327
      %s345 = sphi 0, %s345
      %s347 = sphi 0, %s345
      %s348 = sphi 0, %s347
      %s362 = sphi 0, %s348
      %s368 = sphi 0, %s370
      %s371 = sphi 0, %s368
      %s372 = sphi 0, %s371
      %s388 = sphi 0, %s372
      %s394 = sphi 0, %s396
      %s397 = sphi 0, %s394
      %s398 = sphi 0, %s397
      %s414 = sphi 0, %s398
    $region4: #{enc_transformer_forward.1} parent=1 // loop_header_branch
      %36 = sbr.rel (%p34) target = $region8
    $region5: #{enc_transformer_forward.1} parent=1 // loop_body
      %s38 = ssub.s32 %s33, 1
      %s39 = ssub.s32 %s33, 2
      %s40 = sadd.s32 %s33, 1
      %s41 = ssub.s32 %s33, %s40
      %p42 = scmp.eq.s32.totalorder %s41, 0
      %s44 = sadd.s32 %s43, 1
      %s45 = scalar_select %p42, %s43, %s44
      %p48 = pneg %p42
      %p49 = scmp.eq.s32.totalorder %s33, 1
      %p50 = por %p48, %p49
      %p51 = scmp.ne.s32.totalorder %s43, %s46
      %p52 = scmp.eq.s32.totalorder %s33, 0
      %p53 = por %p51, %p52
      %p54 = scmp.ne.s32.totalorder %s43, %s46
      %p55 = scmp.eq.s32.totalorder %s38, 1
      %p56 = por %p54, %p55
      %p57 = scmp.ne.s32.totalorder %s46, %s47
      %p58 = scmp.eq.s32.totalorder %s38, 0
      %p59 = por %p57, %p58
      %p60 = scmp.ne.s32.totalorder %s46, %s47
      %p61 = scmp.eq.s32.totalorder %s39, 1
      %p62 = por %p60, %p61
      %p64 = scmp.ne.s32.totalorder %s47, %s63
      %p65 = scmp.eq.s32.totalorder %s39, 0
      %p66 = por %p64, %p65
      %s67 = ssub.s32 %s33, %s40
      %p68 = scmp.eq.s32.totalorder %s67, 0
      %s70 = sadd.s32 %s69, 1
      %s71 = scalar_select %p68, %s69, %s70
      %p74 = pneg %p68
      %p75 = scmp.eq.s32.totalorder %s33, 1
      %p76 = por %p74, %p75
      %p77 = scmp.ne.s32.totalorder %s69, %s72
      %p78 = scmp.eq.s32.totalorder %s33, 0
      %p79 = por %p77, %p78
      %p80 = scmp.ne.s32.totalorder %s69, %s72
      %p81 = scmp.eq.s32.totalorder %s38, 1
      %p82 = por %p80, %p81
      %p83 = scmp.ne.s32.totalorder %s72, %s73
      %p84 = scmp.eq.s32.totalorder %s38, 0
      %p85 = por %p83, %p84
      %p86 = scmp.ne.s32.totalorder %s72, %s73
      %p87 = scmp.eq.s32.totalorder %s39, 1
      %p88 = por %p86, %p87
      %p90 = scmp.ne.s32.totalorder %s73, %s89
      %p91 = scmp.eq.s32.totalorder %s39, 0
      %p92 = por %p90, %p91
      %s94 = sadd.s32 %s93, 1
      %p97 = scmp.eq.s32.totalorder %s33, 1
      %p98 = scmp.ne.s32.totalorder %s93, %s95
      %p99 = scmp.eq.s32.totalorder %s33, 0
      %p100 = por %p98, %p99
      %p101 = scmp.ne.s32.totalorder %s93, %s95
      %p102 = scmp.eq.s32.totalorder %s38, 1
      %p103 = por %p101, %p102
      %p104 = scmp.ne.s32.totalorder %s95, %s96
      %p105 = scmp.eq.s32.totalorder %s38, 0
      %p106 = por %p104, %p105
      %p107 = scmp.ne.s32.totalorder %s95, %s96
      %p108 = scmp.eq.s32.totalorder %s39, 1
      %p109 = por %p107, %p108
      %p111 = scmp.ne.s32.totalorder %s96, %s110
      %p112 = scmp.eq.s32.totalorder %s39, 0
      %p113 = por %p111, %p112
      %s115 = sadd.s32 %s114, 1
      %p118 = scmp.eq.s32.totalorder %s33, 1
      %p119 = scmp.ne.s32.totalorder %s114, %s116
      %p120 = scmp.eq.s32.totalorder %s33, 0
      %p121 = por %p119, %p120
      %p122 = scmp.ne.s32.totalorder %s114, %s116
      %p123 = scmp.eq.s32.totalorder %s38, 1
      %p124 = por %p122, %p123
      %p125 = scmp.ne.s32.totalorder %s116, %s117
      %p126 = scmp.eq.s32.totalorder %s38, 0
      %p127 = por %p125, %p126
      %p128 = scmp.ne.s32.totalorder %s116, %s117
      %p129 = scmp.eq.s32.totalorder %s39, 1
      %p130 = por %p128, %p129
      %p132 = scmp.ne.s32.totalorder %s117, %s131
      %p133 = scmp.eq.s32.totalorder %s39, 0
      %p134 = por %p132, %p133
      %s136 = sadd.s32 %s135, 1
      %p139 = scmp.eq.s32.totalorder %s33, 1
      %p140 = scmp.ne.s32.totalorder %s135, %s137
      %p141 = scmp.eq.s32.totalorder %s33, 0
      %p142 = por %p140, %p141
      %p143 = scmp.ne.s32.totalorder %s135, %s137
      %p144 = scmp.eq.s32.totalorder %s38, 1
      %p145 = por %p143, %p144
      %p146 = scmp.ne.s32.totalorder %s137, %s138
      %p147 = scmp.eq.s32.totalorder %s38, 0
      %p148 = por %p146, %p147
      %p149 = scmp.ne.s32.totalorder %s137, %s138
      %p150 = scmp.eq.s32.totalorder %s39, 1
      %p151 = por %p149, %p150
      %p153 = scmp.ne.s32.totalorder %s138, %s152
      %p154 = scmp.eq.s32.totalorder %s39, 0
      %p155 = por %p153, %p154
      %s157 = sadd.s32 %s156, 1
      %p160 = scmp.eq.s32.totalorder %s33, 1
      %p161 = scmp.ne.s32.totalorder %s156, %s158
      %p162 = scmp.eq.s32.totalorder %s33, 0
      %p163 = por %p161, %p162
      %p164 = scmp.ne.s32.totalorder %s156, %s158
      %p165 = scmp.eq.s32.totalorder %s38, 1
      %p166 = por %p164, %p165
      %p167 = scmp.ne.s32.totalorder %s158, %s159
      %p168 = scmp.eq.s32.totalorder %s38, 0
      %p169 = por %p167, %p168
      %p170 = scmp.ne.s32.totalorder %s158, %s159
      %p171 = scmp.eq.s32.totalorder %s39, 1
      %p172 = por %p170, %p171
      %p174 = scmp.ne.s32.totalorder %s159, %s173
      %p175 = scmp.eq.s32.totalorder %s39, 0
      %p176 = por %p174, %p175
      %s178 = sadd.s32 %s177, 1
      %p181 = scmp.eq.s32.totalorder %s33, 1
      %p182 = scmp.ne.s32.totalorder %s177, %s179
      %p183 = scmp.eq.s32.totalorder %s33, 0
      %p184 = por %p182, %p183
      %p185 = scmp.ne.s32.totalorder %s177, %s179
      %p186 = scmp.eq.s32.totalorder %s38, 1
      %p187 = por %p185, %p186
      %p188 = scmp.ne.s32.totalorder %s179, %s180
      %p189 = scmp.eq.s32.totalorder %s38, 0
      %p190 = por %p188, %p189
      %p191 = scmp.ne.s32.totalorder %s179, %s180
      %p192 = scmp.eq.s32.totalorder %s39, 1
      %p193 = por %p191, %p192
      %p195 = scmp.ne.s32.totalorder %s180, %s194
      %p196 = scmp.eq.s32.totalorder %s39, 0
      %p197 = por %p195, %p196
      %s199 = sadd.s32 %s198, 1
      %p202 = scmp.eq.s32.totalorder %s33, 1
      %p203 = scmp.ne.s32.totalorder %s198, %s200
      %p204 = scmp.eq.s32.totalorder %s33, 0
      %p205 = por %p203, %p204
      %p206 = scmp.ne.s32.totalorder %s198, %s200
      %p207 = scmp.eq.s32.totalorder %s38, 1
      %p208 = por %p206, %p207
      %p209 = scmp.ne.s32.totalorder %s200, %s201
      %p210 = scmp.eq.s32.totalorder %s38, 0
      %p211 = por %p209, %p210
      %p212 = scmp.ne.s32.totalorder %s200, %s201
      %p213 = scmp.eq.s32.totalorder %s39, 1
      %p214 = por %p212, %p213
      %p216 = scmp.ne.s32.totalorder %s201, %s215
      %p217 = scmp.eq.s32.totalorder %s39, 0
      %p218 = por %p216, %p217
      %s220 = sadd.s32 %s219, 1
      %p223 = scmp.eq.s32.totalorder %s33, 1
      %p224 = scmp.ne.s32.totalorder %s219, %s221
      %p225 = scmp.eq.s32.totalorder %s33, 0
      %p226 = por %p224, %p225
      %p227 = scmp.ne.s32.totalorder %s219, %s221
      %p228 = scmp.eq.s32.totalorder %s38, 1
      %p229 = por %p227, %p228
      %p230 = scmp.ne.s32.totalorder %s221, %s222
      %p231 = scmp.eq.s32.totalorder %s38, 0
      %p232 = por %p230, %p231
      %p233 = scmp.ne.s32.totalorder %s221, %s222
      %p234 = scmp.eq.s32.totalorder %s39, 1
      %p235 = por %p233, %p234
      %p237 = scmp.ne.s32.totalorder %s222, %s236
      %p238 = scmp.eq.s32.totalorder %s39, 0
      %p239 = por %p237, %p238
      %s241 = sadd.s32 %s240, 1
      %p244 = scmp.eq.s32.totalorder %s33, 1
      %p245 = scmp.ne.s32.totalorder %s240, %s242
      %p246 = scmp.eq.s32.totalorder %s33, 0
      %p247 = por %p245, %p246
      %p248 = scmp.ne.s32.totalorder %s240, %s242
      %p249 = scmp.eq.s32.totalorder %s38, 1
      %p250 = por %p248, %p249
      %p251 = scmp.ne.s32.totalorder %s242, %s243
      %p252 = scmp.eq.s32.totalorder %s38, 0
      %p253 = por %p251, %p252
      %p254 = scmp.ne.s32.totalorder %s242, %s243
      %p255 = scmp.eq.s32.totalorder %s39, 1
      %p256 = por %p254, %p255
      %p258 = scmp.ne.s32.totalorder %s243, %s257
      %p259 = scmp.eq.s32.totalorder %s39, 0
      %p260 = por %p258, %p259
      %s262 = sadd.s32 %s261, 1
      %p265 = scmp.eq.s32.totalorder %s33, 1
      %p266 = scmp.ne.s32.totalorder %s261, %s263
      %p267 = scmp.eq.s32.totalorder %s33, 0
      %p268 = por %p266, %p267
      %p269 = scmp.ne.s32.totalorder %s261, %s263
      %p270 = scmp.eq.s32.totalorder %s38, 1
      %p271 = por %p269, %p270
      %p272 = scmp.ne.s32.totalorder %s263, %s264
      %p273 = scmp.eq.s32.totalorder %s38, 0
      %p274 = por %p272, %p273
      %p275 = scmp.ne.s32.totalorder %s263, %s264
      %p276 = scmp.eq.s32.totalorder %s39, 1
      %p277 = por %p275, %p276
      %p279 = scmp.ne.s32.totalorder %s264, %s278
      %p280 = scmp.eq.s32.totalorder %s39, 0
      %p281 = por %p279, %p280
      %s283 = sadd.s32 %s282, 1
      %p286 = scmp.eq.s32.totalorder %s33, 1
      %p287 = scmp.ne.s32.totalorder %s282, %s284
      %p288 = scmp.eq.s32.totalorder %s33, 0
      %p289 = por %p287, %p288
      %p290 = scmp.ne.s32.totalorder %s282, %s284
      %p291 = scmp.eq.s32.totalorder %s38, 1
      %p292 = por %p290, %p291
      %p293 = scmp.ne.s32.totalorder %s284, %s285
      %p294 = scmp.eq.s32.totalorder %s38, 0
      %p295 = por %p293, %p294
      %p296 = scmp.ne.s32.totalorder %s284, %s285
      %p297 = scmp.eq.s32.totalorder %s39, 1
      %p298 = por %p296, %p297
      %p300 = scmp.ne.s32.totalorder %s285, %s299
      %p301 = scmp.eq.s32.totalorder %s39, 0
      %p302 = por %p300, %p301
      %s304 = sadd.s32 %s303, 1
      %p307 = scmp.eq.s32.totalorder %s33, 1
      %p308 = scmp.ne.s32.totalorder %s303, %s305
      %p309 = scmp.eq.s32.totalorder %s33, 0
      %p310 = por %p308, %p309
      %p311 = scmp.ne.s32.totalorder %s303, %s305
      %p312 = scmp.eq.s32.totalorder %s38, 1
      %p313 = por %p311, %p312
      %p314 = scmp.ne.s32.totalorder %s305, %s306
      %p315 = scmp.eq.s32.totalorder %s38, 0
      %p316 = por %p314, %p315
      %p317 = scmp.ne.s32.totalorder %s305, %s306
      %p318 = scmp.eq.s32.totalorder %s39, 1
      %p319 = por %p317, %p318
      %p321 = scmp.ne.s32.totalorder %s306, %s320
      %p322 = scmp.eq.s32.totalorder %s39, 0
      %p323 = por %p321, %p322
      %s325 = sadd.s32 %s324, 1
      %p328 = scmp.eq.s32.totalorder %s33, 1
      %p329 = scmp.ne.s32.totalorder %s324, %s326
      %p330 = scmp.eq.s32.totalorder %s33, 0
      %p331 = por %p329, %p330
      %p332 = scmp.ne.s32.totalorder %s324, %s326
      %p333 = scmp.eq.s32.totalorder %s38, 1
      %p334 = por %p332, %p333
      %p335 = scmp.ne.s32.totalorder %s326, %s327
      %p336 = scmp.eq.s32.totalorder %s38, 0
      %p337 = por %p335, %p336
      %p338 = scmp.ne.s32.totalorder %s326, %s327
      %p339 = scmp.eq.s32.totalorder %s39, 1
      %p340 = por %p338, %p339
      %p342 = scmp.ne.s32.totalorder %s327, %s341
      %p343 = scmp.eq.s32.totalorder %s39, 0
      %p344 = por %p342, %p343
      %s346 = sadd.s32 %s345, 1
      %p349 = scmp.eq.s32.totalorder %s33, 1
      %p350 = scmp.ne.s32.totalorder %s345, %s347
      %p351 = scmp.eq.s32.totalorder %s33, 0
      %p352 = por %p350, %p351
      %p353 = scmp.ne.s32.totalorder %s345, %s347
      %p354 = scmp.eq.s32.totalorder %s38, 1
      %p355 = por %p353, %p354
      %p356 = scmp.ne.s32.totalorder %s347, %s348
      %p357 = scmp.eq.s32.totalorder %s38, 0
      %p358 = por %p356, %p357
      %p359 = scmp.ne.s32.totalorder %s347, %s348
      %p360 = scmp.eq.s32.totalorder %s39, 1
      %p361 = por %p359, %p360
      %p363 = scmp.ne.s32.totalorder %s348, %s362
      %p364 = scmp.eq.s32.totalorder %s39, 0
      %p365 = por %p363, %p364
      %s366 = ssub.s32 %s33, %s40
      %p367 = scmp.eq.s32.totalorder %s366, 0
      %s369 = sadd.s32 %s368, 1
      %s370 = scalar_select %p367, %s368, %s369
      %p373 = pneg %p367
      %p374 = scmp.eq.s32.totalorder %s33, 1
      %p375 = por %p373, %p374
      %p376 = scmp.ne.s32.totalorder %s368, %s371
      %p377 = scmp.eq.s32.totalorder %s33, 0
      %p378 = por %p376, %p377
      %p379 = scmp.ne.s32.totalorder %s368, %s371
      %p380 = scmp.eq.s32.totalorder %s38, 1
      %p381 = por %p379, %p380
      %p382 = scmp.ne.s32.totalorder %s371, %s372
      %p383 = scmp.eq.s32.totalorder %s38, 0
      %p384 = por %p382, %p383
      %p385 = scmp.ne.s32.totalorder %s371, %s372
      %p386 = scmp.eq.s32.totalorder %s39, 1
      %p387 = por %p385, %p386
      %p389 = scmp.ne.s32.totalorder %s372, %s388
      %p390 = scmp.eq.s32.totalorder %s39, 0
      %p391 = por %p389, %p390
      %s392 = ssub.s32 %s33, %s40
      %p393 = scmp.eq.s32.totalorder %s392, 0
      %s395 = sadd.s32 %s394, 1
      %s396 = scalar_select %p393, %s394, %s395
      %p399 = pneg %p393
      %p400 = scmp.eq.s32.totalorder %s33, 1
      %p401 = por %p399, %p400
      %p402 = scmp.ne.s32.totalorder %s394, %s397
      %p403 = scmp.eq.s32.totalorder %s33, 0
      %p404 = por %p402, %p403
      %p405 = scmp.ne.s32.totalorder %s394, %s397
      %p406 = scmp.eq.s32.totalorder %s38, 1
      %p407 = por %p405, %p406
      %p408 = scmp.ne.s32.totalorder %s397, %s398
      %p409 = scmp.eq.s32.totalorder %s38, 0
      %p410 = por %p408, %p409
      %p411 = scmp.ne.s32.totalorder %s397, %s398
      %p412 = scmp.eq.s32.totalorder %s39, 1
      %p413 = por %p411, %p412
      %p415 = scmp.ne.s32.totalorder %s398, %s414
      %p416 = scmp.eq.s32.totalorder %s39, 0
      %p417 = por %p415, %p416
      %p418 = scmp.le.s32.totalorder 1, %s33
      %p419 = scmp.lt.s32.totalorder %s33, 3
      %p420 = pnand %p418, %p419
      %p421 = pneg %p420
      // Predicated region
      $region9: #{enc_transformer_forward.1} parent=5 // pred_check
        _
      $region10: #{enc_transformer_forward.1} parent=5 // pred_check_branch
        %423 = sbr.rel (%p420) target = $region12
      $region11: #{enc_transformer_forward.1} parent=5 // pred_region
        %s424 = ssub.s32 %s33, 1
        // Predicated region
        $region13: #{enc_transformer_forward.1} parent=11 // pred_check
          %p425 = pneg %p106
        $region14: #{enc_transformer_forward.1} parent=11 // pred_check_branch
          %427 = sbr.rel (%p425) target = $region16
        $region15: #{enc_transformer_forward.1} parent=11 // pred_region
          _
        $region16: #{enc_transformer_forward.1} parent=11 // pred_fallthru
          _
        // Predicated region
        $region17: #{enc_transformer_forward.1} parent=11 // pred_check
          %p428 = pneg %p127
        $region18: #{enc_transformer_forward.1} parent=11 // pred_check_branch
          %430 = sbr.rel (%p428) target = $region20
        $region19: #{enc_transformer_forward.1} parent=11 // pred_region
          %s432 = ssub.s32 16, 16
          %433 = vsyncadd [#allocation3], %s432
          %s435 = sshll.u32 [#allocation2], 4
          %s436 = int_to_ptr.vmem [resolvable:$true] %s435
          %438 = dma.hbm_to_vmem [thread:$0]  %s3, 16, %s436, [#allocation3]
        $region20: #{enc_transformer_forward.1} parent=11 // pred_fallthru
          _
        // Predicated region
        $region21: #{enc_transformer_forward.1} parent=11 // pred_check
          %p439 = pneg %p148
        $region22: #{enc_transformer_forward.1} parent=11 // pred_check_branch
          %441 = sbr.rel (%p439) target = $region24
        $region23: #{enc_transformer_forward.1} parent=11 // pred_region
          _
        $region24: #{enc_transformer_forward.1} parent=11 // pred_fallthru
          _
        // Predicated region
        $region25: #{enc_transformer_forward.1} parent=11 // pred_check
          %p442 = pneg %p169
        $region26: #{enc_transformer_forward.1} parent=11 // pred_check_branch
          %444 = sbr.rel (%p442) target = $region28
        $region27: #{enc_transformer_forward.1} parent=11 // pred_region
          _
        $region28: #{enc_transformer_forward.1} parent=11 // pred_fallthru
          _
        // Predicated region
        $region29: #{enc_transformer_forward.1} parent=11 // pred_check
          %p445 = pneg %p190
        $region30: #{enc_transformer_forward.1} parent=11 // pred_check_branch
          %447 = sbr.rel (%p445) target = $region32
        $region31: #{enc_transformer_forward.1} parent=11 // pred_region
          _
        $region32: #{enc_transformer_forward.1} parent=11 // pred_fallthru
          _
        // Predicated region
        $region33: #{enc_transformer_forward.1} parent=11 // pred_check
          %p448 = pneg %p211
        $region34: #{enc_transformer_forward.1} parent=11 // pred_check_branch
          %450 = sbr.rel (%p448) target = $region36
        $region35: #{enc_transformer_forward.1} parent=11 // pred_region
          %s452 = ssub.s32 2048, 2048
          %453 = vsyncadd [#allocation6], %s452
          %s454 = sshll.u32 [#allocation5], 4
          %s455 = int_to_ptr.vmem [resolvable:$true] %s454
          %460 = dma.hbm_to_vmem [thread:$0]  %s7, 2048, %s455, [#allocation6], 64, 64, 4
        $region36: #{enc_transformer_forward.1} parent=11 // pred_fallthru
          _
        // Predicated region
        $region37: #{enc_transformer_forward.1} parent=11 // pred_check
          %p461 = pneg %p232
        $region38: #{enc_transformer_forward.1} parent=11 // pred_check_branch
          %463 = sbr.rel (%p461) target = $region40
        $region39: #{enc_transformer_forward.1} parent=11 // pred_region
          %s465 = ssub.s32 4096, 4096
          %466 = vsyncadd [#allocation6], %s465
          %s467 = sshll.u32 [#allocation7], 4
          %s468 = int_to_ptr.vmem [resolvable:$true] %s467
          %473 = dma.hbm_to_vmem [thread:$0]  %s8, 4096, %s468, [#allocation6], 128, 128, 8
        $region40: #{enc_transformer_forward.1} parent=11 // pred_fallthru
          _
        // Predicated region
        $region41: #{enc_transformer_forward.1} parent=11 // pred_check
          %p474 = pneg %p253
        $region42: #{enc_transformer_forward.1} parent=11 // pred_check_branch
          %476 = sbr.rel (%p474) target = $region44
        $region43: #{enc_transformer_forward.1} parent=11 // pred_region
          _
        $region44: #{enc_transformer_forward.1} parent=11 // pred_fallthru
          _
        // Predicated region
        $region45: #{enc_transformer_forward.1} parent=11 // pred_check
          %p477 = pneg %p274
        $region46: #{enc_transformer_forward.1} parent=11 // pred_check_branch
          %479 = sbr.rel (%p477) target = $region48
        $region47: #{enc_transformer_forward.1} parent=11 // pred_region
          %s481 = ssub.s32 4096, 4096
          %482 = vsyncadd [#allocation9], %s481
          %s483 = sshll.u32 [#allocation8], 4
          %s484 = int_to_ptr.vmem [resolvable:$true] %s483
          %489 = dma.hbm_to_vmem [thread:$0]  %s10, 4096, %s484, [#allocation9], 64, 64, 4
        $region48: #{enc_transformer_forward.1} parent=11 // pred_fallthru
          _
        // Predicated region
        $region49: #{enc_transformer_forward.1} parent=11 // pred_check
          %p490 = pneg %p295
        $region50: #{enc_transformer_forward.1} parent=11 // pred_check_branch
          %492 = sbr.rel (%p490) target = $region52
        $region51: #{enc_transformer_forward.1} parent=11 // pred_region
          _
        $region52: #{enc_transformer_forward.1} parent=11 // pred_fallthru
          _
        // Predicated region
        $region53: #{enc_transformer_forward.1} parent=11 // pred_check
          %p493 = pneg %p316
        $region54: #{enc_transformer_forward.1} parent=11 // pred_check_branch
          %495 = sbr.rel (%p493) target = $region56
        $region55: #{enc_transformer_forward.1} parent=11 // pred_region
          %s497 = ssub.s32 1024, 1024
          %498 = vsyncadd [#allocation9], %s497
          %s499 = sshll.u32 [#allocation10], 4
          %s500 = int_to_ptr.vmem [resolvable:$true] %s499
          %505 = dma.hbm_to_vmem [thread:$0]  %s12, 1024, %s500, [#allocation9], 64, 64, 4
        $region56: #{enc_transformer_forward.1} parent=11 // pred_fallthru
          _
        // Predicated region
        $region57: #{enc_transformer_forward.1} parent=11 // pred_check
          %p506 = pneg %p337
        $region58: #{enc_transformer_forward.1} parent=11 // pred_check_branch
          %508 = sbr.rel (%p506) target = $region60
        $region59: #{enc_transformer_forward.1} parent=11 // pred_region
          %s510 = ssub.s32 1024, 1024
          %511 = vsyncadd [#allocation12], %s510
          %s512 = sshll.u32 [#allocation11], 4
          %s513 = int_to_ptr.vmem [resolvable:$true] %s512
          %518 = dma.hbm_to_vmem [thread:$0]  %s13, 1024, %s513, [#allocation12], 64, 64, 4
        $region60: #{enc_transformer_forward.1} parent=11 // pred_fallthru
          _
        // Predicated region
        $region61: #{enc_transformer_forward.1} parent=11 // pred_check
          %p519 = pneg %p358
        $region62: #{enc_transformer_forward.1} parent=11 // pred_check_branch
          %521 = sbr.rel (%p519) target = $region64
        $region63: #{enc_transformer_forward.1} parent=11 // pred_region
          %s523 = ssub.s32 32, 32
          %524 = vsyncadd [#allocation12], %s523
          %s526 = sshll.u32 [#allocation13], 4
          %s527 = int_to_ptr.vmem [resolvable:$true] %s526
          %529 = dma.hbm_to_vmem [thread:$0]  %s14, 32, %s527, [#allocation12]
        $region64: #{enc_transformer_forward.1} parent=11 // pred_fallthru
          _
      $region12: #{enc_transformer_forward.1} parent=5 // pred_fallthru
        _
      %p530 = scmp.lt.s32.totalorder %s33, 2
      // Predicated region
      $region65: #{enc_transformer_forward.1} parent=5 // pred_check
        %p531 = pneg %p530
      $region66: #{enc_transformer_forward.1} parent=5 // pred_check_branch
        %533 = sbr.rel (%p531) target = $region68
      $region67: #{enc_transformer_forward.1} parent=5 // pred_region
        // Predicated region
        $region69: #{enc_transformer_forward.1} parent=67 // pred_check
          %p534 = pneg %p53
        $region70: #{enc_transformer_forward.1} parent=67 // pred_check_branch
          %536 = sbr.rel (%p534) target = $region72
        $region71: #{enc_transformer_forward.1} parent=67 // pred_region
          %s537 = smul.u32 2, %s33
          %p538 = scmp.lt.s32.totalorder %s537, 3
          %s539 = scalar_select %p538, %s537, 3
          %s540 = smul.addr %s539, 4
          %s541 = scalar_lea.vmem %s0, %s540
          %s542 = smul.u32 2, %s33
        $region72: #{enc_transformer_forward.1} parent=67 // pred_fallthru
          _
        // Predicated region
        $region73: #{enc_transformer_forward.1} parent=67 // pred_check
          %p543 = pneg %p79
        $region74: #{enc_transformer_forward.1} parent=67 // pred_check_branch
          %545 = sbr.rel (%p543) target = $region76
        $region75: #{enc_transformer_forward.1} parent=67 // pred_region
          %s546 = smul.u32 2, %s33
          %p547 = scmp.lt.s32.totalorder %s546, 3
          %s548 = scalar_select %p547, %s546, 3
          %s549 = scalar_lea.vmem %s1, %s548
          %s550 = smul.u32 2, %s33
        $region76: #{enc_transformer_forward.1} parent=67 // pred_fallthru
          _
      $region68: #{enc_transformer_forward.1} parent=5 // pred_fallthru
        _
      %p551 = scmp.le.s32.totalorder 1, %s33
      %p552 = scmp.lt.s32.totalorder %s33, 3
      %p553 = pnand %p551, %p552
      %p554 = pneg %p553
      // Predicated region
      $region77: #{enc_transformer_forward.1} parent=5 // pred_check
        _
      $region78: #{enc_transformer_forward.1} parent=5 // pred_check_branch
        %556 = sbr.rel (%p553) target = $region80
      $region79: #{enc_transformer_forward.1} parent=5 // pred_region
        %s557 = ssub.s32 %s33, 1
        // Predicated region
        $region81: #{enc_transformer_forward.1} parent=79 // pred_check
          %p558 = pneg %p127
        $region82: #{enc_transformer_forward.1} parent=79 // pred_check_branch
          %560 = sbr.rel (%p558) target = $region84
        $region83: #{enc_transformer_forward.1} parent=79 // pred_region
          %561 = dma.done [#allocation3], 16
        $region84: #{enc_transformer_forward.1} parent=79 // pred_fallthru
          _
        // Predicated region
        $region85: #{enc_transformer_forward.1} parent=79 // pred_check
          %p562 = pneg %p211
        $region86: #{enc_transformer_forward.1} parent=79 // pred_check_branch
          %564 = sbr.rel (%p562) target = $region88
        $region87: #{enc_transformer_forward.1} parent=79 // pred_region
          %565 = dma.done [#allocation6], 2048
        $region88: #{enc_transformer_forward.1} parent=79 // pred_fallthru
          _
        // Predicated region
        $region89: #{enc_transformer_forward.1} parent=79 // pred_check
          %p566 = pneg %p232
        $region90: #{enc_transformer_forward.1} parent=79 // pred_check_branch
          %568 = sbr.rel (%p566) target = $region92
        $region91: #{enc_transformer_forward.1} parent=79 // pred_region
          %569 = dma.done [#allocation6], 4096
        $region92: #{enc_transformer_forward.1} parent=79 // pred_fallthru
          _
        // Predicated region
        $region93: #{enc_transformer_forward.1} parent=79 // pred_check
          %p570 = pneg %p274
        $region94: #{enc_transformer_forward.1} parent=79 // pred_check_branch
          %572 = sbr.rel (%p570) target = $region96
        $region95: #{enc_transformer_forward.1} parent=79 // pred_region
          %573 = dma.done [#allocation9], 4096
        $region96: #{enc_transformer_forward.1} parent=79 // pred_fallthru
          _
        // Predicated region
        $region97: #{enc_transformer_forward.1} parent=79 // pred_check
          %p574 = pneg %p316
        $region98: #{enc_transformer_forward.1} parent=79 // pred_check_branch
          %576 = sbr.rel (%p574) target = $region100
        $region99: #{enc_transformer_forward.1} parent=79 // pred_region
          %577 = dma.done [#allocation9], 1024
        $region100: #{enc_transformer_forward.1} parent=79 // pred_fallthru
          _
        // Predicated region
        $region101: #{enc_transformer_forward.1} parent=79 // pred_check
          %p578 = pneg %p337
        $region102: #{enc_transformer_forward.1} parent=79 // pred_check_branch
          %580 = sbr.rel (%p578) target = $region104
        $region103: #{enc_transformer_forward.1} parent=79 // pred_region
          %581 = dma.done [#allocation12], 1024
        $region104: #{enc_transformer_forward.1} parent=79 // pred_fallthru
          _
        // Predicated region
        $region105: #{enc_transformer_forward.1} parent=79 // pred_check
          %p582 = pneg %p358
        $region106: #{enc_transformer_forward.1} parent=79 // pred_check_branch
          %584 = sbr.rel (%p582) target = $region108
        $region107: #{enc_transformer_forward.1} parent=79 // pred_region
          %585 = dma.done [#allocation12], 32
        $region108: #{enc_transformer_forward.1} parent=79 // pred_fallthru
          _
        %s586 = smul.u32 2, %s38
        %p587 = scmp.lt.s32.totalorder %s586, 3
        %s588 = scalar_select %p587, %s586, 3
        %s589 = smul.addr %s588, 4
        %s590 = scalar_lea.vmem %s0, %s589
        %p591 = pneg %p59
        %p592 = pneg %p56
        %s593 = smul.u32 2, %s38
        %p594 = scmp.lt.s32.totalorder %s593, 3
        %s595 = scalar_select %p594, %s593, 3
        %s596 = scalar_lea.vmem %s1, %s595
        %p597 = pneg %p85
        %p598 = pneg %p82
        %p599 = pneg %p106
        %p600 = pneg %p103
        %p601 = pneg %p127
        %p602 = pneg %p124
        %p603 = pneg %p148
        %p604 = pneg %p145
        %p605 = pneg %p169
        %p606 = pneg %p166
        %p607 = pneg %p190
        %p608 = pneg %p187
        %p609 = pneg %p211
        %p610 = pneg %p208
        %p611 = pneg %p232
        %p612 = pneg %p229
        %p613 = pneg %p253
        %p614 = pneg %p250
        %p615 = pneg %p274
        %p616 = pneg %p271
        %p617 = pneg %p295
        %p618 = pneg %p292
        %p619 = pneg %p316
        %p620 = pneg %p313
        %p621 = pneg %p337
        %p622 = pneg %p334
        %p623 = pneg %p358
        %p624 = pneg %p355
        %p625 = pneg %p384
        %p626 = pneg %p381
        %s627 = sand.u32 %s371, 1
        %s628 = scalar_lea.sflag [#allocation4], %s627
        %s629 = sand.u32 %s371, 1
        %s630 = smul.addr %s629, 2
        %s631 = scalar_lea.vmem [#allocation14], %s630
        %p632 = pneg %p410
        %p633 = pneg %p407
        %s634 = sand.u32 %s397, 1
        %s635 = scalar_lea.sflag [#allocation16], %s634
        %s636 = sand.u32 %s397, 1
        %s637 = smul.addr %s636, 2
        %s638 = scalar_lea.vmem [#allocation15], %s637
        %s639 = smul.u32 2, %s38
        %p640 = scmp.lt.s32.totalorder %s639, 3
        %s641 = scalar_select %p640, %s639, 3
        %s642 = smul.addr %s641, 4
        %s643 = scalar_lea.vmem %s0, %s642
        %s644 = smul.u32 2, %s38
        %s645 = smul.u32 2, %s38
        %p646 = scmp.lt.s32.totalorder %s645, 3
        %s647 = scalar_select %p646, %s645, 3
        %s648 = scalar_lea.vmem %s1, %s647
        %s649 = smul.u32 2, %s38
        %s650 = smul.u32 2, %s38
        %s651 = smul.u32 2, %s38
        %v653 = vld [vmem:[%s643] sm:$0xf]
        %v654 = vld [vmem:[%s643 + $0x4] sm:$0xf]
        %v655 = vld [vmem:[%s2] sm:$0xf]
        %v656 = vld [vmem:[%s2 + $0x4] sm:$0xf]
        %v657 = vld [vmem:[%s2 + $0x8] sm:$0xf]
        %v658 = vld [vmem:[#allocation2] sm:$0x1]
        %v660 = vlaneseq
        %v661 = vshrl.u32 %v660, 7
        %v662 = vsub.s32 0, %v661
        %v663 = vrot.slane %v658, %v662
        %v667 = vunpack.c.l.b16 %v653
        %v668 = vunpack.c.l.b16 %v654
        %v669 = vpack.c.b16 %v668, %v667
        %v673 = vunpack.c.l.b16 %v655
        %v674 = vunpack.c.l.b16 %v656
        %v675 = vunpack.c.l.b16 %v657
        %v676 = vpack.c.b16 %v674, %v673
        %v677 = vpack.c.b16 %v675, %v675
        %vm679 = vcmask 195584
        %v681 = vsel %vm679, %v669, 0
        %vm683 = vcmask 1043456
        %v685 = vsel %vm683, %v677, 0
        %687 = vmatprep.subr.bf16.mxu0 0
        %688 = vmatpush1.bf16.msra.mxu0 %v676
        %689 = vmatprep.subr.bf16.mxu0 0
        %690 = vmatpush1.bf16.msra.mxu0 %v685
        %691 = vmatprep.subr.bf16.mxu0 0
        %692 = vmatpush1.bf16.msra.mxu0 0
        %693 = vmatprep.subr.bf16.mxu0 0
        %694 = vmatpush1.bf16.msra.mxu0 0
        %695 = vmatprep.subr.bf16.mxu0 0
        %696 = vmatpush1.bf16.msra.mxu0 0
        %697 = vmatprep.subr.bf16.mxu0 0
        %698 = vmatpush1.bf16.msra.mxu0 0
        %699 = vmatprep.subr.bf16.mxu0 0
        %700 = vmatpush1.bf16.msra.mxu0 0
        %701 = vmatprep.subr.bf16.mxu0 0
        %702 = vmatpush1.bf16.msra.mxu0 0
        %703 = vmatprep.subr.bf16.mxu0 0
        %704 = vmatpush1.bf16.msra.mxu0 0
        %705 = vmatprep.subr.bf16.mxu0 0
        %706 = vmatpush1.bf16.msra.mxu0 0
        %707 = vmatprep.subr.bf16.mxu0 0
        %708 = vmatpush1.bf16.msra.mxu0 0
        %709 = vmatprep.subr.bf16.mxu0 0
        %710 = vmatpush1.bf16.msra.mxu0 0
        %711 = vmatprep.subr.bf16.mxu0 0
        %712 = vmatpush1.bf16.msra.mxu0 0
        %713 = vmatprep.subr.bf16.mxu0 0
        %714 = vmatpush1.bf16.msra.mxu0 0
        %715 = vmatprep.subr.bf16.mxu0 0
        %716 = vmatpush1.bf16.msra.mxu0 0
        %717 = vmatprep.subr.bf16.mxu0 0
        %718 = vmatpush1.bf16.msra.mxu0 0
        %719 = vmatprep.mubr.bf16.mxu0 0
        %720 = vmatmul.mubr.bf16.gmra.mrb[0].mxu0 %v681
        %v721 = vpop.f32.mrb[0].mxu0
        %v722 = vadd.f32 %v663, %v721
        %v723 = vpop.f32.mrb[0].mxu0
        %v724 = vpop.f32.mrb[0].mxu0
        %v725 = vadd.f32 %v663, %v724
        %v726 = vpop.f32.mrb[0].mxu0
        %727 = vdwg.mxu0
        %v728 = vld [vmem:[%s4] sm:$0xff]
        %v729 = vld [vmem:[%s4 + $0x8] sm:$0xff]
        %v730 = vadd.f32 %v722, %v728
        %v731 = vadd.f32 %v725, %v729
        %v732 = vld [vmem:[%s11] sm:$0x3f]
        %v733 = vpack.c.bf16 %v731, %v730
        %v734 = vld [vmem:[%s5] sm:$0xff]
        %v735 = vld [vmem:[%s5 + $0x8] sm:$0xf]
        %v736 = vld [vmem:[%s5 + $0xc] sm:$0xff]
        %v737 = vld [vmem:[%s5 + $0x14] sm:$0xf]
        %v738 = vld [vmem:[%s5 + $0x18] sm:$0xff]
        %v739 = vld [vmem:[%s5 + $0x20] sm:$0xf]
        %v740 = vld [vmem:[%s5 + $0x24] sm:$0xff]
        %v741 = vld [vmem:[%s5 + $0x2c] sm:$0xf]
        %v742 = vld [vmem:[%s5 + $0x30] sm:$0xff]
        %v743 = vld [vmem:[%s5 + $0x38] sm:$0xf]
        %v744 = vld [vmem:[%s5 + $0x3c] sm:$0xff]
        %v745 = vld [vmem:[%s5 + $0x44] sm:$0xf]
        %v746 = vld [vmem:[%s5 + $0x48] sm:$0xff]
        %v747 = vld [vmem:[%s5 + $0x50] sm:$0xf]
        %v748 = vld [vmem:[%s5 + $0x54] sm:$0xff]
        %v749 = vld [vmem:[%s5 + $0x5c] sm:$0xf]
        %v750 = vld [vmem:[%s5 + $0x60] sm:$0xff]
        %v751 = vld [vmem:[%s5 + $0x68] sm:$0xf]
        %v752 = vld [vmem:[%s5 + $0x6c] sm:$0xff]
        %v753 = vld [vmem:[%s5 + $0x74] sm:$0xf]
        %v754 = vld [vmem:[%s5 + $0x78] sm:$0xff]
        %v755 = vld [vmem:[%s5 + $0x80] sm:$0xf]
        %v756 = vld [vmem:[%s5 + $0x84] sm:$0xff]
        %v757 = vld [vmem:[%s5 + $0x8c] sm:$0xf]
        %v758 = vld [vmem:[%s5 + $0x90] sm:$0xff]
        %v759 = vld [vmem:[%s5 + $0x98] sm:$0xf]
        %v760 = vld [vmem:[%s5 + $0x9c] sm:$0xff]
        %v761 = vld [vmem:[%s5 + $0xa4] sm:$0xf]
        %v762 = vld [vmem:[%s5 + $0xa8] sm:$0xff]
        %v763 = vld [vmem:[%s5 + $0xb0] sm:$0xf]
        %v764 = vld [vmem:[%s5 + $0xb4] sm:$0xff]
        %v765 = vld [vmem:[%s5 + $0xbc] sm:$0xf]
        %v766 = vld [vmem:[%s6] sm:$0x7]
        %v768 = vlaneseq
        %v769 = vshrl.u32 %v768, 7
        %v770 = vsub.s32 0, %v769
        %v771 = vrot.slane %v766, %v770
        %v772 = vlaneseq
        %v773 = vshrl.u32 %v772, 7
        %v774 = vsub.s32 1, %v773
        %v775 = vrot.slane %v766, %v774
        %v776 = vlaneseq
        %v777 = vshrl.u32 %v776, 7
        %v778 = vsub.s32 2, %v777
        %v779 = vrot.slane %v766, %v778
        %v815 = vunpack.c.l.b16 %v734
        %v816 = vunpack.c.h.b16 %v734
        %v817 = vunpack.c.l.b16 %v735
        %v818 = vunpack.c.l.b16 %v736
        %v819 = vunpack.c.h.b16 %v736
        %v820 = vunpack.c.l.b16 %v737
        %v821 = vunpack.c.l.b16 %v738
        %v822 = vunpack.c.h.b16 %v738
        %v823 = vunpack.c.l.b16 %v739
        %v824 = vunpack.c.l.b16 %v740
        %v825 = vunpack.c.h.b16 %v740
        %v826 = vunpack.c.l.b16 %v741
        %v827 = vunpack.c.l.b16 %v742
        %v828 = vunpack.c.h.b16 %v742
        %v829 = vunpack.c.l.b16 %v743
        %v830 = vunpack.c.l.b16 %v744
        %v831 = vunpack.c.h.b16 %v744
        %v832 = vunpack.c.l.b16 %v745
        %v833 = vunpack.c.l.b16 %v746
        %v834 = vunpack.c.h.b16 %v746
        %v835 = vunpack.c.l.b16 %v747
        %v836 = vunpack.c.l.b16 %v748
        %v837 = vunpack.c.h.b16 %v748
        %v838 = vunpack.c.l.b16 %v749
        %v839 = vunpack.c.l.b16 %v750
        %v840 = vunpack.c.h.b16 %v750
        %v841 = vunpack.c.l.b16 %v751
        %v842 = vunpack.c.l.b16 %v752
        %v843 = vunpack.c.h.b16 %v752
        %v844 = vunpack.c.l.b16 %v753
        %v845 = vunpack.c.l.b16 %v754
        %v846 = vunpack.c.h.b16 %v754
        %v847 = vunpack.c.l.b16 %v755
        %v848 = vunpack.c.l.b16 %v756
        %v849 = vunpack.c.h.b16 %v756
        %v850 = vunpack.c.l.b16 %v757
        %v851 = vunpack.c.l.b16 %v758
        %v852 = vunpack.c.h.b16 %v758
        %v853 = vunpack.c.l.b16 %v759
        %v854 = vunpack.c.l.b16 %v760
        %v855 = vunpack.c.h.b16 %v760
        %v856 = vunpack.c.l.b16 %v761
        %v857 = vunpack.c.l.b16 %v762
        %v858 = vunpack.c.h.b16 %v762
        %v859 = vunpack.c.l.b16 %v763
        %v860 = vunpack.c.l.b16 %v764
        %v861 = vunpack.c.h.b16 %v764
        %v862 = vunpack.c.l.b16 %v765
        %v863 = vpack.c.b16 %v818, %v815
        %v864 = vpack.c.b16 %v819, %v816
        %v865 = vpack.c.b16 %v820, %v817
        %v866 = vpack.c.b16 %v824, %v821
        %v867 = vpack.c.b16 %v825, %v822
        %v868 = vpack.c.b16 %v826, %v823
        %v869 = vpack.c.b16 %v830, %v827
        %v870 = vpack.c.b16 %v831, %v828
        %v871 = vpack.c.b16 %v832, %v829
        %v872 = vpack.c.b16 %v836, %v833
        %v873 = vpack.c.b16 %v837, %v834
        %v874 = vpack.c.b16 %v838, %v835
        %v875 = vpack.c.b16 %v842, %v839
        %v876 = vpack.c.b16 %v843, %v840
        %v877 = vpack.c.b16 %v844, %v841
        %v878 = vpack.c.b16 %v848, %v845
        %v879 = vpack.c.b16 %v849, %v846
        %v880 = vpack.c.b16 %v850, %v847
        %v881 = vpack.c.b16 %v854, %v851
        %v882 = vpack.c.b16 %v855, %v852
        %v883 = vpack.c.b16 %v856, %v853
        %v884 = vpack.c.b16 %v860, %v857
        %v885 = vpack.c.b16 %v861, %v858
        %v886 = vpack.c.b16 %v862, %v859
        %911 = vmatprep.subr.bf16.mxu0 %v864
        %912 = vmatpush1.bf16.msra.mxu0 %v863
        %913 = vmatprep.subr.bf16.mxu0 %v867
        %914 = vmatpush1.bf16.msra.mxu0 %v866
        %915 = vmatprep.subr.bf16.mxu0 %v870
        %916 = vmatpush1.bf16.msra.mxu0 %v869
        %917 = vmatprep.subr.bf16.mxu0 %v873
        %918 = vmatpush1.bf16.msra.mxu0 %v872
        %919 = vmatprep.subr.bf16.mxu0 %v876
        %920 = vmatpush1.bf16.msra.mxu0 %v875
        %921 = vmatprep.subr.bf16.mxu0 %v879
        %922 = vmatpush1.bf16.msra.mxu0 %v878
        %923 = vmatprep.subr.bf16.mxu0 %v882
        %924 = vmatpush1.bf16.msra.mxu0 %v881
        %925 = vmatprep.subr.bf16.mxu0 %v885
        %926 = vmatpush1.bf16.msra.mxu0 %v884
        %927 = vmatprep.subr.bf16.mxu0 0
        %928 = vmatpush1.bf16.msra.mxu0 0
        %929 = vmatprep.subr.bf16.mxu0 0
        %930 = vmatpush1.bf16.msra.mxu0 0
        %931 = vmatprep.subr.bf16.mxu0 0
        %932 = vmatpush1.bf16.msra.mxu0 0
        %933 = vmatprep.subr.bf16.mxu0 0
        %934 = vmatpush1.bf16.msra.mxu0 0
        %935 = vmatprep.subr.bf16.mxu0 0
        %936 = vmatpush1.bf16.msra.mxu0 0
        %937 = vmatprep.subr.bf16.mxu0 0
        %938 = vmatpush1.bf16.msra.mxu0 0
        %939 = vmatprep.subr.bf16.mxu0 0
        %940 = vmatpush1.bf16.msra.mxu0 0
        %941 = vmatprep.subr.bf16.mxu0 0
        %942 = vmatpush1.bf16.msra.mxu0 0
        %943 = vmatprep.mubr.bf16.mxu0 0
        %944 = vmatmul.mubr.bf16.gmra.mrb[0].mxu0 %v733
        %v945 = vpop.f32.mrb[0].mxu0
        %v946 = vadd.f32 %v771, %v945
        %v947 = vpop.f32.mrb[0].mxu0
        %v948 = vadd.f32 %v775, %v947
        %v949 = vpop.f32.mrb[0].mxu0
        %v950 = vadd.f32 %v771, %v949
        %v951 = vpop.f32.mrb[0].mxu0
        %v952 = vadd.f32 %v775, %v951
        %953 = vdwg.mxu0
        %954 = vmatprep.subr.bf16.mxu0 0
        %955 = vmatpush1.bf16.msra.mxu0 %v865
        %956 = vmatprep.subr.bf16.mxu0 0
        %957 = vmatpush1.bf16.msra.mxu0 %v868
        %958 = vmatprep.subr.bf16.mxu0 0
        %959 = vmatpush1.bf16.msra.mxu0 %v871
        %960 = vmatprep.subr.bf16.mxu0 0
        %961 = vmatpush1.bf16.msra.mxu0 %v874
        %962 = vmatprep.subr.bf16.mxu0 0
        %963 = vmatpush1.bf16.msra.mxu0 %v877
        %964 = vmatprep.subr.bf16.mxu0 0
        %965 = vmatpush1.bf16.msra.mxu0 %v880
        %966 = vmatprep.subr.bf16.mxu0 0
        %967 = vmatpush1.bf16.msra.mxu0 %v883
        %968 = vmatprep.subr.bf16.mxu0 0
        %969 = vmatpush1.bf16.msra.mxu0 %v886
        %970 = vmatprep.subr.bf16.mxu0 0
        %971 = vmatpush1.bf16.msra.mxu0 0
        %972 = vmatprep.subr.bf16.mxu0 0
        %973 = vmatpush1.bf16.msra.mxu0 0
        %974 = vmatprep.subr.bf16.mxu0 0
        %975 = vmatpush1.bf16.msra.mxu0 0
        %976 = vmatprep.subr.bf16.mxu0 0
        %977 = vmatpush1.bf16.msra.mxu0 0
        %978 = vmatprep.subr.bf16.mxu0 0
        %979 = vmatpush1.bf16.msra.mxu0 0
        %980 = vmatprep.subr.bf16.mxu0 0
        %981 = vmatpush1.bf16.msra.mxu0 0
        %982 = vmatprep.subr.bf16.mxu0 0
        %983 = vmatpush1.bf16.msra.mxu0 0
        %984 = vmatprep.subr.bf16.mxu0 0
        %985 = vmatpush1.bf16.msra.mxu0 0
        %986 = vmatprep.mubr.bf16.mxu0 0
        %987 = vmatmul.mubr.bf16.gmra.mrb[0].mxu0 %v733
        %v988 = vpop.f32.mrb[0].mxu0
        %v989 = vadd.f32 %v779, %v988
        %v990 = vpop.f32.mrb[0].mxu0
        %v991 = vpop.f32.mrb[0].mxu0
        %v992 = vadd.f32 %v779, %v991
        %v993 = vpop.f32.mrb[0].mxu0
        %994 = vdwg.mxu0
        %v995 = vpack.c.bf16 %v946, %v946
        %v996 = vpack.c.bf16 %v948, %v948
        %v997 = vpack.c.bf16 %v989, %v989
        %v998 = vld [vmem:[%s648] sm:$0x1]
        %v1000 = vlaneseq
        %v1001 = vshrl.u32 %v1000, 7
        %v1002 = vsub.s32 0, %v1001
        %v1003 = vrot.slane %v998, %v1002
        %vm1005 = vcmask 523264
        %v1007 = vsel %vm1005, %v995, 0
        %v1010 = vsel %vm1005, %v996, 0
        %1012 = vmatprep.subr.bf16.mxu0 0
        %1013 = vmatpush1.bf16.xpose.msra.mxu0 %v1010
        %1014 = vmatprep.subr.bf16.mxu0 0
        %1015 = vmatpush1.bf16.xpose.msra.mxu0 0
        %1016 = vmatprep.subr.bf16.mxu0 0
        %1017 = vmatpush1.bf16.xpose.msra.mxu0 0
        %1018 = vmatprep.subr.bf16.mxu0 0
        %1019 = vmatpush1.bf16.xpose.msra.mxu0 0
        %1020 = vmatprep.subr.bf16.mxu0 0
        %1021 = vmatpush1.bf16.xpose.msra.mxu0 0
        %1022 = vmatprep.subr.bf16.mxu0 0
        %1023 = vmatpush1.bf16.xpose.msra.mxu0 0
        %1024 = vmatprep.subr.bf16.mxu0 0
        %1025 = vmatpush1.bf16.xpose.msra.mxu0 0
        %1026 = vmatprep.subr.bf16.mxu0 0
        %1027 = vmatpush1.bf16.xpose.msra.mxu0 0
        %1028 = vmatprep.subr.bf16.mxu0 0
        %1029 = vmatpush1.bf16.xpose.msra.mxu0 0
        %1030 = vmatprep.subr.bf16.mxu0 0
        %1031 = vmatpush1.bf16.xpose.msra.mxu0 0
        %1032 = vmatprep.subr.bf16.mxu0 0
        %1033 = vmatpush1.bf16.xpose.msra.mxu0 0
        %1034 = vmatprep.subr.bf16.mxu0 0
        %1035 = vmatpush1.bf16.xpose.msra.mxu0 0
        %1036 = vmatprep.subr.bf16.mxu0 0
        %1037 = vmatpush1.bf16.xpose.msra.mxu0 0
        %1038 = vmatprep.subr.bf16.mxu0 0
        %1039 = vmatpush1.bf16.xpose.msra.mxu0 0
        %1040 = vmatprep.subr.bf16.mxu0 0
        %1041 = vmatpush1.bf16.xpose.msra.mxu0 0
        %1042 = vmatprep.subr.bf16.mxu0 0
        %1043 = vmatpush1.bf16.xpose.msra.mxu0 0
        %1044 = vmatprep.mubr.bf16.mxu0 0
        %1045 = vmatmul.mubr.bf16.gmra.mrb[0].mxu0 %v1007
        %v1046 = vpop.f32.mrb[0].mxu0
        %v1047 = vadd.f32 %v1003, %v1046
        %v1048 = vpop.f32.mrb[0].mxu0
        %v1049 = vpop.f32.mrb[0].mxu0
        %v1050 = vpop.f32.mrb[0].mxu0
        %1051 = vdwg.mxu0
        %vm1052 = vcmask 64512
        %v1053 = vsel %vm1052, %v1047, -inf
        %1054 = vmax.xlane.f32.xlu0 %v1053
        %v1055 = vpop.xlane.xlu0 %1054
        %v1056 = vsub.f32 %v1047, %v1055
        %v1057 = vmul.f32 %v1056, 1.442695
        %v1058 = vpow.pop %v1057
        %v1059 = vsel %vm1052, %v1058, 0.0
        %1060 = vadd.xlane.f32.xlu0 %v1059
        %v1061 = vpop.xlane.xlu0 %1060
        %v1062 = vrcp.pop %v1061
        %v1063 = vmul.f32 %v1058, %v1062
        %v1064 = vpack.c.bf16 %v1063, %v1063
        %v1066 = vsel %vm1052, %v1064, 0
        %v1069 = vsel %vm683, %v997, 0
        %1071 = vmatprep.subr.bf16.mxu0 0
        %1072 = vmatpush1.bf16.msra.mxu0 %v1069
        %1073 = vmatprep.subr.bf16.mxu0 0
        %1074 = vmatpush1.bf16.msra.mxu0 0
        %1075 = vmatprep.subr.bf16.mxu0 0
        %1076 = vmatpush1.bf16.msra.mxu0 0
        %1077 = vmatprep.subr.bf16.mxu0 0
        %1078 = vmatpush1.bf16.msra.mxu0 0
        %1079 = vmatprep.subr.bf16.mxu0 0
        %1080 = vmatpush1.bf16.msra.mxu0 0
        %1081 = vmatprep.subr.bf16.mxu0 0
        %1082 = vmatpush1.bf16.msra.mxu0 0
        %1083 = vmatprep.subr.bf16.mxu0 0
        %1084 = vmatpush1.bf16.msra.mxu0 0
        %1085 = vmatprep.subr.bf16.mxu0 0
        %1086 = vmatpush1.bf16.msra.mxu0 0
        %1087 = vmatprep.subr.bf16.mxu0 0
        %1088 = vmatpush1.bf16.msra.mxu0 0
        %1089 = vmatprep.subr.bf16.mxu0 0
        %1090 = vmatpush1.bf16.msra.mxu0 0
        %1091 = vmatprep.subr.bf16.mxu0 0
        %1092 = vmatpush1.bf16.msra.mxu0 0
        %1093 = vmatprep.subr.bf16.mxu0 0
        %1094 = vmatpush1.bf16.msra.mxu0 0
        %1095 = vmatprep.subr.bf16.mxu0 0
        %1096 = vmatpush1.bf16.msra.mxu0 0
        %1097 = vmatprep.subr.bf16.mxu0 0
        %1098 = vmatpush1.bf16.msra.mxu0 0
        %1099 = vmatprep.subr.bf16.mxu0 0
        %1100 = vmatpush1.bf16.msra.mxu0 0
        %1101 = vmatprep.subr.bf16.mxu0 0
        %1102 = vmatpush1.bf16.msra.mxu0 0
        %1103 = vmatprep.mubr.bf16.mxu0 0
        %1104 = vmatmul.mubr.bf16.gmra.mrb[0].mxu0 %v1066
        %v1105 = vpop.f32.mrb[0].mxu0
        %v1106 = vadd.f32 0.0, %v1105
        %v1107 = vpop.f32.mrb[0].mxu0
        %v1108 = vpop.f32.mrb[0].mxu0
        %v1109 = vpop.f32.mrb[0].mxu0
        %1110 = vdwg.mxu0
        %1112 = vrot.lane.b32.xlu0 %v995, 64
        %v1113 = vpop.permute.xlu0 %1112
        %1115 = vrot.lane.b32.xlu0 %v996, 64
        %v1116 = vpop.permute.xlu0 %1115
        %v1118 = vsel %vm1005, %v1113, 0
        %v1121 = vsel %vm1005, %v1116, 0
        %1123 = vmatprep.subr.bf16.mxu0 0
        %1124 = vmatpush1.bf16.xpose.msra.mxu0 %v1121
        %1125 = vmatprep.subr.bf16.mxu0 0
        %1126 = vmatpush1.bf16.xpose.msra.mxu0 0
        %1127 = vmatprep.subr.bf16.mxu0 0
        %1128 = vmatpush1.bf16.xpose.msra.mxu0 0
        %1129 = vmatprep.subr.bf16.mxu0 0
        %1130 = vmatpush1.bf16.xpose.msra.mxu0 0
        %1131 = vmatprep.subr.bf16.mxu0 0
        %1132 = vmatpush1.bf16.xpose.msra.mxu0 0
        %1133 = vmatprep.subr.bf16.mxu0 0
        %1134 = vmatpush1.bf16.xpose.msra.mxu0 0
        %1135 = vmatprep.subr.bf16.mxu0 0
        %1136 = vmatpush1.bf16.xpose.msra.mxu0 0
        %1137 = vmatprep.subr.bf16.mxu0 0
        %1138 = vmatpush1.bf16.xpose.msra.mxu0 0
        %1139 = vmatprep.subr.bf16.mxu0 0
        %1140 = vmatpush1.bf16.xpose.msra.mxu0 0
        %1141 = vmatprep.subr.bf16.mxu0 0
        %1142 = vmatpush1.bf16.xpose.msra.mxu0 0
        %1143 = vmatprep.subr.bf16.mxu0 0
        %1144 = vmatpush1.bf16.xpose.msra.mxu0 0
        %1145 = vmatprep.subr.bf16.mxu0 0
        %1146 = vmatpush1.bf16.xpose.msra.mxu0 0
        %1147 = vmatprep.subr.bf16.mxu0 0
        %1148 = vmatpush1.bf16.xpose.msra.mxu0 0
        %1149 = vmatprep.subr.bf16.mxu0 0
        %1150 = vmatpush1.bf16.xpose.msra.mxu0 0
        %1151 = vmatprep.subr.bf16.mxu0 0
        %1152 = vmatpush1.bf16.xpose.msra.mxu0 0
        %1153 = vmatprep.subr.bf16.mxu0 0
        %1154 = vmatpush1.bf16.xpose.msra.mxu0 0
        %1155 = vmatprep.mubr.bf16.mxu0 0
        %1156 = vmatmul.mubr.bf16.gmra.mrb[0].mxu0 %v1118
        %v1157 = vpop.f32.mrb[0].mxu0
        %v1158 = vadd.f32 %v1003, %v1157
        %v1159 = vpop.f32.mrb[0].mxu0
        %v1160 = vpop.f32.mrb[0].mxu0
        %v1161 = vpop.f32.mrb[0].mxu0
        %1162 = vdwg.mxu0
        %v1163 = vsel %vm1052, %v1158, -inf
        %1164 = vmax.xlane.f32.xlu0 %v1163
        %v1165 = vpop.xlane.xlu0 %1164
        %v1166 = vsub.f32 %v1158, %v1165
        %v1167 = vmul.f32 %v1166, 1.442695
        %v1168 = vpow.pop %v1167
        %v1169 = vsel %vm1052, %v1168, 0.0
        %1170 = vadd.xlane.f32.xlu0 %v1169
        %v1171 = vpop.xlane.xlu0 %1170
        %v1172 = vrcp.pop %v1171
        %v1173 = vmul.f32 %v1168, %v1172
        %v1174 = vpack.c.bf16 %v1173, %v1173
        %1176 = vrot.lane.b32.xlu0 %v997, 64
        %v1177 = vpop.permute.xlu0 %1176
        %v1179 = vsel %vm1052, %v1174, 0
        %v1182 = vsel %vm683, %v1177, 0
        %1184 = vmatprep.subr.bf16.mxu0 0
        %1185 = vmatpush1.bf16.msra.mxu0 %v1182
        %1186 = vmatprep.subr.bf16.mxu0 0
        %1187 = vmatpush1.bf16.msra.mxu0 0
        %1188 = vmatprep.subr.bf16.mxu0 0
        %1189 = vmatpush1.bf16.msra.mxu0 0
        %1190 = vmatprep.subr.bf16.mxu0 0
        %1191 = vmatpush1.bf16.msra.mxu0 0
        %1192 = vmatprep.subr.bf16.mxu0 0
        %1193 = vmatpush1.bf16.msra.mxu0 0
        %1194 = vmatprep.subr.bf16.mxu0 0
        %1195 = vmatpush1.bf16.msra.mxu0 0
        %1196 = vmatprep.subr.bf16.mxu0 0
        %1197 = vmatpush1.bf16.msra.mxu0 0
        %1198 = vmatprep.subr.bf16.mxu0 0
        %1199 = vmatpush1.bf16.msra.mxu0 0
        %1200 = vmatprep.subr.bf16.mxu0 0
        %1201 = vmatpush1.bf16.msra.mxu0 0
        %1202 = vmatprep.subr.bf16.mxu0 0
        %1203 = vmatpush1.bf16.msra.mxu0 0
        %1204 = vmatprep.subr.bf16.mxu0 0
        %1205 = vmatpush1.bf16.msra.mxu0 0
        %1206 = vmatprep.subr.bf16.mxu0 0
        %1207 = vmatpush1.bf16.msra.mxu0 0
        %1208 = vmatprep.subr.bf16.mxu0 0
        %1209 = vmatpush1.bf16.msra.mxu0 0
        %1210 = vmatprep.subr.bf16.mxu0 0
        %1211 = vmatpush1.bf16.msra.mxu0 0
        %1212 = vmatprep.subr.bf16.mxu0 0
        %1213 = vmatpush1.bf16.msra.mxu0 0
        %1214 = vmatprep.subr.bf16.mxu0 0
        %1215 = vmatpush1.bf16.msra.mxu0 0
        %1216 = vmatprep.mubr.bf16.mxu0 0
        %1217 = vmatmul.mubr.bf16.gmra.mrb[0].mxu0 %v1179
        %v1218 = vpop.f32.mrb[0].mxu0
        %v1219 = vadd.f32 0.0, %v1218
        %v1220 = vpop.f32.mrb[0].mxu0
        %v1221 = vpop.f32.mrb[0].mxu0
        %v1222 = vpop.f32.mrb[0].mxu0
        %1223 = vdwg.mxu0
        %1225 = vrot.lane.b32.xlu0 %v1219, 64
        %v1226 = vpop.permute.xlu0 %1225
        %v1228 = vsel %vm1005, %v1106, %v1226
        %v1229 = vpack.c.bf16 %v950, %v950
        %v1230 = vpack.c.bf16 %v952, %v952
        %v1231 = vpack.c.bf16 %v992, %v992
        %s1232 = scalar_lea.vmem %s648, 1
        %v1233 = vld [vmem:[%s1232] sm:$0x1]
        %v1235 = vlaneseq
        %v1236 = vshrl.u32 %v1235, 7
        %v1237 = vsub.s32 0, %v1236
        %v1238 = vrot.slane %v1233, %v1237
        %v1241 = vsel %vm1005, %v1229, 0
        %v1244 = vsel %vm1005, %v1230, 0
        %1246 = vmatprep.subr.bf16.mxu0 0
        %1247 = vmatpush1.bf16.xpose.msra.mxu0 %v1244
        %1248 = vmatprep.subr.bf16.mxu0 0
        %1249 = vmatpush1.bf16.xpose.msra.mxu0 0
        %1250 = vmatprep.subr.bf16.mxu0 0
        %1251 = vmatpush1.bf16.xpose.msra.mxu0 0
        %1252 = vmatprep.subr.bf16.mxu0 0
        %1253 = vmatpush1.bf16.xpose.msra.mxu0 0
        %1254 = vmatprep.subr.bf16.mxu0 0
        %1255 = vmatpush1.bf16.xpose.msra.mxu0 0
        %1256 = vmatprep.subr.bf16.mxu0 0
        %1257 = vmatpush1.bf16.xpose.msra.mxu0 0
        %1258 = vmatprep.subr.bf16.mxu0 0
        %1259 = vmatpush1.bf16.xpose.msra.mxu0 0
        %1260 = vmatprep.subr.bf16.mxu0 0
        %1261 = vmatpush1.bf16.xpose.msra.mxu0 0
        %1262 = vmatprep.subr.bf16.mxu0 0
        %1263 = vmatpush1.bf16.xpose.msra.mxu0 0
        %1264 = vmatprep.subr.bf16.mxu0 0
        %1265 = vmatpush1.bf16.xpose.msra.mxu0 0
        %1266 = vmatprep.subr.bf16.mxu0 0
        %1267 = vmatpush1.bf16.xpose.msra.mxu0 0
        %1268 = vmatprep.subr.bf16.mxu0 0
        %1269 = vmatpush1.bf16.xpose.msra.mxu0 0
        %1270 = vmatprep.subr.bf16.mxu0 0
        %1271 = vmatpush1.bf16.xpose.msra.mxu0 0
        %1272 = vmatprep.subr.bf16.mxu0 0
        %1273 = vmatpush1.bf16.xpose.msra.mxu0 0
        %1274 = vmatprep.subr.bf16.mxu0 0
        %1275 = vmatpush1.bf16.xpose.msra.mxu0 0
        %1276 = vmatprep.subr.bf16.mxu0 0
        %1277 = vmatpush1.bf16.xpose.msra.mxu0 0
        %1278 = vmatprep.mubr.bf16.mxu0 0
        %1279 = vmatmul.mubr.bf16.gmra.mrb[0].mxu0 %v1241
        %v1280 = vpop.f32.mrb[0].mxu0
        %v1281 = vadd.f32 %v1238, %v1280
        %v1282 = vpop.f32.mrb[0].mxu0
        %v1283 = vpop.f32.mrb[0].mxu0
        %v1284 = vpop.f32.mrb[0].mxu0
        %1285 = vdwg.mxu0
        %v1286 = vsel %vm1052, %v1281, -inf
        %1287 = vmax.xlane.f32.xlu0 %v1286
        %v1288 = vpop.xlane.xlu0 %1287
        %v1289 = vsub.f32 %v1281, %v1288
        %v1290 = vmul.f32 %v1289, 1.442695
        %v1291 = vpow.pop %v1290
        %v1292 = vsel %vm1052, %v1291, 0.0
        %1293 = vadd.xlane.f32.xlu0 %v1292
        %v1294 = vpop.xlane.xlu0 %1293
        %v1295 = vrcp.pop %v1294
        %v1296 = vmul.f32 %v1291, %v1295
        %v1297 = vpack.c.bf16 %v1296, %v1296
        %v1299 = vsel %vm1052, %v1297, 0
        %v1302 = vsel %vm683, %v1231, 0
        %1304 = vmatprep.subr.bf16.mxu0 0
        %1305 = vmatpush1.bf16.msra.mxu0 %v1302
        %1306 = vmatprep.subr.bf16.mxu0 0
        %1307 = vmatpush1.bf16.msra.mxu0 0
        %1308 = vmatprep.subr.bf16.mxu0 0
        %1309 = vmatpush1.bf16.msra.mxu0 0
        %1310 = vmatprep.subr.bf16.mxu0 0
        %1311 = vmatpush1.bf16.msra.mxu0 0
        %1312 = vmatprep.subr.bf16.mxu0 0
        %1313 = vmatpush1.bf16.msra.mxu0 0
        %1314 = vmatprep.subr.bf16.mxu0 0
        %1315 = vmatpush1.bf16.msra.mxu0 0
        %1316 = vmatprep.subr.bf16.mxu0 0
        %1317 = vmatpush1.bf16.msra.mxu0 0
        %1318 = vmatprep.subr.bf16.mxu0 0
        %1319 = vmatpush1.bf16.msra.mxu0 0
        %1320 = vmatprep.subr.bf16.mxu0 0
        %1321 = vmatpush1.bf16.msra.mxu0 0
        %1322 = vmatprep.subr.bf16.mxu0 0
        %1323 = vmatpush1.bf16.msra.mxu0 0
        %1324 = vmatprep.subr.bf16.mxu0 0
        %1325 = vmatpush1.bf16.msra.mxu0 0
        %1326 = vmatprep.subr.bf16.mxu0 0
        %1327 = vmatpush1.bf16.msra.mxu0 0
        %1328 = vmatprep.subr.bf16.mxu0 0
        %1329 = vmatpush1.bf16.msra.mxu0 0
        %1330 = vmatprep.subr.bf16.mxu0 0
        %1331 = vmatpush1.bf16.msra.mxu0 0
        %1332 = vmatprep.subr.bf16.mxu0 0
        %1333 = vmatpush1.bf16.msra.mxu0 0
        %1334 = vmatprep.subr.bf16.mxu0 0
        %1335 = vmatpush1.bf16.msra.mxu0 0
        %1336 = vmatprep.mubr.bf16.mxu0 0
        %1337 = vmatmul.mubr.bf16.gmra.mrb[0].mxu0 %v1299
        %v1338 = vpop.f32.mrb[0].mxu0
        %v1339 = vadd.f32 0.0, %v1338
        %v1340 = vpop.f32.mrb[0].mxu0
        %v1341 = vpop.f32.mrb[0].mxu0
        %v1342 = vpop.f32.mrb[0].mxu0
        %1343 = vdwg.mxu0
        %1345 = vrot.lane.b32.xlu0 %v1229, 64
        %v1346 = vpop.permute.xlu0 %1345
        %1348 = vrot.lane.b32.xlu0 %v1230, 64
        %v1349 = vpop.permute.xlu0 %1348
        %v1351 = vsel %vm1005, %v1346, 0
        %v1354 = vsel %vm1005, %v1349, 0
        %1356 = vmatprep.subr.bf16.mxu0 0
        %1357 = vmatpush1.bf16.xpose.msra.mxu0 %v1354
        %1358 = vmatprep.subr.bf16.mxu0 0
        %1359 = vmatpush1.bf16.xpose.msra.mxu0 0
        %1360 = vmatprep.subr.bf16.mxu0 0
        %1361 = vmatpush1.bf16.xpose.msra.mxu0 0
        %1362 = vmatprep.subr.bf16.mxu0 0
        %1363 = vmatpush1.bf16.xpose.msra.mxu0 0
        %1364 = vmatprep.subr.bf16.mxu0 0
        %1365 = vmatpush1.bf16.xpose.msra.mxu0 0
        %1366 = vmatprep.subr.bf16.mxu0 0
        %1367 = vmatpush1.bf16.xpose.msra.mxu0 0
        %1368 = vmatprep.subr.bf16.mxu0 0
        %1369 = vmatpush1.bf16.xpose.msra.mxu0 0
        %1370 = vmatprep.subr.bf16.mxu0 0
        %1371 = vmatpush1.bf16.xpose.msra.mxu0 0
        %1372 = vmatprep.subr.bf16.mxu0 0
        %1373 = vmatpush1.bf16.xpose.msra.mxu0 0
        %1374 = vmatprep.subr.bf16.mxu0 0
        %1375 = vmatpush1.bf16.xpose.msra.mxu0 0
        %1376 = vmatprep.subr.bf16.mxu0 0
        %1377 = vmatpush1.bf16.xpose.msra.mxu0 0
        %1378 = vmatprep.subr.bf16.mxu0 0
        %1379 = vmatpush1.bf16.xpose.msra.mxu0 0
        %1380 = vmatprep.subr.bf16.mxu0 0
        %1381 = vmatpush1.bf16.xpose.msra.mxu0 0
        %1382 = vmatprep.subr.bf16.mxu0 0
        %1383 = vmatpush1.bf16.xpose.msra.mxu0 0
        %1384 = vmatprep.subr.bf16.mxu0 0
        %1385 = vmatpush1.bf16.xpose.msra.mxu0 0
        %1386 = vmatprep.subr.bf16.mxu0 0
        %1387 = vmatpush1.bf16.xpose.msra.mxu0 0
        %1388 = vmatprep.mubr.bf16.mxu0 0
        %1389 = vmatmul.mubr.bf16.gmra.mrb[0].mxu0 %v1351
        %v1390 = vpop.f32.mrb[0].mxu0
        %v1391 = vadd.f32 %v1238, %v1390
        %v1392 = vpop.f32.mrb[0].mxu0
        %v1393 = vpop.f32.mrb[0].mxu0
        %v1394 = vpop.f32.mrb[0].mxu0
        %1395 = vdwg.mxu0
        %v1396 = vsel %vm1052, %v1391, -inf
        %1397 = vmax.xlane.f32.xlu0 %v1396
        %v1398 = vpop.xlane.xlu0 %1397
        %v1399 = vsub.f32 %v1391, %v1398
        %v1400 = vmul.f32 %v1399, 1.442695
        %v1401 = vpow.pop %v1400
        %v1402 = vsel %vm1052, %v1401, 0.0
        %1403 = vadd.xlane.f32.xlu0 %v1402
        %v1404 = vpop.xlane.xlu0 %1403
        %v1405 = vrcp.pop %v1404
        %v1406 = vmul.f32 %v1401, %v1405
        %v1407 = vpack.c.bf16 %v1406, %v1406
        %1409 = vrot.lane.b32.xlu0 %v1231, 64
        %v1410 = vpop.permute.xlu0 %1409
        %v1412 = vsel %vm1052, %v1407, 0
        %v1415 = vsel %vm683, %v1410, 0
        %1417 = vmatprep.subr.bf16.mxu0 0
        %1418 = vmatpush1.bf16.msra.mxu0 %v1415
        %1419 = vmatprep.subr.bf16.mxu0 0
        %1420 = vmatpush1.bf16.msra.mxu0 0
        %1421 = vmatprep.subr.bf16.mxu0 0
        %1422 = vmatpush1.bf16.msra.mxu0 0
        %1423 = vmatprep.subr.bf16.mxu0 0
        %1424 = vmatpush1.bf16.msra.mxu0 0
        %1425 = vmatprep.subr.bf16.mxu0 0
        %1426 = vmatpush1.bf16.msra.mxu0 0
        %1427 = vmatprep.subr.bf16.mxu0 0
        %1428 = vmatpush1.bf16.msra.mxu0 0
        %1429 = vmatprep.subr.bf16.mxu0 0
        %1430 = vmatpush1.bf16.msra.mxu0 0
        %1431 = vmatprep.subr.bf16.mxu0 0
        %1432 = vmatpush1.bf16.msra.mxu0 0
        %1433 = vmatprep.subr.bf16.mxu0 0
        %1434 = vmatpush1.bf16.msra.mxu0 0
        %1435 = vmatprep.subr.bf16.mxu0 0
        %1436 = vmatpush1.bf16.msra.mxu0 0
        %1437 = vmatprep.subr.bf16.mxu0 0
        %1438 = vmatpush1.bf16.msra.mxu0 0
        %1439 = vmatprep.subr.bf16.mxu0 0
        %1440 = vmatpush1.bf16.msra.mxu0 0
        %1441 = vmatprep.subr.bf16.mxu0 0
        %1442 = vmatpush1.bf16.msra.mxu0 0
        %1443 = vmatprep.subr.bf16.mxu0 0
        %1444 = vmatpush1.bf16.msra.mxu0 0
        %1445 = vmatprep.subr.bf16.mxu0 0
        %1446 = vmatpush1.bf16.msra.mxu0 0
        %1447 = vmatprep.subr.bf16.mxu0 0
        %1448 = vmatpush1.bf16.msra.mxu0 0
        %1449 = vmatprep.mubr.bf16.mxu0 0
        %1450 = vmatmul.mubr.bf16.gmra.mrb[0].mxu0 %v1412
        %v1451 = vpop.f32.mrb[0].mxu0
        %v1452 = vadd.f32 0.0, %v1451
        %v1453 = vpop.f32.mrb[0].mxu0
        %v1454 = vpop.f32.mrb[0].mxu0
        %v1455 = vpop.f32.mrb[0].mxu0
        %1456 = vdwg.mxu0
        %1458 = vrot.lane.b32.xlu0 %v1452, 64
        %v1459 = vpop.permute.xlu0 %1458
        %v1461 = vsel %vm1005, %v1339, %v1459
        %v1462 = vpack.c.bf16 %v1461, %v1228
        %v1463 = vld [vmem:[#allocation5] sm:$0xf]
        %v1464 = vld [vmem:[#allocation5 + $0x4] sm:$0xf]
        %v1465 = vld [vmem:[#allocation5 + $0x8] sm:$0xf]
        %v1466 = vld [vmem:[#allocation5 + $0xc] sm:$0xf]
        %v1467 = vld [vmem:[#allocation5 + $0x10] sm:$0xf]
        %v1468 = vld [vmem:[#allocation5 + $0x14] sm:$0xf]
        %v1469 = vld [vmem:[#allocation5 + $0x18] sm:$0xf]
        %v1470 = vld [vmem:[#allocation5 + $0x1c] sm:$0xf]
        %v1471 = vld [vmem:[#allocation5 + $0x20] sm:$0xf]
        %v1472 = vld [vmem:[#allocation5 + $0x24] sm:$0xf]
        %v1473 = vld [vmem:[#allocation5 + $0x28] sm:$0xf]
        %v1474 = vld [vmem:[#allocation5 + $0x2c] sm:$0xf]
        %v1475 = vld [vmem:[#allocation5 + $0x30] sm:$0xf]
        %v1476 = vld [vmem:[#allocation5 + $0x34] sm:$0xf]
        %v1477 = vld [vmem:[#allocation5 + $0x38] sm:$0xf]
        %v1478 = vld [vmem:[#allocation5 + $0x3c] sm:$0xf]
        %v1479 = vlaneseq
        %v1480 = vshrl.u32 %v1479, 7
        %v1481 = vsub.s32 0, %v1480
        %v1482 = vrot.slane %v732, %v1481
        %v1499 = vunpack.c.l.b16 %v1463
        %v1500 = vunpack.c.l.b16 %v1464
        %v1501 = vunpack.c.l.b16 %v1465
        %v1502 = vunpack.c.l.b16 %v1466
        %v1503 = vunpack.c.l.b16 %v1467
        %v1504 = vunpack.c.l.b16 %v1468
        %v1505 = vunpack.c.l.b16 %v1469
        %v1506 = vunpack.c.l.b16 %v1470
        %v1507 = vunpack.c.l.b16 %v1471
        %v1508 = vunpack.c.l.b16 %v1472
        %v1509 = vunpack.c.l.b16 %v1473
        %v1510 = vunpack.c.l.b16 %v1474
        %v1511 = vunpack.c.l.b16 %v1475
        %v1512 = vunpack.c.l.b16 %v1476
        %v1513 = vunpack.c.l.b16 %v1477
        %v1514 = vunpack.c.l.b16 %v1478
        %v1515 = vpack.c.b16 %v1500, %v1499
        %v1516 = vpack.c.b16 %v1502, %v1501
        %v1517 = vpack.c.b16 %v1504, %v1503
        %v1518 = vpack.c.b16 %v1506, %v1505
        %v1519 = vpack.c.b16 %v1508, %v1507
        %v1520 = vpack.c.b16 %v1510, %v1509
        %v1521 = vpack.c.b16 %v1512, %v1511
        %v1522 = vpack.c.b16 %v1514, %v1513
        %1531 = vmatprep.subr.bf16.mxu0 0
        %1532 = vmatpush1.bf16.msra.mxu0 %v1515
        %1533 = vmatprep.subr.bf16.mxu0 0
        %1534 = vmatpush1.bf16.msra.mxu0 %v1516
        %1535 = vmatprep.subr.bf16.mxu0 0
        %1536 = vmatpush1.bf16.msra.mxu0 %v1517
        %1537 = vmatprep.subr.bf16.mxu0 0
        %1538 = vmatpush1.bf16.msra.mxu0 %v1518
        %1539 = vmatprep.subr.bf16.mxu0 0
        %1540 = vmatpush1.bf16.msra.mxu0 %v1519
        %1541 = vmatprep.subr.bf16.mxu0 0
        %1542 = vmatpush1.bf16.msra.mxu0 %v1520
        %1543 = vmatprep.subr.bf16.mxu0 0
        %1544 = vmatpush1.bf16.msra.mxu0 %v1521
        %1545 = vmatprep.subr.bf16.mxu0 0
        %1546 = vmatpush1.bf16.msra.mxu0 %v1522
        %1547 = vmatprep.subr.bf16.mxu0 0
        %1548 = vmatpush1.bf16.msra.mxu0 0
        %1549 = vmatprep.subr.bf16.mxu0 0
        %1550 = vmatpush1.bf16.msra.mxu0 0
        %1551 = vmatprep.subr.bf16.mxu0 0
        %1552 = vmatpush1.bf16.msra.mxu0 0
        %1553 = vmatprep.subr.bf16.mxu0 0
        %1554 = vmatpush1.bf16.msra.mxu0 0
        %1555 = vmatprep.subr.bf16.mxu0 0
        %1556 = vmatpush1.bf16.msra.mxu0 0
        %1557 = vmatprep.subr.bf16.mxu0 0
        %1558 = vmatpush1.bf16.msra.mxu0 0
        %1559 = vmatprep.subr.bf16.mxu0 0
        %1560 = vmatpush1.bf16.msra.mxu0 0
        %1561 = vmatprep.subr.bf16.mxu0 0
        %1562 = vmatpush1.bf16.msra.mxu0 0
        %1563 = vmatprep.mubr.bf16.mxu0 0
        %1564 = vmatmul.mubr.bf16.gmra.mrb[0].mxu0 %v1462
        %v1565 = vpop.f32.mrb[0].mxu0
        %v1566 = vadd.f32 %v1482, %v1565
        %v1567 = vpop.f32.mrb[0].mxu0
        %v1568 = vpop.f32.mrb[0].mxu0
        %v1569 = vadd.f32 %v1482, %v1568
        %v1570 = vpop.f32.mrb[0].mxu0
        %1571 = vdwg.mxu0
        %v1572 = vadd.f32 %v730, %v1566
        %v1573 = vadd.f32 %v731, %v1569
        %1574 = vadd.xlane.f32.xlu0 %v1572
        %v1575 = vpop.xlane.xlu0 %1574
        %1576 = vadd.xlane.f32.xlu0 %v1573
        %v1577 = vpop.xlane.xlu0 %1576
        %v1578 = vrcp.pop 128.0
        %v1579 = vmul.f32 %v1575, %v1578
        %v1580 = vmul.f32 %v1577, %v1578
        %v1581 = vsub.f32 %v1572, %v1579
        %v1582 = vsub.f32 %v1573, %v1580
        %v1583 = vmul.f32 %v1581, %v1581
        %v1584 = vmul.f32 %v1582, %v1582
        %1585 = vadd.xlane.f32.xlu0 %v1583
        %v1586 = vpop.xlane.xlu0 %1585
        %1587 = vadd.xlane.f32.xlu0 %v1584
        %v1588 = vpop.xlane.xlu0 %1587
        %v1589 = vmul.f32 %v1586, %v1578
        %v1590 = vmul.f32 %v1588, %v1578
        %v1591 = vadd.f32 %v1589, 1e-05
        %v1592 = vadd.f32 %v1590, 1e-05
        %v1593 = vrsqrt.pop %v1591
        %v1594 = vrsqrt.pop %v1592
        %v1595 = vmul.f32 %v1581, %v1593
        %v1596 = vmul.f32 %v1582, %v1594
        %v1597 = vlaneseq
        %v1598 = vshrl.u32 %v1597, 7
        %v1599 = vsub.s32 1, %v1598
        %v1600 = vrot.slane %v732, %v1599
        %v1601 = vmul.f32 %v1595, %v1600
        %v1602 = vmul.f32 %v1596, %v1600
        %v1603 = vlaneseq
        %v1604 = vshrl.u32 %v1603, 7
        %v1605 = vsub.s32 2, %v1604
        %v1606 = vrot.slane %v732, %v1605
        %v1607 = vadd.f32 %v1601, %v1606
        %v1608 = vadd.f32 %v1602, %v1606
        %v1609 = vpack.c.bf16 %v1608, %v1607
        %v1610 = vld [vmem:[#allocation7] sm:$0xff]
        %v1611 = vld [vmem:[#allocation7 + $0x8] sm:$0xff]
        %v1612 = vld [vmem:[#allocation7 + $0x10] sm:$0xff]
        %v1613 = vld [vmem:[#allocation7 + $0x18] sm:$0xff]
        %v1614 = vld [vmem:[#allocation7 + $0x20] sm:$0xff]
        %v1615 = vld [vmem:[#allocation7 + $0x28] sm:$0xff]
        %v1616 = vld [vmem:[#allocation7 + $0x30] sm:$0xff]
        %v1617 = vld [vmem:[#allocation7 + $0x38] sm:$0xff]
        %v1618 = vld [vmem:[#allocation7 + $0x40] sm:$0xff]
        %v1619 = vld [vmem:[#allocation7 + $0x48] sm:$0xff]
        %v1620 = vld [vmem:[#allocation7 + $0x50] sm:$0xff]
        %v1621 = vld [vmem:[#allocation7 + $0x58] sm:$0xff]
        %v1622 = vld [vmem:[#allocation7 + $0x60] sm:$0xff]
        %v1623 = vld [vmem:[#allocation7 + $0x68] sm:$0xff]
        %v1624 = vld [vmem:[#allocation7 + $0x70] sm:$0xff]
        %v1625 = vld [vmem:[#allocation7 + $0x78] sm:$0xff]
        %v1626 = vld [vmem:[%s9] sm:$0x3]
        %v1628 = vlaneseq
        %v1629 = vshrl.u32 %v1628, 7
        %v1630 = vsub.s32 0, %v1629
        %v1631 = vrot.slane %v1626, %v1630
        %v1632 = vlaneseq
        %v1633 = vshrl.u32 %v1632, 7
        %v1634 = vsub.s32 1, %v1633
        %v1635 = vrot.slane %v1626, %v1634
        %v1654 = vunpack.c.l.b16 %v1610
        %v1655 = vunpack.c.h.b16 %v1610
        %v1656 = vunpack.c.l.b16 %v1611
        %v1657 = vunpack.c.h.b16 %v1611
        %v1658 = vunpack.c.l.b16 %v1612
        %v1659 = vunpack.c.h.b16 %v1612
        %v1660 = vunpack.c.l.b16 %v1613
        %v1661 = vunpack.c.h.b16 %v1613
        %v1662 = vunpack.c.l.b16 %v1614
        %v1663 = vunpack.c.h.b16 %v1614
        %v1664 = vunpack.c.l.b16 %v1615
        %v1665 = vunpack.c.h.b16 %v1615
        %v1666 = vunpack.c.l.b16 %v1616
        %v1667 = vunpack.c.h.b16 %v1616
        %v1668 = vunpack.c.l.b16 %v1617
        %v1669 = vunpack.c.h.b16 %v1617
        %v1670 = vunpack.c.l.b16 %v1618
        %v1671 = vunpack.c.h.b16 %v1618
        %v1672 = vunpack.c.l.b16 %v1619
        %v1673 = vunpack.c.h.b16 %v1619
        %v1674 = vunpack.c.l.b16 %v1620
        %v1675 = vunpack.c.h.b16 %v1620
        %v1676 = vunpack.c.l.b16 %v1621
        %v1677 = vunpack.c.h.b16 %v1621
        %v1678 = vunpack.c.l.b16 %v1622
        %v1679 = vunpack.c.h.b16 %v1622
        %v1680 = vunpack.c.l.b16 %v1623
        %v1681 = vunpack.c.h.b16 %v1623
        %v1682 = vunpack.c.l.b16 %v1624
        %v1683 = vunpack.c.h.b16 %v1624
        %v1684 = vunpack.c.l.b16 %v1625
        %v1685 = vunpack.c.h.b16 %v1625
        %v1686 = vpack.c.b16 %v1656, %v1654
        %v1687 = vpack.c.b16 %v1657, %v1655
        %v1688 = vpack.c.b16 %v1660, %v1658
        %v1689 = vpack.c.b16 %v1661, %v1659
        %v1690 = vpack.c.b16 %v1664, %v1662
        %v1691 = vpack.c.b16 %v1665, %v1663
        %v1692 = vpack.c.b16 %v1668, %v1666
        %v1693 = vpack.c.b16 %v1669, %v1667
        %v1694 = vpack.c.b16 %v1672, %v1670
        %v1695 = vpack.c.b16 %v1673, %v1671
        %v1696 = vpack.c.b16 %v1676, %v1674
        %v1697 = vpack.c.b16 %v1677, %v1675
        %v1698 = vpack.c.b16 %v1680, %v1678
        %v1699 = vpack.c.b16 %v1681, %v1679
        %v1700 = vpack.c.b16 %v1684, %v1682
        %v1701 = vpack.c.b16 %v1685, %v1683
        %1718 = vmatprep.subr.bf16.mxu0 %v1687
        %1719 = vmatpush1.bf16.msra.mxu0 %v1686
        %1720 = vmatprep.subr.bf16.mxu0 %v1689
        %1721 = vmatpush1.bf16.msra.mxu0 %v1688
        %1722 = vmatprep.subr.bf16.mxu0 %v1691
        %1723 = vmatpush1.bf16.msra.mxu0 %v1690
        %1724 = vmatprep.subr.bf16.mxu0 %v1693
        %1725 = vmatpush1.bf16.msra.mxu0 %v1692
        %1726 = vmatprep.subr.bf16.mxu0 %v1695
        %1727 = vmatpush1.bf16.msra.mxu0 %v1694
        %1728 = vmatprep.subr.bf16.mxu0 %v1697
        %1729 = vmatpush1.bf16.msra.mxu0 %v1696
        %1730 = vmatprep.subr.bf16.mxu0 %v1699
        %1731 = vmatpush1.bf16.msra.mxu0 %v1698
        %1732 = vmatprep.subr.bf16.mxu0 %v1701
        %1733 = vmatpush1.bf16.msra.mxu0 %v1700
        %1734 = vmatprep.subr.bf16.mxu0 0
        %1735 = vmatpush1.bf16.msra.mxu0 0
        %1736 = vmatprep.subr.bf16.mxu0 0
        %1737 = vmatpush1.bf16.msra.mxu0 0
        %1738 = vmatprep.subr.bf16.mxu0 0
        %1739 = vmatpush1.bf16.msra.mxu0 0
        %1740 = vmatprep.subr.bf16.mxu0 0
        %1741 = vmatpush1.bf16.msra.mxu0 0
        %1742 = vmatprep.subr.bf16.mxu0 0
        %1743 = vmatpush1.bf16.msra.mxu0 0
        %1744 = vmatprep.subr.bf16.mxu0 0
        %1745 = vmatpush1.bf16.msra.mxu0 0
        %1746 = vmatprep.subr.bf16.mxu0 0
        %1747 = vmatpush1.bf16.msra.mxu0 0
        %1748 = vmatprep.subr.bf16.mxu0 0
        %1749 = vmatpush1.bf16.msra.mxu0 0
        %1750 = vmatprep.mubr.bf16.mxu0 0
        %1751 = vmatmul.mubr.bf16.gmra.mrb[0].mxu0 %v1609
        %v1752 = vpop.f32.mrb[0].mxu0
        %v1753 = vadd.f32 %v1631, %v1752
        %v1754 = vpop.f32.mrb[0].mxu0
        %v1755 = vadd.f32 %v1635, %v1754
        %v1756 = vpop.f32.mrb[0].mxu0
        %v1757 = vadd.f32 %v1631, %v1756
        %v1758 = vpop.f32.mrb[0].mxu0
        %v1759 = vadd.f32 %v1635, %v1758
        %1760 = vdwg.mxu0
        %v1761 = vmul.f32 %v1753, 0.5
        %v1762 = vmul.f32 %v1755, 0.5
        %v1763 = vmul.f32 %v1757, 0.5
        %v1764 = vmul.f32 %v1759, 0.5
        %v1765 = vmul.f32 %v1753, %v1753
        %v1766 = vmul.f32 %v1755, %v1755
        %v1767 = vmul.f32 %v1757, %v1757
        %v1768 = vmul.f32 %v1759, %v1759
        %v1769 = vmul.f32 %v1765, %v1753
        %v1770 = vmul.f32 %v1766, %v1755
        %v1771 = vmul.f32 %v1767, %v1757
        %v1772 = vmul.f32 %v1768, %v1759
        %v1773 = vmul.f32 %v1769, 0.044715
        %v1774 = vmul.f32 %v1770, 0.044715
        %v1775 = vmul.f32 %v1771, 0.044715
        %v1776 = vmul.f32 %v1772, 0.044715
        %v1777 = vadd.f32 %v1753, %v1773
        %v1778 = vadd.f32 %v1755, %v1774
        %v1779 = vadd.f32 %v1757, %v1775
        %v1780 = vadd.f32 %v1759, %v1776
        %v1781 = vmul.f32 %v1777, 0.7978846
        %v1782 = vmul.f32 %v1778, 0.7978846
        %v1783 = vmul.f32 %v1779, 0.7978846
        %v1784 = vmul.f32 %v1780, 0.7978846
        %v1785 = vtanh.pop %v1781
        %v1786 = vtanh.pop %v1782
        %v1787 = vtanh.pop %v1783
        %v1788 = vtanh.pop %v1784
        %v1789 = vadd.f32 %v1785, 1.0
        %v1790 = vadd.f32 %v1786, 1.0
        %v1791 = vadd.f32 %v1787, 1.0
        %v1792 = vadd.f32 %v1788, 1.0
        %v1793 = vmul.f32 %v1761, %v1789
        %v1794 = vmul.f32 %v1762, %v1790
        %v1795 = vmul.f32 %v1763, %v1791
        %v1796 = vmul.f32 %v1764, %v1792
        %v1797 = vpack.c.bf16 %v1795, %v1793
        %v1798 = vpack.c.bf16 %v1796, %v1794
        %v1799 = vld [vmem:[#allocation8] sm:$0xf]
        %v1800 = vld [vmem:[#allocation8 + $0x4] sm:$0xf]
        %v1801 = vld [vmem:[#allocation8 + $0x8] sm:$0xf]
        %v1802 = vld [vmem:[#allocation8 + $0xc] sm:$0xf]
        %v1803 = vld [vmem:[#allocation8 + $0x10] sm:$0xf]
        %v1804 = vld [vmem:[#allocation8 + $0x14] sm:$0xf]
        %v1805 = vld [vmem:[#allocation8 + $0x18] sm:$0xf]
        %v1806 = vld [vmem:[#allocation8 + $0x1c] sm:$0xf]
        %v1807 = vld [vmem:[#allocation8 + $0x20] sm:$0xf]
        %v1808 = vld [vmem:[#allocation8 + $0x24] sm:$0xf]
        %v1809 = vld [vmem:[#allocation8 + $0x28] sm:$0xf]
        %v1810 = vld [vmem:[#allocation8 + $0x2c] sm:$0xf]
        %v1811 = vld [vmem:[#allocation8 + $0x30] sm:$0xf]
        %v1812 = vld [vmem:[#allocation8 + $0x34] sm:$0xf]
        %v1813 = vld [vmem:[#allocation8 + $0x38] sm:$0xf]
        %v1814 = vld [vmem:[#allocation8 + $0x3c] sm:$0xf]
        %v1815 = vld [vmem:[#allocation8 + $0x40] sm:$0xf]
        %v1816 = vld [vmem:[#allocation8 + $0x44] sm:$0xf]
        %v1817 = vld [vmem:[#allocation8 + $0x48] sm:$0xf]
        %v1818 = vld [vmem:[#allocation8 + $0x4c] sm:$0xf]
        %v1819 = vld [vmem:[#allocation8 + $0x50] sm:$0xf]
        %v1820 = vld [vmem:[#allocation8 + $0x54] sm:$0xf]
        %v1821 = vld [vmem:[#allocation8 + $0x58] sm:$0xf]
        %v1822 = vld [vmem:[#allocation8 + $0x5c] sm:$0xf]
        %v1823 = vld [vmem:[#allocation8 + $0x60] sm:$0xf]
        %v1824 = vld [vmem:[#allocation8 + $0x64] sm:$0xf]
        %v1825 = vld [vmem:[#allocation8 + $0x68] sm:$0xf]
        %v1826 = vld [vmem:[#allocation8 + $0x6c] sm:$0xf]
        %v1827 = vld [vmem:[#allocation8 + $0x70] sm:$0xf]
        %v1828 = vld [vmem:[#allocation8 + $0x74] sm:$0xf]
        %v1829 = vld [vmem:[#allocation8 + $0x78] sm:$0xf]
        %v1830 = vld [vmem:[#allocation8 + $0x7c] sm:$0xf]
        %v1831 = vlaneseq
        %v1832 = vshrl.u32 %v1831, 7
        %v1833 = vsub.s32 3, %v1832
        %v1834 = vrot.slane %v732, %v1833
        %v1867 = vunpack.c.l.b16 %v1799
        %v1868 = vunpack.c.l.b16 %v1800
        %v1869 = vunpack.c.l.b16 %v1801
        %v1870 = vunpack.c.l.b16 %v1802
        %v1871 = vunpack.c.l.b16 %v1803
        %v1872 = vunpack.c.l.b16 %v1804
        %v1873 = vunpack.c.l.b16 %v1805
        %v1874 = vunpack.c.l.b16 %v1806
        %v1875 = vunpack.c.l.b16 %v1807
        %v1876 = vunpack.c.l.b16 %v1808
        %v1877 = vunpack.c.l.b16 %v1809
        %v1878 = vunpack.c.l.b16 %v1810
        %v1879 = vunpack.c.l.b16 %v1811
        %v1880 = vunpack.c.l.b16 %v1812
        %v1881 = vunpack.c.l.b16 %v1813
        %v1882 = vunpack.c.l.b16 %v1814
        %v1883 = vunpack.c.l.b16 %v1815
        %v1884 = vunpack.c.l.b16 %v1816
        %v1885 = vunpack.c.l.b16 %v1817
        %v1886 = vunpack.c.l.b16 %v1818
        %v1887 = vunpack.c.l.b16 %v1819
        %v1888 = vunpack.c.l.b16 %v1820
        %v1889 = vunpack.c.l.b16 %v1821
        %v1890 = vunpack.c.l.b16 %v1822
        %v1891 = vunpack.c.l.b16 %v1823
        %v1892 = vunpack.c.l.b16 %v1824
        %v1893 = vunpack.c.l.b16 %v1825
        %v1894 = vunpack.c.l.b16 %v1826
        %v1895 = vunpack.c.l.b16 %v1827
        %v1896 = vunpack.c.l.b16 %v1828
        %v1897 = vunpack.c.l.b16 %v1829
        %v1898 = vunpack.c.l.b16 %v1830
        %v1899 = vpack.c.b16 %v1868, %v1867
        %v1900 = vpack.c.b16 %v1870, %v1869
        %v1901 = vpack.c.b16 %v1872, %v1871
        %v1902 = vpack.c.b16 %v1874, %v1873
        %v1903 = vpack.c.b16 %v1876, %v1875
        %v1904 = vpack.c.b16 %v1878, %v1877
        %v1905 = vpack.c.b16 %v1880, %v1879
        %v1906 = vpack.c.b16 %v1882, %v1881
        %v1907 = vpack.c.b16 %v1884, %v1883
        %v1908 = vpack.c.b16 %v1886, %v1885
        %v1909 = vpack.c.b16 %v1888, %v1887
        %v1910 = vpack.c.b16 %v1890, %v1889
        %v1911 = vpack.c.b16 %v1892, %v1891
        %v1912 = vpack.c.b16 %v1894, %v1893
        %v1913 = vpack.c.b16 %v1896, %v1895
        %v1914 = vpack.c.b16 %v1898, %v1897
        %1931 = vmatprep.subr.bf16.mxu0 0
        %1932 = vmatpush1.bf16.msra.mxu0 %v1899
        %1933 = vmatprep.subr.bf16.mxu0 0
        %1934 = vmatpush1.bf16.msra.mxu0 %v1900
        %1935 = vmatprep.subr.bf16.mxu0 0
        %1936 = vmatpush1.bf16.msra.mxu0 %v1901
        %1937 = vmatprep.subr.bf16.mxu0 0
        %1938 = vmatpush1.bf16.msra.mxu0 %v1902
        %1939 = vmatprep.subr.bf16.mxu0 0
        %1940 = vmatpush1.bf16.msra.mxu0 %v1903
        %1941 = vmatprep.subr.bf16.mxu0 0
        %1942 = vmatpush1.bf16.msra.mxu0 %v1904
        %1943 = vmatprep.subr.bf16.mxu0 0
        %1944 = vmatpush1.bf16.msra.mxu0 %v1905
        %1945 = vmatprep.subr.bf16.mxu0 0
        %1946 = vmatpush1.bf16.msra.mxu0 %v1906
        %1947 = vmatprep.subr.bf16.mxu0 0
        %1948 = vmatpush1.bf16.msra.mxu0 %v1907
        %1949 = vmatprep.subr.bf16.mxu0 0
        %1950 = vmatpush1.bf16.msra.mxu0 %v1908
        %1951 = vmatprep.subr.bf16.mxu0 0
        %1952 = vmatpush1.bf16.msra.mxu0 %v1909
        %1953 = vmatprep.subr.bf16.mxu0 0
        %1954 = vmatpush1.bf16.msra.mxu0 %v1910
        %1955 = vmatprep.subr.bf16.mxu0 0
        %1956 = vmatpush1.bf16.msra.mxu0 %v1911
        %1957 = vmatprep.subr.bf16.mxu0 0
        %1958 = vmatpush1.bf16.msra.mxu0 %v1912
        %1959 = vmatprep.subr.bf16.mxu0 0
        %1960 = vmatpush1.bf16.msra.mxu0 %v1913
        %1961 = vmatprep.subr.bf16.mxu0 0
        %1962 = vmatpush1.bf16.msra.mxu0 %v1914
        %1963 = vmatprep.mubr.bf16.mxu0 %v1798
        %1964 = vmatmul.mubr.bf16.gmra.mrb[0].mxu0 %v1797
        %v1965 = vpop.f32.mrb[0].mxu0
        %v1966 = vadd.f32 %v1834, %v1965
        %v1967 = vpop.f32.mrb[0].mxu0
        %v1968 = vpop.f32.mrb[0].mxu0
        %v1969 = vadd.f32 %v1834, %v1968
        %v1970 = vpop.f32.mrb[0].mxu0
        %1971 = vdwg.mxu0
        %v1972 = vadd.f32 %v1607, %v1966
        %v1973 = vadd.f32 %v1608, %v1969
        %1974 = vadd.xlane.f32.xlu0 %v1972
        %v1975 = vpop.xlane.xlu0 %1974
        %1976 = vadd.xlane.f32.xlu0 %v1973
        %v1977 = vpop.xlane.xlu0 %1976
        %v1978 = vmul.f32 %v1975, %v1578
        %v1979 = vmul.f32 %v1977, %v1578
        %v1980 = vsub.f32 %v1972, %v1978
        %v1981 = vsub.f32 %v1973, %v1979
        %v1982 = vmul.f32 %v1980, %v1980
        %v1983 = vmul.f32 %v1981, %v1981
        %1984 = vadd.xlane.f32.xlu0 %v1982
        %v1985 = vpop.xlane.xlu0 %1984
        %1986 = vadd.xlane.f32.xlu0 %v1983
        %v1987 = vpop.xlane.xlu0 %1986
        %v1988 = vmul.f32 %v1985, %v1578
        %v1989 = vmul.f32 %v1987, %v1578
        %v1990 = vadd.f32 %v1988, 1e-05
        %v1991 = vadd.f32 %v1989, 1e-05
        %v1992 = vrsqrt.pop %v1990
        %v1993 = vrsqrt.pop %v1991
        %v1994 = vmul.f32 %v1980, %v1992
        %v1995 = vmul.f32 %v1981, %v1993
        %v1996 = vlaneseq
        %v1997 = vshrl.u32 %v1996, 7
        %v1998 = vsub.s32 4, %v1997
        %v1999 = vrot.slane %v732, %v1998
        %v2000 = vmul.f32 %v1994, %v1999
        %v2001 = vmul.f32 %v1995, %v1999
        %v2002 = vlaneseq
        %v2003 = vshrl.u32 %v2002, 7
        %v2004 = vsub.s32 5, %v2003
        %v2005 = vrot.slane %v732, %v2004
        %v2006 = vadd.f32 %v2000, %v2005
        %v2007 = vadd.f32 %v2001, %v2005
        %s2008 = scalar_lea.vmem %s11, 8
        %v2009 = vld [vmem:[%s2008] sm:$0x3f]
        %v2010 = vpack.c.bf16 %v2007, %v2006
        %s2011 = scalar_lea.vmem %s5, 192
        %v2012 = vld [vmem:[%s2011] sm:$0xff]
        %v2013 = vld [vmem:[%s2011 + $0x8] sm:$0xf]
        %v2014 = vld [vmem:[%s2011 + $0xc] sm:$0xff]
        %v2015 = vld [vmem:[%s2011 + $0x14] sm:$0xf]
        %v2016 = vld [vmem:[%s2011 + $0x18] sm:$0xff]
        %v2017 = vld [vmem:[%s2011 + $0x20] sm:$0xf]
        %v2018 = vld [vmem:[%s2011 + $0x24] sm:$0xff]
        %v2019 = vld [vmem:[%s2011 + $0x2c] sm:$0xf]
        %v2020 = vld [vmem:[%s2011 + $0x30] sm:$0xff]
        %v2021 = vld [vmem:[%s2011 + $0x38] sm:$0xf]
        %v2022 = vld [vmem:[%s2011 + $0x3c] sm:$0xff]
        %v2023 = vld [vmem:[%s2011 + $0x44] sm:$0xf]
        %v2024 = vld [vmem:[%s2011 + $0x48] sm:$0xff]
        %v2025 = vld [vmem:[%s2011 + $0x50] sm:$0xf]
        %v2026 = vld [vmem:[%s2011 + $0x54] sm:$0xff]
        %v2027 = vld [vmem:[%s2011 + $0x5c] sm:$0xf]
        %v2028 = vld [vmem:[%s2011 + $0x60] sm:$0xff]
        %v2029 = vld [vmem:[%s2011 + $0x68] sm:$0xf]
        %v2030 = vld [vmem:[%s2011 + $0x6c] sm:$0xff]
        %v2031 = vld [vmem:[%s2011 + $0x74] sm:$0xf]
        %v2032 = vld [vmem:[%s2011 + $0x78] sm:$0xff]
        %v2033 = vld [vmem:[%s2011 + $0x80] sm:$0xf]
        %v2034 = vld [vmem:[%s2011 + $0x84] sm:$0xff]
        %v2035 = vld [vmem:[%s2011 + $0x8c] sm:$0xf]
        %v2036 = vld [vmem:[%s2011 + $0x90] sm:$0xff]
        %v2037 = vld [vmem:[%s2011 + $0x98] sm:$0xf]
        %v2038 = vld [vmem:[%s2011 + $0x9c] sm:$0xff]
        %v2039 = vld [vmem:[%s2011 + $0xa4] sm:$0xf]
        %v2040 = vld [vmem:[%s2011 + $0xa8] sm:$0xff]
        %v2041 = vld [vmem:[%s2011 + $0xb0] sm:$0xf]
        %v2042 = vld [vmem:[%s2011 + $0xb4] sm:$0xff]
        %v2043 = vld [vmem:[%s2011 + $0xbc] sm:$0xf]
        %s2044 = scalar_lea.vmem %s6, 3
        %v2045 = vld [vmem:[%s2044] sm:$0x7]
        %v2047 = vlaneseq
        %v2048 = vshrl.u32 %v2047, 7
        %v2049 = vsub.s32 0, %v2048
        %v2050 = vrot.slane %v2045, %v2049
        %v2051 = vlaneseq
        %v2052 = vshrl.u32 %v2051, 7
        %v2053 = vsub.s32 1, %v2052
        %v2054 = vrot.slane %v2045, %v2053
        %v2055 = vlaneseq
        %v2056 = vshrl.u32 %v2055, 7
        %v2057 = vsub.s32 2, %v2056
        %v2058 = vrot.slane %v2045, %v2057
        %v2094 = vunpack.c.l.b16 %v2012
        %v2095 = vunpack.c.h.b16 %v2012
        %v2096 = vunpack.c.l.b16 %v2013
        %v2097 = vunpack.c.l.b16 %v2014
        %v2098 = vunpack.c.h.b16 %v2014
        %v2099 = vunpack.c.l.b16 %v2015
        %v2100 = vunpack.c.l.b16 %v2016
        %v2101 = vunpack.c.h.b16 %v2016
        %v2102 = vunpack.c.l.b16 %v2017
        %v2103 = vunpack.c.l.b16 %v2018
        %v2104 = vunpack.c.h.b16 %v2018
        %v2105 = vunpack.c.l.b16 %v2019
        %v2106 = vunpack.c.l.b16 %v2020
        %v2107 = vunpack.c.h.b16 %v2020
        %v2108 = vunpack.c.l.b16 %v2021
        %v2109 = vunpack.c.l.b16 %v2022
        %v2110 = vunpack.c.h.b16 %v2022
        %v2111 = vunpack.c.l.b16 %v2023
        %v2112 = vunpack.c.l.b16 %v2024
        %v2113 = vunpack.c.h.b16 %v2024
        %v2114 = vunpack.c.l.b16 %v2025
        %v2115 = vunpack.c.l.b16 %v2026
        %v2116 = vunpack.c.h.b16 %v2026
        %v2117 = vunpack.c.l.b16 %v2027
        %v2118 = vunpack.c.l.b16 %v2028
        %v2119 = vunpack.c.h.b16 %v2028
        %v2120 = vunpack.c.l.b16 %v2029
        %v2121 = vunpack.c.l.b16 %v2030
        %v2122 = vunpack.c.h.b16 %v2030
        %v2123 = vunpack.c.l.b16 %v2031
        %v2124 = vunpack.c.l.b16 %v2032
        %v2125 = vunpack.c.h.b16 %v2032
        %v2126 = vunpack.c.l.b16 %v2033
        %v2127 = vunpack.c.l.b16 %v2034
        %v2128 = vunpack.c.h.b16 %v2034
        %v2129 = vunpack.c.l.b16 %v2035
        %v2130 = vunpack.c.l.b16 %v2036
        %v2131 = vunpack.c.h.b16 %v2036
        %v2132 = vunpack.c.l.b16 %v2037
        %v2133 = vunpack.c.l.b16 %v2038
        %v2134 = vunpack.c.h.b16 %v2038
        %v2135 = vunpack.c.l.b16 %v2039
        %v2136 = vunpack.c.l.b16 %v2040
        %v2137 = vunpack.c.h.b16 %v2040
        %v2138 = vunpack.c.l.b16 %v2041
        %v2139 = vunpack.c.l.b16 %v2042
        %v2140 = vunpack.c.h.b16 %v2042
        %v2141 = vunpack.c.l.b16 %v2043
        %v2142 = vpack.c.b16 %v2097, %v2094
        %v2143 = vpack.c.b16 %v2098, %v2095
        %v2144 = vpack.c.b16 %v2099, %v2096
        %v2145 = vpack.c.b16 %v2103, %v2100
        %v2146 = vpack.c.b16 %v2104, %v2101
        %v2147 = vpack.c.b16 %v2105, %v2102
        %v2148 = vpack.c.b16 %v2109, %v2106
        %v2149 = vpack.c.b16 %v2110, %v2107
        %v2150 = vpack.c.b16 %v2111, %v2108
        %v2151 = vpack.c.b16 %v2115, %v2112
        %v2152 = vpack.c.b16 %v2116, %v2113
        %v2153 = vpack.c.b16 %v2117, %v2114
        %v2154 = vpack.c.b16 %v2121, %v2118
        %v2155 = vpack.c.b16 %v2122, %v2119
        %v2156 = vpack.c.b16 %v2123, %v2120
        %v2157 = vpack.c.b16 %v2127, %v2124
        %v2158 = vpack.c.b16 %v2128, %v2125
        %v2159 = vpack.c.b16 %v2129, %v2126
        %v2160 = vpack.c.b16 %v2133, %v2130
        %v2161 = vpack.c.b16 %v2134, %v2131
        %v2162 = vpack.c.b16 %v2135, %v2132
        %v2163 = vpack.c.b16 %v2139, %v2136
        %v2164 = vpack.c.b16 %v2140, %v2137
        %v2165 = vpack.c.b16 %v2141, %v2138
        %2190 = vmatprep.subr.bf16.mxu0 %v2143
        %2191 = vmatpush1.bf16.msra.mxu0 %v2142
        %2192 = vmatprep.subr.bf16.mxu0 %v2146
        %2193 = vmatpush1.bf16.msra.mxu0 %v2145
        %2194 = vmatprep.subr.bf16.mxu0 %v2149
        %2195 = vmatpush1.bf16.msra.mxu0 %v2148
        %2196 = vmatprep.subr.bf16.mxu0 %v2152
        %2197 = vmatpush1.bf16.msra.mxu0 %v2151
        %2198 = vmatprep.subr.bf16.mxu0 %v2155
        %2199 = vmatpush1.bf16.msra.mxu0 %v2154
        %2200 = vmatprep.subr.bf16.mxu0 %v2158
        %2201 = vmatpush1.bf16.msra.mxu0 %v2157
        %2202 = vmatprep.subr.bf16.mxu0 %v2161
        %2203 = vmatpush1.bf16.msra.mxu0 %v2160
        %2204 = vmatprep.subr.bf16.mxu0 %v2164
        %2205 = vmatpush1.bf16.msra.mxu0 %v2163
        %2206 = vmatprep.subr.bf16.mxu0 0
        %2207 = vmatpush1.bf16.msra.mxu0 0
        %2208 = vmatprep.subr.bf16.mxu0 0
        %2209 = vmatpush1.bf16.msra.mxu0 0
        %2210 = vmatprep.subr.bf16.mxu0 0
        %2211 = vmatpush1.bf16.msra.mxu0 0
        %2212 = vmatprep.subr.bf16.mxu0 0
        %2213 = vmatpush1.bf16.msra.mxu0 0
        %2214 = vmatprep.subr.bf16.mxu0 0
        %2215 = vmatpush1.bf16.msra.mxu0 0
        %2216 = vmatprep.subr.bf16.mxu0 0
        %2217 = vmatpush1.bf16.msra.mxu0 0
        %2218 = vmatprep.subr.bf16.mxu0 0
        %2219 = vmatpush1.bf16.msra.mxu0 0
        %2220 = vmatprep.subr.bf16.mxu0 0
        %2221 = vmatpush1.bf16.msra.mxu0 0
        %2222 = vmatprep.mubr.bf16.mxu0 0
        %2223 = vmatmul.mubr.bf16.gmra.mrb[0].mxu0 %v2010
        %v2224 = vpop.f32.mrb[0].mxu0
        %v2225 = vadd.f32 %v2050, %v2224
        %v2226 = vpop.f32.mrb[0].mxu0
        %v2227 = vadd.f32 %v2054, %v2226
        %v2228 = vpop.f32.mrb[0].mxu0
        %v2229 = vadd.f32 %v2050, %v2228
        %v2230 = vpop.f32.mrb[0].mxu0
        %v2231 = vadd.f32 %v2054, %v2230
        %2232 = vdwg.mxu0
        %2233 = vmatprep.subr.bf16.mxu0 0
        %2234 = vmatpush1.bf16.msra.mxu0 %v2144
        %2235 = vmatprep.subr.bf16.mxu0 0
        %2236 = vmatpush1.bf16.msra.mxu0 %v2147
        %2237 = vmatprep.subr.bf16.mxu0 0
        %2238 = vmatpush1.bf16.msra.mxu0 %v2150
        %2239 = vmatprep.subr.bf16.mxu0 0
        %2240 = vmatpush1.bf16.msra.mxu0 %v2153
        %2241 = vmatprep.subr.bf16.mxu0 0
        %2242 = vmatpush1.bf16.msra.mxu0 %v2156
        %2243 = vmatprep.subr.bf16.mxu0 0
        %2244 = vmatpush1.bf16.msra.mxu0 %v2159
        %2245 = vmatprep.subr.bf16.mxu0 0
        %2246 = vmatpush1.bf16.msra.mxu0 %v2162
        %2247 = vmatprep.subr.bf16.mxu0 0
        %2248 = vmatpush1.bf16.msra.mxu0 %v2165
        %2249 = vmatprep.subr.bf16.mxu0 0
        %2250 = vmatpush1.bf16.msra.mxu0 0
        %2251 = vmatprep.subr.bf16.mxu0 0
        %2252 = vmatpush1.bf16.msra.mxu0 0
        %2253 = vmatprep.subr.bf16.mxu0 0
        %2254 = vmatpush1.bf16.msra.mxu0 0
        %2255 = vmatprep.subr.bf16.mxu0 0
        %2256 = vmatpush1.bf16.msra.mxu0 0
        %2257 = vmatprep.subr.bf16.mxu0 0
        %2258 = vmatpush1.bf16.msra.mxu0 0
        %2259 = vmatprep.subr.bf16.mxu0 0
        %2260 = vmatpush1.bf16.msra.mxu0 0
        %2261 = vmatprep.subr.bf16.mxu0 0
        %2262 = vmatpush1.bf16.msra.mxu0 0
        %2263 = vmatprep.subr.bf16.mxu0 0
        %2264 = vmatpush1.bf16.msra.mxu0 0
        %2265 = vmatprep.mubr.bf16.mxu0 0
        %2266 = vmatmul.mubr.bf16.gmra.mrb[0].mxu0 %v2010
        %v2267 = vpop.f32.mrb[0].mxu0
        %v2268 = vadd.f32 %v2058, %v2267
        %v2269 = vpop.f32.mrb[0].mxu0
        %v2270 = vpop.f32.mrb[0].mxu0
        %v2271 = vadd.f32 %v2058, %v2270
        %v2272 = vpop.f32.mrb[0].mxu0
        %2273 = vdwg.mxu0
        %v2274 = vpack.c.bf16 %v2225, %v2225
        %v2275 = vpack.c.bf16 %v2227, %v2227
        %v2276 = vpack.c.bf16 %v2268, %v2268
        %v2278 = vsel %vm1005, %v2274, 0
        %v2281 = vsel %vm1005, %v2275, 0
        %2283 = vmatprep.subr.bf16.mxu0 0
        %2284 = vmatpush1.bf16.xpose.msra.mxu0 %v2281
        %2285 = vmatprep.subr.bf16.mxu0 0
        %2286 = vmatpush1.bf16.xpose.msra.mxu0 0
        %2287 = vmatprep.subr.bf16.mxu0 0
        %2288 = vmatpush1.bf16.xpose.msra.mxu0 0
        %2289 = vmatprep.subr.bf16.mxu0 0
        %2290 = vmatpush1.bf16.xpose.msra.mxu0 0
        %2291 = vmatprep.subr.bf16.mxu0 0
        %2292 = vmatpush1.bf16.xpose.msra.mxu0 0
        %2293 = vmatprep.subr.bf16.mxu0 0
        %2294 = vmatpush1.bf16.xpose.msra.mxu0 0
        %2295 = vmatprep.subr.bf16.mxu0 0
        %2296 = vmatpush1.bf16.xpose.msra.mxu0 0
        %2297 = vmatprep.subr.bf16.mxu0 0
        %2298 = vmatpush1.bf16.xpose.msra.mxu0 0
        %2299 = vmatprep.subr.bf16.mxu0 0
        %2300 = vmatpush1.bf16.xpose.msra.mxu0 0
        %2301 = vmatprep.subr.bf16.mxu0 0
        %2302 = vmatpush1.bf16.xpose.msra.mxu0 0
        %2303 = vmatprep.subr.bf16.mxu0 0
        %2304 = vmatpush1.bf16.xpose.msra.mxu0 0
        %2305 = vmatprep.subr.bf16.mxu0 0
        %2306 = vmatpush1.bf16.xpose.msra.mxu0 0
        %2307 = vmatprep.subr.bf16.mxu0 0
        %2308 = vmatpush1.bf16.xpose.msra.mxu0 0
        %2309 = vmatprep.subr.bf16.mxu0 0
        %2310 = vmatpush1.bf16.xpose.msra.mxu0 0
        %2311 = vmatprep.subr.bf16.mxu0 0
        %2312 = vmatpush1.bf16.xpose.msra.mxu0 0
        %2313 = vmatprep.subr.bf16.mxu0 0
        %2314 = vmatpush1.bf16.xpose.msra.mxu0 0
        %2315 = vmatprep.mubr.bf16.mxu0 0
        %2316 = vmatmul.mubr.bf16.gmra.mrb[0].mxu0 %v2278
        %v2317 = vpop.f32.mrb[0].mxu0
        %v2318 = vadd.f32 %v1003, %v2317
        %v2319 = vpop.f32.mrb[0].mxu0
        %v2320 = vpop.f32.mrb[0].mxu0
        %v2321 = vpop.f32.mrb[0].mxu0
        %2322 = vdwg.mxu0
        %v2323 = vsel %vm1052, %v2318, -inf
        %2324 = vmax.xlane.f32.xlu0 %v2323
        %v2325 = vpop.xlane.xlu0 %2324
        %v2326 = vsub.f32 %v2318, %v2325
        %v2327 = vmul.f32 %v2326, 1.442695
        %v2328 = vpow.pop %v2327
        %v2329 = vsel %vm1052, %v2328, 0.0
        %2330 = vadd.xlane.f32.xlu0 %v2329
        %v2331 = vpop.xlane.xlu0 %2330
        %v2332 = vrcp.pop %v2331
        %v2333 = vmul.f32 %v2328, %v2332
        %v2334 = vpack.c.bf16 %v2333, %v2333
        %v2336 = vsel %vm1052, %v2334, 0
        %v2339 = vsel %vm683, %v2276, 0
        %2341 = vmatprep.subr.bf16.mxu0 0
        %2342 = vmatpush1.bf16.msra.mxu0 %v2339
        %2343 = vmatprep.subr.bf16.mxu0 0
        %2344 = vmatpush1.bf16.msra.mxu0 0
        %2345 = vmatprep.subr.bf16.mxu0 0
        %2346 = vmatpush1.bf16.msra.mxu0 0
        %2347 = vmatprep.subr.bf16.mxu0 0
        %2348 = vmatpush1.bf16.msra.mxu0 0
        %2349 = vmatprep.subr.bf16.mxu0 0
        %2350 = vmatpush1.bf16.msra.mxu0 0
        %2351 = vmatprep.subr.bf16.mxu0 0
        %2352 = vmatpush1.bf16.msra.mxu0 0
        %2353 = vmatprep.subr.bf16.mxu0 0
        %2354 = vmatpush1.bf16.msra.mxu0 0
        %2355 = vmatprep.subr.bf16.mxu0 0
        %2356 = vmatpush1.bf16.msra.mxu0 0
        %2357 = vmatprep.subr.bf16.mxu0 0
        %2358 = vmatpush1.bf16.msra.mxu0 0
        %2359 = vmatprep.subr.bf16.mxu0 0
        %2360 = vmatpush1.bf16.msra.mxu0 0
        %2361 = vmatprep.subr.bf16.mxu0 0
        %2362 = vmatpush1.bf16.msra.mxu0 0
        %2363 = vmatprep.subr.bf16.mxu0 0
        %2364 = vmatpush1.bf16.msra.mxu0 0
        %2365 = vmatprep.subr.bf16.mxu0 0
        %2366 = vmatpush1.bf16.msra.mxu0 0
        %2367 = vmatprep.subr.bf16.mxu0 0
        %2368 = vmatpush1.bf16.msra.mxu0 0
        %2369 = vmatprep.subr.bf16.mxu0 0
        %2370 = vmatpush1.bf16.msra.mxu0 0
        %2371 = vmatprep.subr.bf16.mxu0 0
        %2372 = vmatpush1.bf16.msra.mxu0 0
        %2373 = vmatprep.mubr.bf16.mxu0 0
        %2374 = vmatmul.mubr.bf16.gmra.mrb[0].mxu0 %v2336
        %v2375 = vpop.f32.mrb[0].mxu0
        %v2376 = vadd.f32 0.0, %v2375
        %v2377 = vpop.f32.mrb[0].mxu0
        %v2378 = vpop.f32.mrb[0].mxu0
        %v2379 = vpop.f32.mrb[0].mxu0
        %2380 = vdwg.mxu0
        %2382 = vrot.lane.b32.xlu0 %v2274, 64
        %v2383 = vpop.permute.xlu0 %2382
        %2385 = vrot.lane.b32.xlu0 %v2275, 64
        %v2386 = vpop.permute.xlu0 %2385
        %v2388 = vsel %vm1005, %v2383, 0
        %v2391 = vsel %vm1005, %v2386, 0
        %2393 = vmatprep.subr.bf16.mxu0 0
        %2394 = vmatpush1.bf16.xpose.msra.mxu0 %v2391
        %2395 = vmatprep.subr.bf16.mxu0 0
        %2396 = vmatpush1.bf16.xpose.msra.mxu0 0
        %2397 = vmatprep.subr.bf16.mxu0 0
        %2398 = vmatpush1.bf16.xpose.msra.mxu0 0
        %2399 = vmatprep.subr.bf16.mxu0 0
        %2400 = vmatpush1.bf16.xpose.msra.mxu0 0
        %2401 = vmatprep.subr.bf16.mxu0 0
        %2402 = vmatpush1.bf16.xpose.msra.mxu0 0
        %2403 = vmatprep.subr.bf16.mxu0 0
        %2404 = vmatpush1.bf16.xpose.msra.mxu0 0
        %2405 = vmatprep.subr.bf16.mxu0 0
        %2406 = vmatpush1.bf16.xpose.msra.mxu0 0
        %2407 = vmatprep.subr.bf16.mxu0 0
        %2408 = vmatpush1.bf16.xpose.msra.mxu0 0
        %2409 = vmatprep.subr.bf16.mxu0 0
        %2410 = vmatpush1.bf16.xpose.msra.mxu0 0
        %2411 = vmatprep.subr.bf16.mxu0 0
        %2412 = vmatpush1.bf16.xpose.msra.mxu0 0
        %2413 = vmatprep.subr.bf16.mxu0 0
        %2414 = vmatpush1.bf16.xpose.msra.mxu0 0
        %2415 = vmatprep.subr.bf16.mxu0 0
        %2416 = vmatpush1.bf16.xpose.msra.mxu0 0
        %2417 = vmatprep.subr.bf16.mxu0 0
        %2418 = vmatpush1.bf16.xpose.msra.mxu0 0
        %2419 = vmatprep.subr.bf16.mxu0 0
        %2420 = vmatpush1.bf16.xpose.msra.mxu0 0
        %2421 = vmatprep.subr.bf16.mxu0 0
        %2422 = vmatpush1.bf16.xpose.msra.mxu0 0
        %2423 = vmatprep.subr.bf16.mxu0 0
        %2424 = vmatpush1.bf16.xpose.msra.mxu0 0
        %2425 = vmatprep.mubr.bf16.mxu0 0
        %2426 = vmatmul.mubr.bf16.gmra.mrb[0].mxu0 %v2388
        %v2427 = vpop.f32.mrb[0].mxu0
        %v2428 = vadd.f32 %v1003, %v2427
        %v2429 = vpop.f32.mrb[0].mxu0
        %v2430 = vpop.f32.mrb[0].mxu0
        %v2431 = vpop.f32.mrb[0].mxu0
        %2432 = vdwg.mxu0
        %v2433 = vsel %vm1052, %v2428, -inf
        %2434 = vmax.xlane.f32.xlu0 %v2433
        %v2435 = vpop.xlane.xlu0 %2434
        %v2436 = vsub.f32 %v2428, %v2435
        %v2437 = vmul.f32 %v2436, 1.442695
        %v2438 = vpow.pop %v2437
        %v2439 = vsel %vm1052, %v2438, 0.0
        %2440 = vadd.xlane.f32.xlu0 %v2439
        %v2441 = vpop.xlane.xlu0 %2440
        %v2442 = vrcp.pop %v2441
        %v2443 = vmul.f32 %v2438, %v2442
        %v2444 = vpack.c.bf16 %v2443, %v2443
        %2446 = vrot.lane.b32.xlu0 %v2276, 64
        %v2447 = vpop.permute.xlu0 %2446
        %v2449 = vsel %vm1052, %v2444, 0
        %v2452 = vsel %vm683, %v2447, 0
        %2454 = vmatprep.subr.bf16.mxu0 0
        %2455 = vmatpush1.bf16.msra.mxu0 %v2452
        %2456 = vmatprep.subr.bf16.mxu0 0
        %2457 = vmatpush1.bf16.msra.mxu0 0
        %2458 = vmatprep.subr.bf16.mxu0 0
        %2459 = vmatpush1.bf16.msra.mxu0 0
        %2460 = vmatprep.subr.bf16.mxu0 0
        %2461 = vmatpush1.bf16.msra.mxu0 0
        %2462 = vmatprep.subr.bf16.mxu0 0
        %2463 = vmatpush1.bf16.msra.mxu0 0
        %2464 = vmatprep.subr.bf16.mxu0 0
        %2465 = vmatpush1.bf16.msra.mxu0 0
        %2466 = vmatprep.subr.bf16.mxu0 0
        %2467 = vmatpush1.bf16.msra.mxu0 0
        %2468 = vmatprep.subr.bf16.mxu0 0
        %2469 = vmatpush1.bf16.msra.mxu0 0
        %2470 = vmatprep.subr.bf16.mxu0 0
        %2471 = vmatpush1.bf16.msra.mxu0 0
        %2472 = vmatprep.subr.bf16.mxu0 0
        %2473 = vmatpush1.bf16.msra.mxu0 0
        %2474 = vmatprep.subr.bf16.mxu0 0
        %2475 = vmatpush1.bf16.msra.mxu0 0
        %2476 = vmatprep.subr.bf16.mxu0 0
        %2477 = vmatpush1.bf16.msra.mxu0 0
        %2478 = vmatprep.subr.bf16.mxu0 0
        %2479 = vmatpush1.bf16.msra.mxu0 0
        %2480 = vmatprep.subr.bf16.mxu0 0
        %2481 = vmatpush1.bf16.msra.mxu0 0
        %2482 = vmatprep.subr.bf16.mxu0 0
        %2483 = vmatpush1.bf16.msra.mxu0 0
        %2484 = vmatprep.subr.bf16.mxu0 0
        %2485 = vmatpush1.bf16.msra.mxu0 0
        %2486 = vmatprep.mubr.bf16.mxu0 0
        %2487 = vmatmul.mubr.bf16.gmra.mrb[0].mxu0 %v2449
        %v2488 = vpop.f32.mrb[0].mxu0
        %v2489 = vadd.f32 0.0, %v2488
        %v2490 = vpop.f32.mrb[0].mxu0
        %v2491 = vpop.f32.mrb[0].mxu0
        %v2492 = vpop.f32.mrb[0].mxu0
        %2493 = vdwg.mxu0
        %2495 = vrot.lane.b32.xlu0 %v2489, 64
        %v2496 = vpop.permute.xlu0 %2495
        %v2498 = vsel %vm1005, %v2376, %v2496
        %v2499 = vpack.c.bf16 %v2229, %v2229
        %v2500 = vpack.c.bf16 %v2231, %v2231
        %v2501 = vpack.c.bf16 %v2271, %v2271
        %v2503 = vsel %vm1005, %v2499, 0
        %v2506 = vsel %vm1005, %v2500, 0
        %2508 = vmatprep.subr.bf16.mxu0 0
        %2509 = vmatpush1.bf16.xpose.msra.mxu0 %v2506
        %2510 = vmatprep.subr.bf16.mxu0 0
        %2511 = vmatpush1.bf16.xpose.msra.mxu0 0
        %2512 = vmatprep.subr.bf16.mxu0 0
        %2513 = vmatpush1.bf16.xpose.msra.mxu0 0
        %2514 = vmatprep.subr.bf16.mxu0 0
        %2515 = vmatpush1.bf16.xpose.msra.mxu0 0
        %2516 = vmatprep.subr.bf16.mxu0 0
        %2517 = vmatpush1.bf16.xpose.msra.mxu0 0
        %2518 = vmatprep.subr.bf16.mxu0 0
        %2519 = vmatpush1.bf16.xpose.msra.mxu0 0
        %2520 = vmatprep.subr.bf16.mxu0 0
        %2521 = vmatpush1.bf16.xpose.msra.mxu0 0
        %2522 = vmatprep.subr.bf16.mxu0 0
        %2523 = vmatpush1.bf16.xpose.msra.mxu0 0
        %2524 = vmatprep.subr.bf16.mxu0 0
        %2525 = vmatpush1.bf16.xpose.msra.mxu0 0
        %2526 = vmatprep.subr.bf16.mxu0 0
        %2527 = vmatpush1.bf16.xpose.msra.mxu0 0
        %2528 = vmatprep.subr.bf16.mxu0 0
        %2529 = vmatpush1.bf16.xpose.msra.mxu0 0
        %2530 = vmatprep.subr.bf16.mxu0 0
        %2531 = vmatpush1.bf16.xpose.msra.mxu0 0
        %2532 = vmatprep.subr.bf16.mxu0 0
        %2533 = vmatpush1.bf16.xpose.msra.mxu0 0
        %2534 = vmatprep.subr.bf16.mxu0 0
        %2535 = vmatpush1.bf16.xpose.msra.mxu0 0
        %2536 = vmatprep.subr.bf16.mxu0 0
        %2537 = vmatpush1.bf16.xpose.msra.mxu0 0
        %2538 = vmatprep.subr.bf16.mxu0 0
        %2539 = vmatpush1.bf16.xpose.msra.mxu0 0
        %2540 = vmatprep.mubr.bf16.mxu0 0
        %2541 = vmatmul.mubr.bf16.gmra.mrb[0].mxu0 %v2503
        %v2542 = vpop.f32.mrb[0].mxu0
        %v2543 = vadd.f32 %v1238, %v2542
        %v2544 = vpop.f32.mrb[0].mxu0
        %v2545 = vpop.f32.mrb[0].mxu0
        %v2546 = vpop.f32.mrb[0].mxu0
        %2547 = vdwg.mxu0
        %v2548 = vsel %vm1052, %v2543, -inf
        %2549 = vmax.xlane.f32.xlu0 %v2548
        %v2550 = vpop.xlane.xlu0 %2549
        %v2551 = vsub.f32 %v2543, %v2550
        %v2552 = vmul.f32 %v2551, 1.442695
        %v2553 = vpow.pop %v2552
        %v2554 = vsel %vm1052, %v2553, 0.0
        %2555 = vadd.xlane.f32.xlu0 %v2554
        %v2556 = vpop.xlane.xlu0 %2555
        %v2557 = vrcp.pop %v2556
        %v2558 = vmul.f32 %v2553, %v2557
        %v2559 = vpack.c.bf16 %v2558, %v2558
        %v2561 = vsel %vm1052, %v2559, 0
        %v2564 = vsel %vm683, %v2501, 0
        %2566 = vmatprep.subr.bf16.mxu0 0
        %2567 = vmatpush1.bf16.msra.mxu0 %v2564
        %2568 = vmatprep.subr.bf16.mxu0 0
        %2569 = vmatpush1.bf16.msra.mxu0 0
        %2570 = vmatprep.subr.bf16.mxu0 0
        %2571 = vmatpush1.bf16.msra.mxu0 0
        %2572 = vmatprep.subr.bf16.mxu0 0
        %2573 = vmatpush1.bf16.msra.mxu0 0
        %2574 = vmatprep.subr.bf16.mxu0 0
        %2575 = vmatpush1.bf16.msra.mxu0 0
        %2576 = vmatprep.subr.bf16.mxu0 0
        %2577 = vmatpush1.bf16.msra.mxu0 0
        %2578 = vmatprep.subr.bf16.mxu0 0
        %2579 = vmatpush1.bf16.msra.mxu0 0
        %2580 = vmatprep.subr.bf16.mxu0 0
        %2581 = vmatpush1.bf16.msra.mxu0 0
        %2582 = vmatprep.subr.bf16.mxu0 0
        %2583 = vmatpush1.bf16.msra.mxu0 0
        %2584 = vmatprep.subr.bf16.mxu0 0
        %2585 = vmatpush1.bf16.msra.mxu0 0
        %2586 = vmatprep.subr.bf16.mxu0 0
        %2587 = vmatpush1.bf16.msra.mxu0 0
        %2588 = vmatprep.subr.bf16.mxu0 0
        %2589 = vmatpush1.bf16.msra.mxu0 0
        %2590 = vmatprep.subr.bf16.mxu0 0
        %2591 = vmatpush1.bf16.msra.mxu0 0
        %2592 = vmatprep.subr.bf16.mxu0 0
        %2593 = vmatpush1.bf16.msra.mxu0 0
        %2594 = vmatprep.subr.bf16.mxu0 0
        %2595 = vmatpush1.bf16.msra.mxu0 0
        %2596 = vmatprep.subr.bf16.mxu0 0
        %2597 = vmatpush1.bf16.msra.mxu0 0
        %2598 = vmatprep.mubr.bf16.mxu0 0
        %2599 = vmatmul.mubr.bf16.gmra.mrb[0].mxu0 %v2561
        %v2600 = vpop.f32.mrb[0].mxu0
        %v2601 = vadd.f32 0.0, %v2600
        %v2602 = vpop.f32.mrb[0].mxu0
        %v2603 = vpop.f32.mrb[0].mxu0
        %v2604 = vpop.f32.mrb[0].mxu0
        %2605 = vdwg.mxu0
        %2607 = vrot.lane.b32.xlu0 %v2499, 64
        %v2608 = vpop.permute.xlu0 %2607
        %2610 = vrot.lane.b32.xlu0 %v2500, 64
        %v2611 = vpop.permute.xlu0 %2610
        %v2613 = vsel %vm1005, %v2608, 0
        %v2616 = vsel %vm1005, %v2611, 0
        %2618 = vmatprep.subr.bf16.mxu0 0
        %2619 = vmatpush1.bf16.xpose.msra.mxu0 %v2616
        %2620 = vmatprep.subr.bf16.mxu0 0
        %2621 = vmatpush1.bf16.xpose.msra.mxu0 0
        %2622 = vmatprep.subr.bf16.mxu0 0
        %2623 = vmatpush1.bf16.xpose.msra.mxu0 0
        %2624 = vmatprep.subr.bf16.mxu0 0
        %2625 = vmatpush1.bf16.xpose.msra.mxu0 0
        %2626 = vmatprep.subr.bf16.mxu0 0
        %2627 = vmatpush1.bf16.xpose.msra.mxu0 0
        %2628 = vmatprep.subr.bf16.mxu0 0
        %2629 = vmatpush1.bf16.xpose.msra.mxu0 0
        %2630 = vmatprep.subr.bf16.mxu0 0
        %2631 = vmatpush1.bf16.xpose.msra.mxu0 0
        %2632 = vmatprep.subr.bf16.mxu0 0
        %2633 = vmatpush1.bf16.xpose.msra.mxu0 0
        %2634 = vmatprep.subr.bf16.mxu0 0
        %2635 = vmatpush1.bf16.xpose.msra.mxu0 0
        %2636 = vmatprep.subr.bf16.mxu0 0
        %2637 = vmatpush1.bf16.xpose.msra.mxu0 0
        %2638 = vmatprep.subr.bf16.mxu0 0
        %2639 = vmatpush1.bf16.xpose.msra.mxu0 0
        %2640 = vmatprep.subr.bf16.mxu0 0
        %2641 = vmatpush1.bf16.xpose.msra.mxu0 0
        %2642 = vmatprep.subr.bf16.mxu0 0
        %2643 = vmatpush1.bf16.xpose.msra.mxu0 0
        %2644 = vmatprep.subr.bf16.mxu0 0
        %2645 = vmatpush1.bf16.xpose.msra.mxu0 0
        %2646 = vmatprep.subr.bf16.mxu0 0
        %2647 = vmatpush1.bf16.xpose.msra.mxu0 0
        %2648 = vmatprep.subr.bf16.mxu0 0
        %2649 = vmatpush1.bf16.xpose.msra.mxu0 0
        %2650 = vmatprep.mubr.bf16.mxu0 0
        %2651 = vmatmul.mubr.bf16.gmra.mrb[0].mxu0 %v2613
        %v2652 = vpop.f32.mrb[0].mxu0
        %v2653 = vadd.f32 %v1238, %v2652
        %v2654 = vpop.f32.mrb[0].mxu0
        %v2655 = vpop.f32.mrb[0].mxu0
        %v2656 = vpop.f32.mrb[0].mxu0
        %2657 = vdwg.mxu0
        %v2658 = vsel %vm1052, %v2653, -inf
        %2659 = vmax.xlane.f32.xlu0 %v2658
        %v2660 = vpop.xlane.xlu0 %2659
        %v2661 = vsub.f32 %v2653, %v2660
        %v2662 = vmul.f32 %v2661, 1.442695
        %v2663 = vpow.pop %v2662
        %v2664 = vsel %vm1052, %v2663, 0.0
        %2665 = vadd.xlane.f32.xlu0 %v2664
        %v2666 = vpop.xlane.xlu0 %2665
        %v2667 = vrcp.pop %v2666
        %v2668 = vmul.f32 %v2663, %v2667
        %v2669 = vpack.c.bf16 %v2668, %v2668
        %2671 = vrot.lane.b32.xlu0 %v2501, 64
        %v2672 = vpop.permute.xlu0 %2671
        %v2674 = vsel %vm1052, %v2669, 0
        %v2677 = vsel %vm683, %v2672, 0
        %2679 = vmatprep.subr.bf16.mxu0 0
        %2680 = vmatpush1.bf16.msra.mxu0 %v2677
        %2681 = vmatprep.subr.bf16.mxu0 0
        %2682 = vmatpush1.bf16.msra.mxu0 0
        %2683 = vmatprep.subr.bf16.mxu0 0
        %2684 = vmatpush1.bf16.msra.mxu0 0
        %2685 = vmatprep.subr.bf16.mxu0 0
        %2686 = vmatpush1.bf16.msra.mxu0 0
        %2687 = vmatprep.subr.bf16.mxu0 0
        %2688 = vmatpush1.bf16.msra.mxu0 0
        %2689 = vmatprep.subr.bf16.mxu0 0
        %2690 = vmatpush1.bf16.msra.mxu0 0
        %2691 = vmatprep.subr.bf16.mxu0 0
        %2692 = vmatpush1.bf16.msra.mxu0 0
        %2693 = vmatprep.subr.bf16.mxu0 0
        %2694 = vmatpush1.bf16.msra.mxu0 0
        %2695 = vmatprep.subr.bf16.mxu0 0
        %2696 = vmatpush1.bf16.msra.mxu0 0
        %2697 = vmatprep.subr.bf16.mxu0 0
        %2698 = vmatpush1.bf16.msra.mxu0 0
        %2699 = vmatprep.subr.bf16.mxu0 0
        %2700 = vmatpush1.bf16.msra.mxu0 0
        %2701 = vmatprep.subr.bf16.mxu0 0
        %2702 = vmatpush1.bf16.msra.mxu0 0
        %2703 = vmatprep.subr.bf16.mxu0 0
        %2704 = vmatpush1.bf16.msra.mxu0 0
        %2705 = vmatprep.subr.bf16.mxu0 0
        %2706 = vmatpush1.bf16.msra.mxu0 0
        %2707 = vmatprep.subr.bf16.mxu0 0
        %2708 = vmatpush1.bf16.msra.mxu0 0
        %2709 = vmatprep.subr.bf16.mxu0 0
        %2710 = vmatpush1.bf16.msra.mxu0 0
        %2711 = vmatprep.mubr.bf16.mxu0 0
        %2712 = vmatmul.mubr.bf16.gmra.mrb[0].mxu0 %v2674
        %v2713 = vpop.f32.mrb[0].mxu0
        %v2714 = vadd.f32 0.0, %v2713
        %v2715 = vpop.f32.mrb[0].mxu0
        %v2716 = vpop.f32.mrb[0].mxu0
        %v2717 = vpop.f32.mrb[0].mxu0
        %2718 = vdwg.mxu0
        %2720 = vrot.lane.b32.xlu0 %v2714, 64
        %v2721 = vpop.permute.xlu0 %2720
        %v2723 = vsel %vm1005, %v2601, %v2721
        %v2724 = vpack.c.bf16 %v2723, %v2498
        %s2725 = scalar_lea.vmem [#allocation5], 64
        %v2726 = vld [vmem:[%s2725] sm:$0xf]
        %v2727 = vld [vmem:[%s2725 + $0x4] sm:$0xf]
        %v2728 = vld [vmem:[%s2725 + $0x8] sm:$0xf]
        %v2729 = vld [vmem:[%s2725 + $0xc] sm:$0xf]
        %v2730 = vld [vmem:[%s2725 + $0x10] sm:$0xf]
        %v2731 = vld [vmem:[%s2725 + $0x14] sm:$0xf]
        %v2732 = vld [vmem:[%s2725 + $0x18] sm:$0xf]
        %v2733 = vld [vmem:[%s2725 + $0x1c] sm:$0xf]
        %v2734 = vld [vmem:[%s2725 + $0x20] sm:$0xf]
        %v2735 = vld [vmem:[%s2725 + $0x24] sm:$0xf]
        %v2736 = vld [vmem:[%s2725 + $0x28] sm:$0xf]
        %v2737 = vld [vmem:[%s2725 + $0x2c] sm:$0xf]
        %v2738 = vld [vmem:[%s2725 + $0x30] sm:$0xf]
        %v2739 = vld [vmem:[%s2725 + $0x34] sm:$0xf]
        %v2740 = vld [vmem:[%s2725 + $0x38] sm:$0xf]
        %v2741 = vld [vmem:[%s2725 + $0x3c] sm:$0xf]
        %v2742 = vlaneseq
        %v2743 = vshrl.u32 %v2742, 7
        %v2744 = vsub.s32 0, %v2743
        %v2745 = vrot.slane %v2009, %v2744
        %v2762 = vunpack.c.l.b16 %v2726
        %v2763 = vunpack.c.l.b16 %v2727
        %v2764 = vunpack.c.l.b16 %v2728
        %v2765 = vunpack.c.l.b16 %v2729
        %v2766 = vunpack.c.l.b16 %v2730
        %v2767 = vunpack.c.l.b16 %v2731
        %v2768 = vunpack.c.l.b16 %v2732
        %v2769 = vunpack.c.l.b16 %v2733
        %v2770 = vunpack.c.l.b16 %v2734
        %v2771 = vunpack.c.l.b16 %v2735
        %v2772 = vunpack.c.l.b16 %v2736
        %v2773 = vunpack.c.l.b16 %v2737
        %v2774 = vunpack.c.l.b16 %v2738
        %v2775 = vunpack.c.l.b16 %v2739
        %v2776 = vunpack.c.l.b16 %v2740
        %v2777 = vunpack.c.l.b16 %v2741
        %v2778 = vpack.c.b16 %v2763, %v2762
        %v2779 = vpack.c.b16 %v2765, %v2764
        %v2780 = vpack.c.b16 %v2767, %v2766
        %v2781 = vpack.c.b16 %v2769, %v2768
        %v2782 = vpack.c.b16 %v2771, %v2770
        %v2783 = vpack.c.b16 %v2773, %v2772
        %v2784 = vpack.c.b16 %v2775, %v2774
        %v2785 = vpack.c.b16 %v2777, %v2776
        %2794 = vmatprep.subr.bf16.mxu0 0
        %2795 = vmatpush1.bf16.msra.mxu0 %v2778
        %2796 = vmatprep.subr.bf16.mxu0 0
        %2797 = vmatpush1.bf16.msra.mxu0 %v2779
        %2798 = vmatprep.subr.bf16.mxu0 0
        %2799 = vmatpush1.bf16.msra.mxu0 %v2780
        %2800 = vmatprep.subr.bf16.mxu0 0
        %2801 = vmatpush1.bf16.msra.mxu0 %v2781
        %2802 = vmatprep.subr.bf16.mxu0 0
        %2803 = vmatpush1.bf16.msra.mxu0 %v2782
        %2804 = vmatprep.subr.bf16.mxu0 0
        %2805 = vmatpush1.bf16.msra.mxu0 %v2783
        %2806 = vmatprep.subr.bf16.mxu0 0
        %2807 = vmatpush1.bf16.msra.mxu0 %v2784
        %2808 = vmatprep.subr.bf16.mxu0 0
        %2809 = vmatpush1.bf16.msra.mxu0 %v2785
        %2810 = vmatprep.subr.bf16.mxu0 0
        %2811 = vmatpush1.bf16.msra.mxu0 0
        %2812 = vmatprep.subr.bf16.mxu0 0
        %2813 = vmatpush1.bf16.msra.mxu0 0
        %2814 = vmatprep.subr.bf16.mxu0 0
        %2815 = vmatpush1.bf16.msra.mxu0 0
        %2816 = vmatprep.subr.bf16.mxu0 0
        %2817 = vmatpush1.bf16.msra.mxu0 0
        %2818 = vmatprep.subr.bf16.mxu0 0
        %2819 = vmatpush1.bf16.msra.mxu0 0
        %2820 = vmatprep.subr.bf16.mxu0 0
        %2821 = vmatpush1.bf16.msra.mxu0 0
        %2822 = vmatprep.subr.bf16.mxu0 0
        %2823 = vmatpush1.bf16.msra.mxu0 0
        %2824 = vmatprep.subr.bf16.mxu0 0
        %2825 = vmatpush1.bf16.msra.mxu0 0
        %2826 = vmatprep.mubr.bf16.mxu0 0
        %2827 = vmatmul.mubr.bf16.gmra.mrb[0].mxu0 %v2724
        %v2828 = vpop.f32.mrb[0].mxu0
        %v2829 = vadd.f32 %v2745, %v2828
        %v2830 = vpop.f32.mrb[0].mxu0
        %v2831 = vpop.f32.mrb[0].mxu0
        %v2832 = vadd.f32 %v2745, %v2831
        %v2833 = vpop.f32.mrb[0].mxu0
        %2834 = vdwg.mxu0
        %v2835 = vadd.f32 %v2006, %v2829
        %v2836 = vadd.f32 %v2007, %v2832
        %2837 = vadd.xlane.f32.xlu0 %v2835
        %v2838 = vpop.xlane.xlu0 %2837
        %2839 = vadd.xlane.f32.xlu0 %v2836
        %v2840 = vpop.xlane.xlu0 %2839
        %v2841 = vmul.f32 %v2838, %v1578
        %v2842 = vmul.f32 %v2840, %v1578
        %v2843 = vsub.f32 %v2835, %v2841
        %v2844 = vsub.f32 %v2836, %v2842
        %v2845 = vmul.f32 %v2843, %v2843
        %v2846 = vmul.f32 %v2844, %v2844
        %2847 = vadd.xlane.f32.xlu0 %v2845
        %v2848 = vpop.xlane.xlu0 %2847
        %2849 = vadd.xlane.f32.xlu0 %v2846
        %v2850 = vpop.xlane.xlu0 %2849
        %v2851 = vmul.f32 %v2848, %v1578
        %v2852 = vmul.f32 %v2850, %v1578
        %v2853 = vadd.f32 %v2851, 1e-05
        %v2854 = vadd.f32 %v2852, 1e-05
        %v2855 = vrsqrt.pop %v2853
        %v2856 = vrsqrt.pop %v2854
        %v2857 = vmul.f32 %v2843, %v2855
        %v2858 = vmul.f32 %v2844, %v2856
        %v2859 = vlaneseq
        %v2860 = vshrl.u32 %v2859, 7
        %v2861 = vsub.s32 1, %v2860
        %v2862 = vrot.slane %v2009, %v2861
        %v2863 = vmul.f32 %v2857, %v2862
        %v2864 = vmul.f32 %v2858, %v2862
        %v2865 = vlaneseq
        %v2866 = vshrl.u32 %v2865, 7
        %v2867 = vsub.s32 2, %v2866
        %v2868 = vrot.slane %v2009, %v2867
        %v2869 = vadd.f32 %v2863, %v2868
        %v2870 = vadd.f32 %v2864, %v2868
        %v2871 = vpack.c.bf16 %v2870, %v2869
        %s2872 = scalar_lea.vmem [#allocation7], 128
        %v2873 = vld [vmem:[%s2872] sm:$0xff]
        %v2874 = vld [vmem:[%s2872 + $0x8] sm:$0xff]
        %v2875 = vld [vmem:[%s2872 + $0x10] sm:$0xff]
        %v2876 = vld [vmem:[%s2872 + $0x18] sm:$0xff]
        %v2877 = vld [vmem:[%s2872 + $0x20] sm:$0xff]
        %v2878 = vld [vmem:[%s2872 + $0x28] sm:$0xff]
        %v2879 = vld [vmem:[%s2872 + $0x30] sm:$0xff]
        %v2880 = vld [vmem:[%s2872 + $0x38] sm:$0xff]
        %v2881 = vld [vmem:[%s2872 + $0x40] sm:$0xff]
        %v2882 = vld [vmem:[%s2872 + $0x48] sm:$0xff]
        %v2883 = vld [vmem:[%s2872 + $0x50] sm:$0xff]
        %v2884 = vld [vmem:[%s2872 + $0x58] sm:$0xff]
        %v2885 = vld [vmem:[%s2872 + $0x60] sm:$0xff]
        %v2886 = vld [vmem:[%s2872 + $0x68] sm:$0xff]
        %v2887 = vld [vmem:[%s2872 + $0x70] sm:$0xff]
        %v2888 = vld [vmem:[%s2872 + $0x78] sm:$0xff]
        %s2889 = scalar_lea.vmem %s9, 2
        %v2890 = vld [vmem:[%s2889] sm:$0x3]
        %v2892 = vlaneseq
        %v2893 = vshrl.u32 %v2892, 7
        %v2894 = vsub.s32 0, %v2893
        %v2895 = vrot.slane %v2890, %v2894
        %v2896 = vlaneseq
        %v2897 = vshrl.u32 %v2896, 7
        %v2898 = vsub.s32 1, %v2897
        %v2899 = vrot.slane %v2890, %v2898
        %v2918 = vunpack.c.l.b16 %v2873
        %v2919 = vunpack.c.h.b16 %v2873
        %v2920 = vunpack.c.l.b16 %v2874
        %v2921 = vunpack.c.h.b16 %v2874
        %v2922 = vunpack.c.l.b16 %v2875
        %v2923 = vunpack.c.h.b16 %v2875
        %v2924 = vunpack.c.l.b16 %v2876
        %v2925 = vunpack.c.h.b16 %v2876
        %v2926 = vunpack.c.l.b16 %v2877
        %v2927 = vunpack.c.h.b16 %v2877
        %v2928 = vunpack.c.l.b16 %v2878
        %v2929 = vunpack.c.h.b16 %v2878
        %v2930 = vunpack.c.l.b16 %v2879
        %v2931 = vunpack.c.h.b16 %v2879
        %v2932 = vunpack.c.l.b16 %v2880
        %v2933 = vunpack.c.h.b16 %v2880
        %v2934 = vunpack.c.l.b16 %v2881
        %v2935 = vunpack.c.h.b16 %v2881
        %v2936 = vunpack.c.l.b16 %v2882
        %v2937 = vunpack.c.h.b16 %v2882
        %v2938 = vunpack.c.l.b16 %v2883
        %v2939 = vunpack.c.h.b16 %v2883
        %v2940 = vunpack.c.l.b16 %v2884
        %v2941 = vunpack.c.h.b16 %v2884
        %v2942 = vunpack.c.l.b16 %v2885
        %v2943 = vunpack.c.h.b16 %v2885
        %v2944 = vunpack.c.l.b16 %v2886
        %v2945 = vunpack.c.h.b16 %v2886
        %v2946 = vunpack.c.l.b16 %v2887
        %v2947 = vunpack.c.h.b16 %v2887
        %v2948 = vunpack.c.l.b16 %v2888
        %v2949 = vunpack.c.h.b16 %v2888
        %v2950 = vpack.c.b16 %v2920, %v2918
        %v2951 = vpack.c.b16 %v2921, %v2919
        %v2952 = vpack.c.b16 %v2924, %v2922
        %v2953 = vpack.c.b16 %v2925, %v2923
        %v2954 = vpack.c.b16 %v2928, %v2926
        %v2955 = vpack.c.b16 %v2929, %v2927
        %v2956 = vpack.c.b16 %v2932, %v2930
        %v2957 = vpack.c.b16 %v2933, %v2931
        %v2958 = vpack.c.b16 %v2936, %v2934
        %v2959 = vpack.c.b16 %v2937, %v2935
        %v2960 = vpack.c.b16 %v2940, %v2938
        %v2961 = vpack.c.b16 %v2941, %v2939
        %v2962 = vpack.c.b16 %v2944, %v2942
        %v2963 = vpack.c.b16 %v2945, %v2943
        %v2964 = vpack.c.b16 %v2948, %v2946
        %v2965 = vpack.c.b16 %v2949, %v2947
        %2982 = vmatprep.subr.bf16.mxu0 %v2951
        %2983 = vmatpush1.bf16.msra.mxu0 %v2950
        %2984 = vmatprep.subr.bf16.mxu0 %v2953
        %2985 = vmatpush1.bf16.msra.mxu0 %v2952
        %2986 = vmatprep.subr.bf16.mxu0 %v2955
        %2987 = vmatpush1.bf16.msra.mxu0 %v2954
        %2988 = vmatprep.subr.bf16.mxu0 %v2957
        %2989 = vmatpush1.bf16.msra.mxu0 %v2956
        %2990 = vmatprep.subr.bf16.mxu0 %v2959
        %2991 = vmatpush1.bf16.msra.mxu0 %v2958
        %2992 = vmatprep.subr.bf16.mxu0 %v2961
        %2993 = vmatpush1.bf16.msra.mxu0 %v2960
        %2994 = vmatprep.subr.bf16.mxu0 %v2963
        %2995 = vmatpush1.bf16.msra.mxu0 %v2962
        %2996 = vmatprep.subr.bf16.mxu0 %v2965
        %2997 = vmatpush1.bf16.msra.mxu0 %v2964
        %2998 = vmatprep.subr.bf16.mxu0 0
        %2999 = vmatpush1.bf16.msra.mxu0 0
        %3000 = vmatprep.subr.bf16.mxu0 0
        %3001 = vmatpush1.bf16.msra.mxu0 0
        %3002 = vmatprep.subr.bf16.mxu0 0
        %3003 = vmatpush1.bf16.msra.mxu0 0
        %3004 = vmatprep.subr.bf16.mxu0 0
        %3005 = vmatpush1.bf16.msra.mxu0 0
        %3006 = vmatprep.subr.bf16.mxu0 0
        %3007 = vmatpush1.bf16.msra.mxu0 0
        %3008 = vmatprep.subr.bf16.mxu0 0
        %3009 = vmatpush1.bf16.msra.mxu0 0
        %3010 = vmatprep.subr.bf16.mxu0 0
        %3011 = vmatpush1.bf16.msra.mxu0 0
        %3012 = vmatprep.subr.bf16.mxu0 0
        %3013 = vmatpush1.bf16.msra.mxu0 0
        %3014 = vmatprep.mubr.bf16.mxu0 0
        %3015 = vmatmul.mubr.bf16.gmra.mrb[0].mxu0 %v2871
        %v3016 = vpop.f32.mrb[0].mxu0
        %v3017 = vadd.f32 %v2895, %v3016
        %v3018 = vpop.f32.mrb[0].mxu0
        %v3019 = vadd.f32 %v2899, %v3018
        %v3020 = vpop.f32.mrb[0].mxu0
        %v3021 = vadd.f32 %v2895, %v3020
        %v3022 = vpop.f32.mrb[0].mxu0
        %v3023 = vadd.f32 %v2899, %v3022
        %3024 = vdwg.mxu0
        %v3025 = vmul.f32 %v3017, 0.5
        %v3026 = vmul.f32 %v3019, 0.5
        %v3027 = vmul.f32 %v3021, 0.5
        %v3028 = vmul.f32 %v3023, 0.5
        %v3029 = vmul.f32 %v3017, %v3017
        %v3030 = vmul.f32 %v3019, %v3019
        %v3031 = vmul.f32 %v3021, %v3021
        %v3032 = vmul.f32 %v3023, %v3023
        %v3033 = vmul.f32 %v3029, %v3017
        %v3034 = vmul.f32 %v3030, %v3019
        %v3035 = vmul.f32 %v3031, %v3021
        %v3036 = vmul.f32 %v3032, %v3023
        %v3037 = vmul.f32 %v3033, 0.044715
        %v3038 = vmul.f32 %v3034, 0.044715
        %v3039 = vmul.f32 %v3035, 0.044715
        %v3040 = vmul.f32 %v3036, 0.044715
        %v3041 = vadd.f32 %v3017, %v3037
        %v3042 = vadd.f32 %v3019, %v3038
        %v3043 = vadd.f32 %v3021, %v3039
        %v3044 = vadd.f32 %v3023, %v3040
        %v3045 = vmul.f32 %v3041, 0.7978846
        %v3046 = vmul.f32 %v3042, 0.7978846
        %v3047 = vmul.f32 %v3043, 0.7978846
        %v3048 = vmul.f32 %v3044, 0.7978846
        %v3049 = vtanh.pop %v3045
        %v3050 = vtanh.pop %v3046
        %v3051 = vtanh.pop %v3047
        %v3052 = vtanh.pop %v3048
        %v3053 = vadd.f32 %v3049, 1.0
        %v3054 = vadd.f32 %v3050, 1.0
        %v3055 = vadd.f32 %v3051, 1.0
        %v3056 = vadd.f32 %v3052, 1.0
        %v3057 = vmul.f32 %v3025, %v3053
        %v3058 = vmul.f32 %v3026, %v3054
        %v3059 = vmul.f32 %v3027, %v3055
        %v3060 = vmul.f32 %v3028, %v3056
        %v3061 = vpack.c.bf16 %v3059, %v3057
        %v3062 = vpack.c.bf16 %v3060, %v3058
        %s3063 = scalar_lea.vmem [#allocation8], 128
        %v3064 = vld [vmem:[%s3063] sm:$0xf]
        %v3065 = vld [vmem:[%s3063 + $0x4] sm:$0xf]
        %v3066 = vld [vmem:[%s3063 + $0x8] sm:$0xf]
        %v3067 = vld [vmem:[%s3063 + $0xc] sm:$0xf]
        %v3068 = vld [vmem:[%s3063 + $0x10] sm:$0xf]
        %v3069 = vld [vmem:[%s3063 + $0x14] sm:$0xf]
        %v3070 = vld [vmem:[%s3063 + $0x18] sm:$0xf]
        %v3071 = vld [vmem:[%s3063 + $0x1c] sm:$0xf]
        %v3072 = vld [vmem:[%s3063 + $0x20] sm:$0xf]
        %v3073 = vld [vmem:[%s3063 + $0x24] sm:$0xf]
        %v3074 = vld [vmem:[%s3063 + $0x28] sm:$0xf]
        %v3075 = vld [vmem:[%s3063 + $0x2c] sm:$0xf]
        %v3076 = vld [vmem:[%s3063 + $0x30] sm:$0xf]
        %v3077 = vld [vmem:[%s3063 + $0x34] sm:$0xf]
        %v3078 = vld [vmem:[%s3063 + $0x38] sm:$0xf]
        %v3079 = vld [vmem:[%s3063 + $0x3c] sm:$0xf]
        %v3080 = vld [vmem:[%s3063 + $0x40] sm:$0xf]
        %v3081 = vld [vmem:[%s3063 + $0x44] sm:$0xf]
        %v3082 = vld [vmem:[%s3063 + $0x48] sm:$0xf]
        %v3083 = vld [vmem:[%s3063 + $0x4c] sm:$0xf]
        %v3084 = vld [vmem:[%s3063 + $0x50] sm:$0xf]
        %v3085 = vld [vmem:[%s3063 + $0x54] sm:$0xf]
        %v3086 = vld [vmem:[%s3063 + $0x58] sm:$0xf]
        %v3087 = vld [vmem:[%s3063 + $0x5c] sm:$0xf]
        %v3088 = vld [vmem:[%s3063 + $0x60] sm:$0xf]
        %v3089 = vld [vmem:[%s3063 + $0x64] sm:$0xf]
        %v3090 = vld [vmem:[%s3063 + $0x68] sm:$0xf]
        %v3091 = vld [vmem:[%s3063 + $0x6c] sm:$0xf]
        %v3092 = vld [vmem:[%s3063 + $0x70] sm:$0xf]
        %v3093 = vld [vmem:[%s3063 + $0x74] sm:$0xf]
        %v3094 = vld [vmem:[%s3063 + $0x78] sm:$0xf]
        %v3095 = vld [vmem:[%s3063 + $0x7c] sm:$0xf]
        %v3096 = vlaneseq
        %v3097 = vshrl.u32 %v3096, 7
        %v3098 = vsub.s32 3, %v3097
        %v3099 = vrot.slane %v2009, %v3098
        %v3132 = vunpack.c.l.b16 %v3064
        %v3133 = vunpack.c.l.b16 %v3065
        %v3134 = vunpack.c.l.b16 %v3066
        %v3135 = vunpack.c.l.b16 %v3067
        %v3136 = vunpack.c.l.b16 %v3068
        %v3137 = vunpack.c.l.b16 %v3069
        %v3138 = vunpack.c.l.b16 %v3070
        %v3139 = vunpack.c.l.b16 %v3071
        %v3140 = vunpack.c.l.b16 %v3072
        %v3141 = vunpack.c.l.b16 %v3073
        %v3142 = vunpack.c.l.b16 %v3074
        %v3143 = vunpack.c.l.b16 %v3075
        %v3144 = vunpack.c.l.b16 %v3076
        %v3145 = vunpack.c.l.b16 %v3077
        %v3146 = vunpack.c.l.b16 %v3078
        %v3147 = vunpack.c.l.b16 %v3079
        %v3148 = vunpack.c.l.b16 %v3080
        %v3149 = vunpack.c.l.b16 %v3081
        %v3150 = vunpack.c.l.b16 %v3082
        %v3151 = vunpack.c.l.b16 %v3083
        %v3152 = vunpack.c.l.b16 %v3084
        %v3153 = vunpack.c.l.b16 %v3085
        %v3154 = vunpack.c.l.b16 %v3086
        %v3155 = vunpack.c.l.b16 %v3087
        %v3156 = vunpack.c.l.b16 %v3088
        %v3157 = vunpack.c.l.b16 %v3089
        %v3158 = vunpack.c.l.b16 %v3090
        %v3159 = vunpack.c.l.b16 %v3091
        %v3160 = vunpack.c.l.b16 %v3092
        %v3161 = vunpack.c.l.b16 %v3093
        %v3162 = vunpack.c.l.b16 %v3094
        %v3163 = vunpack.c.l.b16 %v3095
        %v3164 = vpack.c.b16 %v3133, %v3132
        %v3165 = vpack.c.b16 %v3135, %v3134
        %v3166 = vpack.c.b16 %v3137, %v3136
        %v3167 = vpack.c.b16 %v3139, %v3138
        %v3168 = vpack.c.b16 %v3141, %v3140
        %v3169 = vpack.c.b16 %v3143, %v3142
        %v3170 = vpack.c.b16 %v3145, %v3144
        %v3171 = vpack.c.b16 %v3147, %v3146
        %v3172 = vpack.c.b16 %v3149, %v3148
        %v3173 = vpack.c.b16 %v3151, %v3150
        %v3174 = vpack.c.b16 %v3153, %v3152
        %v3175 = vpack.c.b16 %v3155, %v3154
        %v3176 = vpack.c.b16 %v3157, %v3156
        %v3177 = vpack.c.b16 %v3159, %v3158
        %v3178 = vpack.c.b16 %v3161, %v3160
        %v3179 = vpack.c.b16 %v3163, %v3162
        %3196 = vmatprep.subr.bf16.mxu0 0
        %3197 = vmatpush1.bf16.msra.mxu0 %v3164
        %3198 = vmatprep.subr.bf16.mxu0 0
        %3199 = vmatpush1.bf16.msra.mxu0 %v3165
        %3200 = vmatprep.subr.bf16.mxu0 0
        %3201 = vmatpush1.bf16.msra.mxu0 %v3166
        %3202 = vmatprep.subr.bf16.mxu0 0
        %3203 = vmatpush1.bf16.msra.mxu0 %v3167
        %3204 = vmatprep.subr.bf16.mxu0 0
        %3205 = vmatpush1.bf16.msra.mxu0 %v3168
        %3206 = vmatprep.subr.bf16.mxu0 0
        %3207 = vmatpush1.bf16.msra.mxu0 %v3169
        %3208 = vmatprep.subr.bf16.mxu0 0
        %3209 = vmatpush1.bf16.msra.mxu0 %v3170
        %3210 = vmatprep.subr.bf16.mxu0 0
        %3211 = vmatpush1.bf16.msra.mxu0 %v3171
        %3212 = vmatprep.subr.bf16.mxu0 0
        %3213 = vmatpush1.bf16.msra.mxu0 %v3172
        %3214 = vmatprep.subr.bf16.mxu0 0
        %3215 = vmatpush1.bf16.msra.mxu0 %v3173
        %3216 = vmatprep.subr.bf16.mxu0 0
        %3217 = vmatpush1.bf16.msra.mxu0 %v3174
        %3218 = vmatprep.subr.bf16.mxu0 0
        %3219 = vmatpush1.bf16.msra.mxu0 %v3175
        %3220 = vmatprep.subr.bf16.mxu0 0
        %3221 = vmatpush1.bf16.msra.mxu0 %v3176
        %3222 = vmatprep.subr.bf16.mxu0 0
        %3223 = vmatpush1.bf16.msra.mxu0 %v3177
        %3224 = vmatprep.subr.bf16.mxu0 0
        %3225 = vmatpush1.bf16.msra.mxu0 %v3178
        %3226 = vmatprep.subr.bf16.mxu0 0
        %3227 = vmatpush1.bf16.msra.mxu0 %v3179
        %3228 = vmatprep.mubr.bf16.mxu0 %v3062
        %3229 = vmatmul.mubr.bf16.gmra.mrb[0].mxu0 %v3061
        %v3230 = vpop.f32.mrb[0].mxu0
        %v3231 = vadd.f32 %v3099, %v3230
        %v3232 = vpop.f32.mrb[0].mxu0
        %v3233 = vpop.f32.mrb[0].mxu0
        %v3234 = vadd.f32 %v3099, %v3233
        %v3235 = vpop.f32.mrb[0].mxu0
        %3236 = vdwg.mxu0
        %v3237 = vadd.f32 %v2869, %v3231
        %v3238 = vadd.f32 %v2870, %v3234
        %3239 = vadd.xlane.f32.xlu0 %v3237
        %v3240 = vpop.xlane.xlu0 %3239
        %3241 = vadd.xlane.f32.xlu0 %v3238
        %v3242 = vpop.xlane.xlu0 %3241
        %v3243 = vmul.f32 %v3240, %v1578
        %v3244 = vmul.f32 %v3242, %v1578
        %v3245 = vsub.f32 %v3237, %v3243
        %v3246 = vsub.f32 %v3238, %v3244
        %v3247 = vmul.f32 %v3245, %v3245
        %v3248 = vmul.f32 %v3246, %v3246
        %3249 = vadd.xlane.f32.xlu0 %v3247
        %v3250 = vpop.xlane.xlu0 %3249
        %3251 = vadd.xlane.f32.xlu0 %v3248
        %v3252 = vpop.xlane.xlu0 %3251
        %v3253 = vmul.f32 %v3250, %v1578
        %v3254 = vmul.f32 %v3252, %v1578
        %v3255 = vadd.f32 %v3253, 1e-05
        %v3256 = vadd.f32 %v3254, 1e-05
        %v3257 = vrsqrt.pop %v3255
        %v3258 = vrsqrt.pop %v3256
        %v3259 = vmul.f32 %v3245, %v3257
        %v3260 = vmul.f32 %v3246, %v3258
        %v3261 = vlaneseq
        %v3262 = vshrl.u32 %v3261, 7
        %v3263 = vsub.s32 4, %v3262
        %v3264 = vrot.slane %v2009, %v3263
        %v3265 = vmul.f32 %v3259, %v3264
        %v3266 = vmul.f32 %v3260, %v3264
        %v3267 = vlaneseq
        %v3268 = vshrl.u32 %v3267, 7
        %v3269 = vsub.s32 5, %v3268
        %v3270 = vrot.slane %v2009, %v3269
        %v3271 = vadd.f32 %v3265, %v3270
        %v3272 = vadd.f32 %v3266, %v3270
        %v3273 = vld [vmem:[#allocation13] sm:$0x3]
        %v3274 = vrot.slane %v3271, 4
        %v3275 = vadd.f32 %v3271, %v3274
        %v3276 = vrot.slane %v3275, 2
        %v3277 = vadd.f32 %v3275, %v3276
        %v3278 = vrot.slane %v3277, 1
        %v3279 = vadd.f32 %v3277, %v3278
        %v3280 = vmul.f32 %v3279, 0.125
        %v3281 = vpack.c.bf16 %v3280, %v3280
        %v3282 = vld [vmem:[#allocation10] sm:$0xf]
        %v3283 = vld [vmem:[#allocation10 + $0x4] sm:$0xf]
        %v3284 = vld [vmem:[#allocation10 + $0x8] sm:$0xf]
        %v3285 = vld [vmem:[#allocation10 + $0xc] sm:$0xf]
        %v3286 = vld [vmem:[#allocation10 + $0x10] sm:$0xf]
        %v3287 = vld [vmem:[#allocation10 + $0x14] sm:$0xf]
        %v3288 = vld [vmem:[#allocation10 + $0x18] sm:$0xf]
        %v3289 = vld [vmem:[#allocation10 + $0x1c] sm:$0xf]
        %v3290 = vld [vmem:[#allocation10 + $0x20] sm:$0xf]
        %v3291 = vld [vmem:[#allocation10 + $0x24] sm:$0xf]
        %v3292 = vld [vmem:[#allocation10 + $0x28] sm:$0xf]
        %v3293 = vld [vmem:[#allocation10 + $0x2c] sm:$0xf]
        %v3294 = vld [vmem:[#allocation10 + $0x30] sm:$0xf]
        %v3295 = vld [vmem:[#allocation10 + $0x34] sm:$0xf]
        %v3296 = vld [vmem:[#allocation10 + $0x38] sm:$0xf]
        %v3297 = vld [vmem:[#allocation10 + $0x3c] sm:$0xf]
        %v3314 = vunpack.c.l.b16 %v3282
        %v3315 = vunpack.c.l.b16 %v3283
        %v3316 = vunpack.c.l.b16 %v3284
        %v3317 = vunpack.c.l.b16 %v3285
        %v3318 = vunpack.c.l.b16 %v3286
        %v3319 = vunpack.c.l.b16 %v3287
        %v3320 = vunpack.c.l.b16 %v3288
        %v3321 = vunpack.c.l.b16 %v3289
        %v3322 = vunpack.c.l.b16 %v3290
        %v3323 = vunpack.c.l.b16 %v3291
        %v3324 = vunpack.c.l.b16 %v3292
        %v3325 = vunpack.c.l.b16 %v3293
        %v3326 = vunpack.c.l.b16 %v3294
        %v3327 = vunpack.c.l.b16 %v3295
        %v3328 = vunpack.c.l.b16 %v3296
        %v3329 = vunpack.c.l.b16 %v3297
        %v3330 = vpack.c.b16 %v3315, %v3314
        %v3331 = vpack.c.b16 %v3317, %v3316
        %v3332 = vpack.c.b16 %v3319, %v3318
        %v3333 = vpack.c.b16 %v3321, %v3320
        %v3334 = vpack.c.b16 %v3323, %v3322
        %v3335 = vpack.c.b16 %v3325, %v3324
        %v3336 = vpack.c.b16 %v3327, %v3326
        %v3337 = vpack.c.b16 %v3329, %v3328
        %3346 = vmatprep.subr.bf16.mxu0 0
        %3347 = vmatpush1.bf16.msra.mxu0 %v3330
        %3348 = vmatprep.subr.bf16.mxu0 0
        %3349 = vmatpush1.bf16.msra.mxu0 %v3331
        %3350 = vmatprep.subr.bf16.mxu0 0
        %3351 = vmatpush1.bf16.msra.mxu0 %v3332
        %3352 = vmatprep.subr.bf16.mxu0 0
        %3353 = vmatpush1.bf16.msra.mxu0 %v3333
        %3354 = vmatprep.subr.bf16.mxu0 0
        %3355 = vmatpush1.bf16.msra.mxu0 %v3334
        %3356 = vmatprep.subr.bf16.mxu0 0
        %3357 = vmatpush1.bf16.msra.mxu0 %v3335
        %3358 = vmatprep.subr.bf16.mxu0 0
        %3359 = vmatpush1.bf16.msra.mxu0 %v3336
        %3360 = vmatprep.subr.bf16.mxu0 0
        %3361 = vmatpush1.bf16.msra.mxu0 %v3337
        %3362 = vmatprep.subr.bf16.mxu0 0
        %3363 = vmatpush1.bf16.msra.mxu0 0
        %3364 = vmatprep.subr.bf16.mxu0 0
        %3365 = vmatpush1.bf16.msra.mxu0 0
        %3366 = vmatprep.subr.bf16.mxu0 0
        %3367 = vmatpush1.bf16.msra.mxu0 0
        %3368 = vmatprep.subr.bf16.mxu0 0
        %3369 = vmatpush1.bf16.msra.mxu0 0
        %3370 = vmatprep.subr.bf16.mxu0 0
        %3371 = vmatpush1.bf16.msra.mxu0 0
        %3372 = vmatprep.subr.bf16.mxu0 0
        %3373 = vmatpush1.bf16.msra.mxu0 0
        %3374 = vmatprep.subr.bf16.mxu0 0
        %3375 = vmatpush1.bf16.msra.mxu0 0
        %3376 = vmatprep.subr.bf16.mxu0 0
        %3377 = vmatpush1.bf16.msra.mxu0 0
        %3378 = vmatprep.mubr.bf16.mxu0 0
        %3379 = vmatmul.mubr.bf16.gmra.mrb[0].mxu0 %v3281
        %v3380 = vpop.f32.mrb[0].mxu0
        %v3381 = vadd.f32 %v3273, %v3380
        %v3382 = vpop.f32.mrb[0].mxu0
        %v3383 = vpop.f32.mrb[0].mxu0
        %v3384 = vpop.f32.mrb[0].mxu0
        %3385 = vdwg.mxu0
        %v3386 = vld [vmem:[#allocation11] sm:$0xf]
        %v3387 = vld [vmem:[#allocation11 + $0x4] sm:$0xf]
        %v3388 = vld [vmem:[#allocation11 + $0x8] sm:$0xf]
        %v3389 = vld [vmem:[#allocation11 + $0xc] sm:$0xf]
        %v3390 = vld [vmem:[#allocation11 + $0x10] sm:$0xf]
        %v3391 = vld [vmem:[#allocation11 + $0x14] sm:$0xf]
        %v3392 = vld [vmem:[#allocation11 + $0x18] sm:$0xf]
        %v3393 = vld [vmem:[#allocation11 + $0x1c] sm:$0xf]
        %v3394 = vld [vmem:[#allocation11 + $0x20] sm:$0xf]
        %v3395 = vld [vmem:[#allocation11 + $0x24] sm:$0xf]
        %v3396 = vld [vmem:[#allocation11 + $0x28] sm:$0xf]
        %v3397 = vld [vmem:[#allocation11 + $0x2c] sm:$0xf]
        %v3398 = vld [vmem:[#allocation11 + $0x30] sm:$0xf]
        %v3399 = vld [vmem:[#allocation11 + $0x34] sm:$0xf]
        %v3400 = vld [vmem:[#allocation11 + $0x38] sm:$0xf]
        %v3401 = vld [vmem:[#allocation11 + $0x3c] sm:$0xf]
        %v3418 = vunpack.c.l.b16 %v3386
        %v3419 = vunpack.c.l.b16 %v3387
        %v3420 = vunpack.c.l.b16 %v3388
        %v3421 = vunpack.c.l.b16 %v3389
        %v3422 = vunpack.c.l.b16 %v3390
        %v3423 = vunpack.c.l.b16 %v3391
        %v3424 = vunpack.c.l.b16 %v3392
        %v3425 = vunpack.c.l.b16 %v3393
        %v3426 = vunpack.c.l.b16 %v3394
        %v3427 = vunpack.c.l.b16 %v3395
        %v3428 = vunpack.c.l.b16 %v3396
        %v3429 = vunpack.c.l.b16 %v3397
        %v3430 = vunpack.c.l.b16 %v3398
        %v3431 = vunpack.c.l.b16 %v3399
        %v3432 = vunpack.c.l.b16 %v3400
        %v3433 = vunpack.c.l.b16 %v3401
        %v3434 = vpack.c.b16 %v3419, %v3418
        %v3435 = vpack.c.b16 %v3421, %v3420
        %v3436 = vpack.c.b16 %v3423, %v3422
        %v3437 = vpack.c.b16 %v3425, %v3424
        %v3438 = vpack.c.b16 %v3427, %v3426
        %v3439 = vpack.c.b16 %v3429, %v3428
        %v3440 = vpack.c.b16 %v3431, %v3430
        %v3441 = vpack.c.b16 %v3433, %v3432
        %v3451 = vrot.slane %v3273, 1
        %3453 = vmatprep.subr.bf16.mxu0 0
        %3454 = vmatpush1.bf16.msra.mxu0 %v3434
        %3455 = vmatprep.subr.bf16.mxu0 0
        %3456 = vmatpush1.bf16.msra.mxu0 %v3435
        %3457 = vmatprep.subr.bf16.mxu0 0
        %3458 = vmatpush1.bf16.msra.mxu0 %v3436
        %3459 = vmatprep.subr.bf16.mxu0 0
        %3460 = vmatpush1.bf16.msra.mxu0 %v3437
        %3461 = vmatprep.subr.bf16.mxu0 0
        %3462 = vmatpush1.bf16.msra.mxu0 %v3438
        %3463 = vmatprep.subr.bf16.mxu0 0
        %3464 = vmatpush1.bf16.msra.mxu0 %v3439
        %3465 = vmatprep.subr.bf16.mxu0 0
        %3466 = vmatpush1.bf16.msra.mxu0 %v3440
        %3467 = vmatprep.subr.bf16.mxu0 0
        %3468 = vmatpush1.bf16.msra.mxu0 %v3441
        %3469 = vmatprep.subr.bf16.mxu0 0
        %3470 = vmatpush1.bf16.msra.mxu0 0
        %3471 = vmatprep.subr.bf16.mxu0 0
        %3472 = vmatpush1.bf16.msra.mxu0 0
        %3473 = vmatprep.subr.bf16.mxu0 0
        %3474 = vmatpush1.bf16.msra.mxu0 0
        %3475 = vmatprep.subr.bf16.mxu0 0
        %3476 = vmatpush1.bf16.msra.mxu0 0
        %3477 = vmatprep.subr.bf16.mxu0 0
        %3478 = vmatpush1.bf16.msra.mxu0 0
        %3479 = vmatprep.subr.bf16.mxu0 0
        %3480 = vmatpush1.bf16.msra.mxu0 0
        %3481 = vmatprep.subr.bf16.mxu0 0
        %3482 = vmatpush1.bf16.msra.mxu0 0
        %3483 = vmatprep.subr.bf16.mxu0 0
        %3484 = vmatpush1.bf16.msra.mxu0 0
        %3485 = vmatprep.mubr.bf16.mxu0 0
        %3486 = vmatmul.mubr.bf16.gmra.mrb[0].mxu0 %v3281
        %v3487 = vpop.f32.mrb[0].mxu0
        %v3488 = vadd.f32 %v3451, %v3487
        %v3489 = vpop.f32.mrb[0].mxu0
        %v3490 = vpop.f32.mrb[0].mxu0
        %v3491 = vpop.f32.mrb[0].mxu0
        %3492 = vdwg.mxu0
        %vm3493 = vcmask 1040384
        %v3494 = vsel %vm3493, %v3488, -inf
        %3495 = vmax.xlane.f32.xlu0 %v3494
        %v3496 = vpop.xlane.xlu0 %3495
        %v3497 = vsub.f32 %v3488, %v3496
        %v3498 = vmul.f32 %v3497, 1.442695
        %v3499 = vpow.pop %v3498
        %v3500 = vsel %vm3493, %v3499, 0.0
        %3501 = vadd.xlane.f32.xlu0 %v3500
        %v3502 = vpop.xlane.xlu0 %3501
        %v3503 = vrcp.pop %v3502
        %v3504 = vmul.f32 %v3499, %v3503
        %v3505 = vadd.f32 %v3504, 1e-06
        %3506 = vst [vmem:[%s631] sm:$0x1] %v3381
        %3507 = vst [vmem:[%s638] sm:$0x1] %v3505
        %v3508 = vrot.slane %v3272, 4
        %v3509 = vadd.f32 %v3272, %v3508
        %v3510 = vrot.slane %v3509, 2
        %v3511 = vadd.f32 %v3509, %v3510
        %v3512 = vrot.slane %v3511, 1
        %v3513 = vadd.f32 %v3511, %v3512
        %v3514 = vmul.f32 %v3513, 0.125
        %v3515 = vpack.c.bf16 %v3514, %v3514
        %v3516 = vld [vmem:[#allocation10] sm:$0xf]
        %v3517 = vld [vmem:[#allocation10 + $0x4] sm:$0xf]
        %v3518 = vld [vmem:[#allocation10 + $0x8] sm:$0xf]
        %v3519 = vld [vmem:[#allocation10 + $0xc] sm:$0xf]
        %v3520 = vld [vmem:[#allocation10 + $0x10] sm:$0xf]
        %v3521 = vld [vmem:[#allocation10 + $0x14] sm:$0xf]
        %v3522 = vld [vmem:[#allocation10 + $0x18] sm:$0xf]
        %v3523 = vld [vmem:[#allocation10 + $0x1c] sm:$0xf]
        %v3524 = vld [vmem:[#allocation10 + $0x20] sm:$0xf]
        %v3525 = vld [vmem:[#allocation10 + $0x24] sm:$0xf]
        %v3526 = vld [vmem:[#allocation10 + $0x28] sm:$0xf]
        %v3527 = vld [vmem:[#allocation10 + $0x2c] sm:$0xf]
        %v3528 = vld [vmem:[#allocation10 + $0x30] sm:$0xf]
        %v3529 = vld [vmem:[#allocation10 + $0x34] sm:$0xf]
        %v3530 = vld [vmem:[#allocation10 + $0x38] sm:$0xf]
        %v3531 = vld [vmem:[#allocation10 + $0x3c] sm:$0xf]
        %v3548 = vunpack.c.l.b16 %v3516
        %v3549 = vunpack.c.l.b16 %v3517
        %v3550 = vunpack.c.l.b16 %v3518
        %v3551 = vunpack.c.l.b16 %v3519
        %v3552 = vunpack.c.l.b16 %v3520
        %v3553 = vunpack.c.l.b16 %v3521
        %v3554 = vunpack.c.l.b16 %v3522
        %v3555 = vunpack.c.l.b16 %v3523
        %v3556 = vunpack.c.l.b16 %v3524
        %v3557 = vunpack.c.l.b16 %v3525
        %v3558 = vunpack.c.l.b16 %v3526
        %v3559 = vunpack.c.l.b16 %v3527
        %v3560 = vunpack.c.l.b16 %v3528
        %v3561 = vunpack.c.l.b16 %v3529
        %v3562 = vunpack.c.l.b16 %v3530
        %v3563 = vunpack.c.l.b16 %v3531
        %v3564 = vpack.c.b16 %v3549, %v3548
        %v3565 = vpack.c.b16 %v3551, %v3550
        %v3566 = vpack.c.b16 %v3553, %v3552
        %v3567 = vpack.c.b16 %v3555, %v3554
        %v3568 = vpack.c.b16 %v3557, %v3556
        %v3569 = vpack.c.b16 %v3559, %v3558
        %v3570 = vpack.c.b16 %v3561, %v3560
        %v3571 = vpack.c.b16 %v3563, %v3562
        %3580 = vmatprep.subr.bf16.mxu0 0
        %3581 = vmatpush1.bf16.msra.mxu0 %v3564
        %3582 = vmatprep.subr.bf16.mxu0 0
        %3583 = vmatpush1.bf16.msra.mxu0 %v3565
        %3584 = vmatprep.subr.bf16.mxu0 0
        %3585 = vmatpush1.bf16.msra.mxu0 %v3566
        %3586 = vmatprep.subr.bf16.mxu0 0
        %3587 = vmatpush1.bf16.msra.mxu0 %v3567
        %3588 = vmatprep.subr.bf16.mxu0 0
        %3589 = vmatpush1.bf16.msra.mxu0 %v3568
        %3590 = vmatprep.subr.bf16.mxu0 0
        %3591 = vmatpush1.bf16.msra.mxu0 %v3569
        %3592 = vmatprep.subr.bf16.mxu0 0
        %3593 = vmatpush1.bf16.msra.mxu0 %v3570
        %3594 = vmatprep.subr.bf16.mxu0 0
        %3595 = vmatpush1.bf16.msra.mxu0 %v3571
        %3596 = vmatprep.subr.bf16.mxu0 0
        %3597 = vmatpush1.bf16.msra.mxu0 0
        %3598 = vmatprep.subr.bf16.mxu0 0
        %3599 = vmatpush1.bf16.msra.mxu0 0
        %3600 = vmatprep.subr.bf16.mxu0 0
        %3601 = vmatpush1.bf16.msra.mxu0 0
        %3602 = vmatprep.subr.bf16.mxu0 0
        %3603 = vmatpush1.bf16.msra.mxu0 0
        %3604 = vmatprep.subr.bf16.mxu0 0
        %3605 = vmatpush1.bf16.msra.mxu0 0
        %3606 = vmatprep.subr.bf16.mxu0 0
        %3607 = vmatpush1.bf16.msra.mxu0 0
        %3608 = vmatprep.subr.bf16.mxu0 0
        %3609 = vmatpush1.bf16.msra.mxu0 0
        %3610 = vmatprep.subr.bf16.mxu0 0
        %3611 = vmatpush1.bf16.msra.mxu0 0
        %3612 = vmatprep.mubr.bf16.mxu0 0
        %3613 = vmatmul.mubr.bf16.gmra.mrb[0].mxu0 %v3515
        %v3614 = vpop.f32.mrb[0].mxu0
        %v3615 = vadd.f32 %v3273, %v3614
        %v3616 = vpop.f32.mrb[0].mxu0
        %v3617 = vpop.f32.mrb[0].mxu0
        %v3618 = vpop.f32.mrb[0].mxu0
        %3619 = vdwg.mxu0
        %v3620 = vld [vmem:[#allocation11] sm:$0xf]
        %v3621 = vld [vmem:[#allocation11 + $0x4] sm:$0xf]
        %v3622 = vld [vmem:[#allocation11 + $0x8] sm:$0xf]
        %v3623 = vld [vmem:[#allocation11 + $0xc] sm:$0xf]
        %v3624 = vld [vmem:[#allocation11 + $0x10] sm:$0xf]
        %v3625 = vld [vmem:[#allocation11 + $0x14] sm:$0xf]
        %v3626 = vld [vmem:[#allocation11 + $0x18] sm:$0xf]
        %v3627 = vld [vmem:[#allocation11 + $0x1c] sm:$0xf]
        %v3628 = vld [vmem:[#allocation11 + $0x20] sm:$0xf]
        %v3629 = vld [vmem:[#allocation11 + $0x24] sm:$0xf]
        %v3630 = vld [vmem:[#allocation11 + $0x28] sm:$0xf]
        %v3631 = vld [vmem:[#allocation11 + $0x2c] sm:$0xf]
        %v3632 = vld [vmem:[#allocation11 + $0x30] sm:$0xf]
        %v3633 = vld [vmem:[#allocation11 + $0x34] sm:$0xf]
        %v3634 = vld [vmem:[#allocation11 + $0x38] sm:$0xf]
        %v3635 = vld [vmem:[#allocation11 + $0x3c] sm:$0xf]
        %v3652 = vunpack.c.l.b16 %v3620
        %v3653 = vunpack.c.l.b16 %v3621
        %v3654 = vunpack.c.l.b16 %v3622
        %v3655 = vunpack.c.l.b16 %v3623
        %v3656 = vunpack.c.l.b16 %v3624
        %v3657 = vunpack.c.l.b16 %v3625
        %v3658 = vunpack.c.l.b16 %v3626
        %v3659 = vunpack.c.l.b16 %v3627
        %v3660 = vunpack.c.l.b16 %v3628
        %v3661 = vunpack.c.l.b16 %v3629
        %v3662 = vunpack.c.l.b16 %v3630
        %v3663 = vunpack.c.l.b16 %v3631
        %v3664 = vunpack.c.l.b16 %v3632
        %v3665 = vunpack.c.l.b16 %v3633
        %v3666 = vunpack.c.l.b16 %v3634
        %v3667 = vunpack.c.l.b16 %v3635
        %v3668 = vpack.c.b16 %v3653, %v3652
        %v3669 = vpack.c.b16 %v3655, %v3654
        %v3670 = vpack.c.b16 %v3657, %v3656
        %v3671 = vpack.c.b16 %v3659, %v3658
        %v3672 = vpack.c.b16 %v3661, %v3660
        %v3673 = vpack.c.b16 %v3663, %v3662
        %v3674 = vpack.c.b16 %v3665, %v3664
        %v3675 = vpack.c.b16 %v3667, %v3666
        %3684 = vmatprep.subr.bf16.mxu0 0
        %3685 = vmatpush1.bf16.msra.mxu0 %v3668
        %3686 = vmatprep.subr.bf16.mxu0 0
        %3687 = vmatpush1.bf16.msra.mxu0 %v3669
        %3688 = vmatprep.subr.bf16.mxu0 0
        %3689 = vmatpush1.bf16.msra.mxu0 %v3670
        %3690 = vmatprep.subr.bf16.mxu0 0
        %3691 = vmatpush1.bf16.msra.mxu0 %v3671
        %3692 = vmatprep.subr.bf16.mxu0 0
        %3693 = vmatpush1.bf16.msra.mxu0 %v3672
        %3694 = vmatprep.subr.bf16.mxu0 0
        %3695 = vmatpush1.bf16.msra.mxu0 %v3673
        %3696 = vmatprep.subr.bf16.mxu0 0
        %3697 = vmatpush1.bf16.msra.mxu0 %v3674
        %3698 = vmatprep.subr.bf16.mxu0 0
        %3699 = vmatpush1.bf16.msra.mxu0 %v3675
        %3700 = vmatprep.subr.bf16.mxu0 0
        %3701 = vmatpush1.bf16.msra.mxu0 0
        %3702 = vmatprep.subr.bf16.mxu0 0
        %3703 = vmatpush1.bf16.msra.mxu0 0
        %3704 = vmatprep.subr.bf16.mxu0 0
        %3705 = vmatpush1.bf16.msra.mxu0 0
        %3706 = vmatprep.subr.bf16.mxu0 0
        %3707 = vmatpush1.bf16.msra.mxu0 0
        %3708 = vmatprep.subr.bf16.mxu0 0
        %3709 = vmatpush1.bf16.msra.mxu0 0
        %3710 = vmatprep.subr.bf16.mxu0 0
        %3711 = vmatpush1.bf16.msra.mxu0 0
        %3712 = vmatprep.subr.bf16.mxu0 0
        %3713 = vmatpush1.bf16.msra.mxu0 0
        %3714 = vmatprep.subr.bf16.mxu0 0
        %3715 = vmatpush1.bf16.msra.mxu0 0
        %3716 = vmatprep.mubr.bf16.mxu0 0
        %3717 = vmatmul.mubr.bf16.gmra.mrb[0].mxu0 %v3515
        %v3718 = vpop.f32.mrb[0].mxu0
        %v3719 = vadd.f32 %v3451, %v3718
        %v3720 = vpop.f32.mrb[0].mxu0
        %v3721 = vpop.f32.mrb[0].mxu0
        %v3722 = vpop.f32.mrb[0].mxu0
        %3723 = vdwg.mxu0
        %v3724 = vsel %vm3493, %v3719, -inf
        %3725 = vmax.xlane.f32.xlu0 %v3724
        %v3726 = vpop.xlane.xlu0 %3725
        %v3727 = vsub.f32 %v3719, %v3726
        %v3728 = vmul.f32 %v3727, 1.442695
        %v3729 = vpow.pop %v3728
        %v3730 = vsel %vm3493, %v3729, 0.0
        %3731 = vadd.xlane.f32.xlu0 %v3730
        %v3732 = vpop.xlane.xlu0 %3731
        %v3733 = vrcp.pop %v3732
        %v3734 = vmul.f32 %v3729, %v3733
        %v3735 = vadd.f32 %v3734, 1e-06
        %s3736 = scalar_lea.vmem %s631, 1 [#allocation14]
        %3737 = vst [vmem:[%s3736] sm:$0x1] %v3615
        %s3738 = scalar_lea.vmem %s638, 1 [#allocation15]
        %3739 = vst [vmem:[%s3738] sm:$0x1] %v3735
        %s3740 = sand.u32 %s371, 1
        %s3741 = scalar_lea.sflag [#allocation4], %s3740
        %s3742 = sand.u32 %s371, 1
        %s3743 = smul.addr %s3742, 2
        %s3744 = scalar_lea.vmem [#allocation14], %s3743
        %s3745 = sand.u32 %s397, 1
        %s3746 = scalar_lea.sflag [#allocation16], %s3745
        %s3747 = sand.u32 %s397, 1
        %s3748 = smul.addr %s3747, 2
        %s3749 = scalar_lea.vmem [#allocation15], %s3748
        // Predicated region
        $region109: #{enc_transformer_forward.1} parent=79 // pred_check
          %p3750 = pneg %p381
        $region110: #{enc_transformer_forward.1} parent=79 // pred_check_branch
          %3752 = sbr.rel (%p3750) target = $region112
        $region111: #{enc_transformer_forward.1} parent=79 // pred_region
          %s3753 = smul.u32 2, %s38
          %s3755 = ssub.s32 32, 32
          %3756 = vsyncadd %s3741, %s3755
          %s3757 = smul.addr %s3753, 16
          %s3758 = scalar_lea.hbm %s15, %s3757
          %s3759 = sshll.u32 %s3744, 4
          %s3760 = int_to_ptr.vmem [resolvable:$true] %s3759
          %3765 = dma.vmem_to_hbm [thread:$0]  %s3760, 32, %s3758, %s3741, 16, 16, 1
        $region112: #{enc_transformer_forward.1} parent=79 // pred_fallthru
          _
        // Predicated region
        $region113: #{enc_transformer_forward.1} parent=79 // pred_check
          %p3766 = pneg %p407
        $region114: #{enc_transformer_forward.1} parent=79 // pred_check_branch
          %3768 = sbr.rel (%p3766) target = $region116
        $region115: #{enc_transformer_forward.1} parent=79 // pred_region
          %s3769 = smul.u32 2, %s38
          %s3771 = ssub.s32 32, 32
          %3772 = vsyncadd %s3746, %s3771
          %s3773 = smul.addr %s3769, 16
          %s3774 = scalar_lea.hbm %s16, %s3773
          %s3775 = sshll.u32 %s3749, 4
          %s3776 = int_to_ptr.vmem [resolvable:$true] %s3775
          %3781 = dma.vmem_to_hbm [thread:$0]  %s3776, 32, %s3774, %s3746, 16, 16, 1
        $region116: #{enc_transformer_forward.1} parent=79 // pred_fallthru
          _
      $region80: #{enc_transformer_forward.1} parent=5 // pred_fallthru
        _
      %p3782 = scmp.le.s32.totalorder 2, %s33
      // Predicated region
      $region117: #{enc_transformer_forward.1} parent=5 // pred_check
        %p3783 = pneg %p3782
      $region118: #{enc_transformer_forward.1} parent=5 // pred_check_branch
        %3785 = sbr.rel (%p3783) target = $region120
      $region119: #{enc_transformer_forward.1} parent=5 // pred_region
        %s3786 = ssub.s32 %s33, 2
        // Predicated region
        $region121: #{enc_transformer_forward.1} parent=119 // pred_check
          %p3787 = pneg %p387
        $region122: #{enc_transformer_forward.1} parent=119 // pred_check_branch
          %3789 = sbr.rel (%p3787) target = $region124
        $region123: #{enc_transformer_forward.1} parent=119 // pred_region
          %s3790 = sand.u32 %s372, 1
          %s3791 = scalar_lea.sflag [#allocation4], %s3790
          %s3792 = sand.u32 %s372, 1
          %s3793 = smul.addr %s3792, 2
          %s3794 = scalar_lea.vmem [#allocation14], %s3793
          %3795 = dma.done %s3791, 32
        $region124: #{enc_transformer_forward.1} parent=119 // pred_fallthru
          _
        // Predicated region
        $region125: #{enc_transformer_forward.1} parent=119 // pred_check
          %p3796 = pneg %p413
        $region126: #{enc_transformer_forward.1} parent=119 // pred_check_branch
          %3798 = sbr.rel (%p3796) target = $region128
        $region127: #{enc_transformer_forward.1} parent=119 // pred_region
          %s3799 = sand.u32 %s398, 1
          %s3800 = scalar_lea.sflag [#allocation16], %s3799
          %s3801 = sand.u32 %s398, 1
          %s3802 = smul.addr %s3801, 2
          %s3803 = scalar_lea.vmem [#allocation15], %s3802
          %3804 = dma.done %s3800, 32
        $region128: #{enc_transformer_forward.1} parent=119 // pred_fallthru
          _
      $region120: #{enc_transformer_forward.1} parent=5 // pred_fallthru
        _
    $region6: #{enc_transformer_forward.1} parent=1 // loop_footer
      %s37 = sadd.s32 1, %s33
    $region7: #{enc_transformer_forward.1} parent=1 // loop_footer_branch
      %32 = sbr.rel target = $region3
    $region8: #{enc_transformer_forward.1} parent=1 // loop_exit
      _
    %3805 = vsyncpa [#allocation3], 1
    %s3806 = scalar_lea.sflag [#allocation3], 1
    %3807 = vsyncpa %s3806, 1
    %3808 = vsyncpa [#allocation6], 1
    %3809 = vsyncpa [#allocation9], 1
    %3810 = vsyncpa [#allocation12], 1
    %3811 = vsyncpa [#allocation4], 1
    %s3812 = scalar_lea.sflag [#allocation4], 1
    %3813 = vsyncpa %s3812, 1
    %3814 = vsyncpa [#allocation16], 1
    %s3815 = scalar_lea.sflag [#allocation16], 1
    %3816 = vsyncpa %s3815, 1

</llo_original>
